<compile_context>
chip_gen: v6e
topology: v6e:2x2x1
jax: 0.10.0
libtpu: 0.0.40
codegen_flags: <defaults>
</compile_context>

<pallas_src>
import functools

import jax
import jax.numpy as jnp
from jax.experimental import pallas as pl
from jax.experimental.pallas import tpu as pltpu


def _tpu_generation():
    """Best-effort TPU generation (5, 6, 7, ...) from device_kind; None if unknown."""
    try:
        kind = jax.devices()[0].device_kind.lower()
    except Exception:
        return None
    for tag, gen in (("v7", 7), ("7x", 7), ("v6", 6), ("v5", 5), ("v4", 4)):
        if tag in kind:
            return gen
    return None


def _intermediate_dtype(gen):
    # bf16 VALU exists on v6e/v7x: halves VMEM + vmax work for the (M, 1024)
    # fc3 intermediate.  v5e (and unknown chips) stay f32.
    return jnp.bfloat16 if gen in (6, 7) else jnp.float32


def pointnet_kernel(x_ref, w1_ref, b1_ref, w2_ref, b2_ref,
                    w3_ref, b3_ref, w4_ref, b4_ref, o_ref, gmax_ref,
                    *, fc1_on_mxu):
    n = pl.program_id(1)
    acc_dtype = gmax_ref.dtype

    # Reset the running max at the first point-chunk of this batch tile.
    @pl.when(n == 0)
    def _init():
        gmax_ref[...] = jnp.full(gmax_ref.shape, -jnp.inf, acc_dtype)

    bt, tn, d_in = x_ref.shape
    x = x_ref[...].reshape(bt * tn, d_in)                 # (M, D_in) f32

    w1 = w1_ref[...]                                      # (D_in, 64) f32
    if fc1_on_mxu:
        # K = 3 matmul: negligible MXU work; avoids per-chunk lane-extract +
        # broadcast on the VPU/XLU (v6e/v7x have large MXU slack here).
        h = jnp.dot(x, w1, preferred_element_type=jnp.float32)
    else:
        # v5e / unknown: keep the MXU free for fc3; fc1 as broadcast FMAs.
        h = x[:, 0:1] * w1[0:1, :]
        for i in range(1, d_in):
            h = h + x[:, i:i + 1] * w1[i:i + 1, :]
    h = jnp.maximum(h + b1_ref[...], 0.0)                 # (M, 64) f32

    # fc2: bf16 MXU matmul, f32 accumulation + f32 bias/ReLU.
    h = jnp.maximum(
        jnp.dot(h.astype(w2_ref.dtype), w2_ref[...],
                preferred_element_type=jnp.float32) + b2_ref[...], 0.0)

    # fc3: matmul only.  Bias-add and ReLU are hoisted into _finalize --
    # bit-exact because max commutes with adding a column-constant and with
    # ReLU (both monotone) -- saving ~2 VPU ops per element of the dominant
    # (M, 1024) tensor on every chunk.
    h3 = jnp.dot(h.astype(w3_ref.dtype), w3_ref[...],
                 preferred_element_type=jnp.float32).astype(acc_dtype)

    # Fold this chunk's per-batch max into the running-max accumulator.
    h3 = h3.reshape(bt, tn, h3.shape[-1])                 # (Bt, TN, 1024)
    gmax_ref[...] = jnp.maximum(gmax_ref[...], jnp.max(h3, axis=1))

    # Finalize: deferred fc3 bias/ReLU, then fc4 once per batch tile.
    @pl.when(n == pl.num_programs(1) - 1)
    def _finalize():
        g = jnp.maximum(gmax_ref[...].astype(jnp.float32) + b3_ref[...], 0.0)
        o_ref[...] = (
            jnp.dot(g.astype(w4_ref.dtype), w4_ref[...],
                    preferred_element_type=jnp.float32) + b4_ref[...]
        ).astype(o_ref.dtype)


def pointnet_encoder(x, params, *, block_b=None, block_n=None):
    """x: [B, N, D_in] float32. params: dict of [in, out] weights / [1, out] biases."""
    B, N, D_in = x.shape
    F_dim = params["w4"].shape[1]
    H3 = params["w3"].shape[1]

    gen = _tpu_generation()
    acc_dtype = _intermediate_dtype(gen)
    fc1_on_mxu = gen in (6, 7)

    # Point-axis tile: large chunks amortize per-grid-step overhead; clamp for
    # tiny point clouds so we do not pad far past N.
    if block_n is None:
        block_n = 512
    block_n = min(block_n, max(128, -(-N // 128) * 128))

    # Batch-axis tile: 8 keeps the 2-D output block sublane-aligned; for B < 8
    # use the full batch (full-dim blocks are always legal, no padded compute).
    # TODO(synk): on v7x with B < 16 the batch grid has a single 'parallel'
    # tile, so only one TensorCore is busy; a 2-stage max split over the point
    # axis would recover the second core.
    if block_b is None:
        block_b = 8 if B >= 8 else B

    # Pad the point axis by replicating the last point (max-pool invariant)
    # and the batch axis with zeros (sliced off below).
    # TODO(synk): replace the tail padding with an in-kernel -inf mask
    # (scalar-prefetch N) to avoid materializing a padded copy of x in HBM.
    n_pad = -(-N // block_n) * block_n
    if n_pad != N:
        pad = jnp.broadcast_to(x[:, -1:, :], (B, n_pad - N, D_in))
        x = jnp.concatenate([x, pad], axis=1)
    b_pad = -(-B // block_b) * block_b
    if b_pad != B:
        x = jnp.concatenate(
            [x, jnp.zeros((b_pad - B, n_pad, D_in), x.dtype)], axis=0)

    # VMEM budget sized from the actual working set (double-buffered inputs /
    # output + fc3 intermediate + weights), capped below v7x's 64 MiB.
    m_rows = block_b * block_n
    weight_bytes = sum(int(v.size) * v.dtype.itemsize for v in params.values())
    working = (m_rows * H3 * jnp.dtype(acc_dtype).itemsize   # fc3 out / max fold
               + m_rows * (64 + 128) * 4                     # fc1/fc2 activations
               + 2 * m_rows * D_in * 4                       # x (double-buffered)
               + 2 * weight_bytes                            # weights (double-buffered)
               + 2 * block_b * F_dim * 4                     # output (double-buffered)
               + block_b * H3 * 4)                           # gmax scratch
    vmem_cap = (52 << 20) if gen == 7 else (100 << 20)
    vmem_limit = max(32 << 20, min(2 * int(working) + (8 << 20), vmem_cap))

    full = lambda shape: pl.BlockSpec(shape, lambda b, n: (0,) * len(shape))

    out = pl.pallas_call(
        functools.partial(pointnet_kernel, fc1_on_mxu=fc1_on_mxu),
        out_shape=jax.ShapeDtypeStruct((b_pad, F_dim), jnp.float32),
        grid_spec=pltpu.PrefetchScalarGridSpec(
            num_scalar_prefetch=0,
            grid=(b_pad // block_b, n_pad // block_n),
            in_specs=[
                pl.BlockSpec((block_b, block_n, D_in), lambda b, n: (b, n, 0)),
                full(params["w1"].shape), full(params["b1"].shape),
                full(params["w2"].shape), full(params["b2"].shape),
                full(params["w3"].shape), full(params["b3"].shape),
                full(params["w4"].shape), full(params["b4"].shape),
            ],
            out_specs=pl.BlockSpec((block_b, F_dim), lambda b, n: (b, 0)),
            scratch_shapes=[pltpu.VMEM((block_b, H3), acc_dtype)],
        ),
        compiler_params=pltpu.CompilerParams(
            dimension_semantics=("parallel", "arbitrary"),
            vmem_limit_bytes=int(vmem_limit)),
    )(x, params["w1"], params["b1"], params["w2"], params["b2"],
      params["w3"], params["b3"], params["w4"], params["b4"])

    return out[:B]


def init_params(key, input_dim=3, feature_dim=2048):
    """Weights stored as [in, out]; biases as [1, out]. fc2..fc4 weights in bf16."""
    dims = [(input_dim, 64), (64, 128), (128, 1024), (1024, feature_dim)]
    params = {}
    keys = jax.random.split(key, 2 * len(dims))
    for i, (d_in, d_out) in enumerate(dims):
        bound = 1.0 / (d_in ** 0.5)  # PyTorch nn.Linear default uniform bound
        w = jax.random.uniform(keys[2 * i], (d_in, d_out), jnp.float32,
                               -bound, bound)
        b = jax.random.uniform(keys[2 * i + 1], (1, d_out), jnp.float32,
                               -bound, bound)
        if i > 0:  # MXU layers in bf16; fc1 stays f32.
            w = w.astype(jnp.bfloat16)
        params[f"w{i + 1}"] = w
        params[f"b{i + 1}"] = b
    return params


def pointnet_reference(x, params, intermediate_dtype=jnp.float32):
    """Pure-JAX reference with the same precision path as the kernel."""
    B, N, D = x.shape
    h = x.reshape(-1, D)
    h = jax.nn.relu(h @ params["w1"] + params["b1"])
    h = jax.nn.relu(jnp.dot(h.astype(params["w2"].dtype), params["w2"],
                            preferred_element_type=jnp.float32) + params["b2"])
    h3 = jnp.dot(h.astype(params["w3"].dtype), params["w3"],
                 preferred_element_type=jnp.float32).astype(intermediate_dtype)
    g = jnp.max(h3.reshape(B, N, -1), axis=1).astype(jnp.float32)
    g = jax.nn.relu(g + params["b3"])
    return jnp.dot(g.astype(params["w4"].dtype), params["w4"],
                   preferred_element_type=jnp.float32) + params["b4"]


if __name__ == "__main__":
    key = jax.random.PRNGKey(0)
    k_x, k_x2, k_p = jax.random.split(key, 3)

    D_in, F_dim = 3, 256
    params = init_params(k_p, input_dim=D_in, feature_dim=F_dim)
    inter_dt = _intermediate_dtype(_tpu_generation())  # same choice as wrapper

    # Small shape consistent with the module (single grid step).
    B, N = 2, 16
    x = jax.random.normal(k_x, (B, N, D_in), dtype=jnp.float32)
    out = jax.block_until_ready(pointnet_encoder(x, params))
    ref = pointnet_reference(x, params, intermediate_dtype=inter_dt)
    assert out.shape == (B, F_dim), out.shape
    assert jnp.allclose(out, ref, atol=5e-3, rtol=5e-3), \
        float(jnp.max(jnp.abs(out - ref)))

    # Exercise the multi-chunk running-max path + ragged point padding
    # (block_n=128 -> 3 N-chunks for N=300).
    B2, N2 = 3, 300
    x2 = jax.random.normal(k_x2, (B2, N2, D_in), dtype=jnp.float32)
    out2 = jax.block_until_ready(pointnet_encoder(x2, params, block_n=128))
    ref2 = pointnet_reference(x2, params, intermediate_dtype=inter_dt)
    assert out2.shape == (B2, F_dim), out2.shape
    assert jnp.allclose(out2, ref2, atol=5e-3, rtol=5e-3), \
        float(jnp.max(jnp.abs(out2 - ref2)))

    # Default (large-chunk) configuration on the same data.
    out3 = jax.block_until_ready(pointnet_encoder(x2, params))
    assert jnp.allclose(out3, ref2, atol=5e-3, rtol=5e-3), \
        float(jnp.max(jnp.abs(out3 - ref2)))

    print("KERNEL_OK")
</pallas_src>

<mosaic_0001>
module attributes {stable_mosaic.version = 11 : i64} {
  func.func @pointnet_kernel(%arg0: i32, %arg1: i32, %arg2: memref<2x128x3xf32, #tpu.memory_space<vmem>>, %arg3: memref<3x64xf32, #tpu.memory_space<vmem>>, %arg4: memref<1x64xf32, #tpu.memory_space<vmem>>, %arg5: memref<64x128xbf16, #tpu.memory_space<vmem>>, %arg6: memref<1x128xf32, #tpu.memory_space<vmem>>, %arg7: memref<128x1024xbf16, #tpu.memory_space<vmem>>, %arg8: memref<1x1024xf32, #tpu.memory_space<vmem>>, %arg9: memref<1024x256xbf16, #tpu.memory_space<vmem>>, %arg10: memref<1x256xf32, #tpu.memory_space<vmem>>, %arg11: memref<2x256xf32, #tpu.memory_space<vmem>>, %arg12: memref<2x1024xf32, #tpu.memory_space<vmem>>) attributes {dimension_semantics = [#tpu.dimension_semantics<parallel>, #tpu.dimension_semantics<arbitrary>], iteration_bounds = array<i64: 1, 1>, scalar_prefetch = 0 : i64, scratch_operands = 1 : i64, tpu.core_type = #tpu.core_type<tc>, window_params = [{transform_indices = @transform_0, window_bounds = array<i64: 2, 128, 3>}, {pipeline_mode = #tpu.pipeline_mode<synchronous>, transform_indices = @transform_1, window_bounds = array<i64: 3, 64>}, {pipeline_mode = #tpu.pipeline_mode<synchronous>, transform_indices = @transform_2, window_bounds = array<i64: 1, 64>}, {pipeline_mode = #tpu.pipeline_mode<synchronous>, transform_indices = @transform_3, window_bounds = array<i64: 64, 128>}, {pipeline_mode = #tpu.pipeline_mode<synchronous>, transform_indices = @transform_4, window_bounds = array<i64: 1, 128>}, {pipeline_mode = #tpu.pipeline_mode<synchronous>, transform_indices = @transform_5, window_bounds = array<i64: 128, 1024>}, {pipeline_mode = #tpu.pipeline_mode<synchronous>, transform_indices = @transform_6, window_bounds = array<i64: 1, 1024>}, {pipeline_mode = #tpu.pipeline_mode<synchronous>, transform_indices = @transform_7, window_bounds = array<i64: 1024, 256>}, {pipeline_mode = #tpu.pipeline_mode<synchronous>, transform_indices = @transform_8, window_bounds = array<i64: 1, 256>}, {transform_indices = @transform_9, window_bounds = array<i64: 2, 256>}]} {
    %c0_i32 = arith.constant 0 : i32
    %0 = arith.cmpi eq, %arg1, %c0_i32 : i32
    %1 = arith.extui %0 : i1 to i32
    %c0_i32_0 = arith.constant 0 : i32
    %2 = arith.cmpi ne, %1, %c0_i32_0 : i32
    scf.if %2 {
      %cst_23 = arith.constant 0xFF800000 : f32
      %47 = vector.broadcast %cst_23 : f32 to vector<2x1024xf32>
      %c0_24 = arith.constant 0 : index
      %c0_25 = arith.constant 0 : index
      %48 = vector.load %arg12[%c0_24, %c0_25] : memref<2x1024xf32, #tpu.memory_space<vmem>>, vector<2x1024xf32>
      tpu.vector_store %arg12[%c0_24, %c0_25], %47 {strides = array<i32>} : memref<2x1024xf32, #tpu.memory_space<vmem>>, vector<2x1024xf32>,
    } else {
    }
    %c0 = arith.constant 0 : index
    %c0_1 = arith.constant 0 : index
    %c0_2 = arith.constant 0 : index
    %3 = vector.load %arg2[%c0, %c0_1, %c0_2] : memref<2x128x3xf32, #tpu.memory_space<vmem>>, vector<2x128x3xf32>
    %4 = vector.shape_cast %3 : vector<2x128x3xf32> to vector<256x3xf32>
    %c0_3 = arith.constant 0 : index
    %c0_4 = arith.constant 0 : index
    %5 = vector.load %arg3[%c0_3, %c0_4] : memref<3x64xf32, #tpu.memory_space<vmem>>, vector<3x64xf32>
    %6 = vector.extract_strided_slice %4 {offsets = [0, 0], sizes = [256, 1], strides = [1, 1]} : vector<256x3xf32> to vector<256x1xf32>
    %7 = vector.extract_strided_slice %5 {offsets = [0, 0], sizes = [1, 64], strides = [1, 1]} : vector<3x64xf32> to vector<1x64xf32>
    %8 = vector.broadcast %6 : vector<256x1xf32> to vector<256x64xf32>
    %9 = vector.broadcast %7 : vector<1x64xf32> to vector<256x64xf32>
    %10 = arith.mulf %8, %9 : vector<256x64xf32>
    %11 = vector.extract_strided_slice %4 {offsets = [0, 1], sizes = [256, 1], strides = [1, 1]} : vector<256x3xf32> to vector<256x1xf32>
    %12 = vector.extract_strided_slice %5 {offsets = [1, 0], sizes = [1, 64], strides = [1, 1]} : vector<3x64xf32> to vector<1x64xf32>
    %13 = vector.broadcast %11 : vector<256x1xf32> to vector<256x64xf32>
    %14 = vector.broadcast %12 : vector<1x64xf32> to vector<256x64xf32>
    %15 = arith.mulf %13, %14 : vector<256x64xf32>
    %16 = arith.addf %10, %15 : vector<256x64xf32>
    %17 = vector.extract_strided_slice %4 {offsets = [0, 2], sizes = [256, 1], strides = [1, 1]} : vector<256x3xf32> to vector<256x1xf32>
    %18 = vector.extract_strided_slice %5 {offsets = [2, 0], sizes = [1, 64], strides = [1, 1]} : vector<3x64xf32> to vector<1x64xf32>
    %19 = vector.broadcast %17 : vector<256x1xf32> to vector<256x64xf32>
    %20 = vector.broadcast %18 : vector<1x64xf32> to vector<256x64xf32>
    %21 = arith.mulf %19, %20 : vector<256x64xf32>
    %22 = arith.addf %16, %21 : vector<256x64xf32>
    %c0_5 = arith.constant 0 : index
    %c0_6 = arith.constant 0 : index
    %23 = vector.load %arg4[%c0_5, %c0_6] : memref<1x64xf32, #tpu.memory_space<vmem>>, vector<1x64xf32>
    %24 = vector.broadcast %23 : vector<1x64xf32> to vector<256x64xf32>
    %25 = arith.addf %22, %24 : vector<256x64xf32>
    %cst = arith.constant 0.000000e+00 : f32
    %26 = vector.broadcast %cst : f32 to vector<256x64xf32>
    %27 = arith.maximumf %25, %26 : vector<256x64xf32>
    %28 = arith.truncf %27 : vector<256x64xf32> to vector<256x64xbf16>
    %c0_7 = arith.constant 0 : index
    %c0_8 = arith.constant 0 : index
    %29 = vector.load %arg5[%c0_7, %c0_8] : memref<64x128xbf16, #tpu.memory_space<vmem>>, vector<64x128xbf16>
    %cst_9 = arith.constant dense<0.000000e+00> : vector<256x128xf32>
    %30 = tpu.matmul %28, %29, %cst_9 {dimension_numbers = #tpu.dot_dimension_numbers<[1], [0], [0], [1], [0, 0, 1, 1], [], []>} : vector<256x64xbf16>, vector<64x128xbf16>, vector<256x128xf32> -> vector<256x128xf32>
    %c0_10 = arith.constant 0 : index
    %c0_11 = arith.constant 0 : index
    %31 = vector.load %arg6[%c0_10, %c0_11] : memref<1x128xf32, #tpu.memory_space<vmem>>, vector<1x128xf32>
    %32 = vector.broadcast %31 : vector<1x128xf32> to vector<256x128xf32>
    %33 = arith.addf %30, %32 : vector<256x128xf32>
    %cst_12 = arith.constant 0.000000e+00 : f32
    %34 = vector.broadcast %cst_12 : f32 to vector<256x128xf32>
    %35 = arith.maximumf %33, %34 : vector<256x128xf32>
    %36 = arith.truncf %35 : vector<256x128xf32> to vector<256x128xbf16>
    %c0_13 = arith.constant 0 : index
    %c0_14 = arith.constant 0 : index
    %37 = vector.load %arg7[%c0_13, %c0_14] : memref<128x1024xbf16, #tpu.memory_space<vmem>>, vector<128x1024xbf16>
    %cst_15 = arith.constant dense<0.000000e+00> : vector<256x1024xf32>
    %38 = tpu.matmul %36, %37, %cst_15 {dimension_numbers = #tpu.dot_dimension_numbers<[1], [0], [0], [1], [0, 0, 1, 1], [], []>} : vector<256x128xbf16>, vector<128x1024xbf16>, vector<256x1024xf32> -> vector<256x1024xf32>
    %39 = vector.shape_cast %38 : vector<256x1024xf32> to vector<2x128x1024xf32>
    %c0_16 = arith.constant 0 : index
    %c0_17 = arith.constant 0 : index
    %40 = vector.load %arg12[%c0_16, %c0_17] : memref<2x1024xf32, #tpu.memory_space<vmem>>, vector<2x1024xf32>
    %cst_18 = arith.constant dense<0xFF800000> : vector<2x1024xf32>
    %41 = vector.multi_reduction <maximumf>, %39, %cst_18 [1] : vector<2x128x1024xf32> to vector<2x1024xf32>
    %42 = arith.maximumf %40, %41 : vector<2x1024xf32>
    %c0_19 = arith.constant 0 : index
    %c0_20 = arith.constant 0 : index
    %43 = vector.load %arg12[%c0_19, %c0_20] : memref<2x1024xf32, #tpu.memory_space<vmem>>, vector<2x1024xf32>
    tpu.vector_store %arg12[%c0_19, %c0_20], %42 {strides = array<i32>} : memref<2x1024xf32, #tpu.memory_space<vmem>>, vector<2x1024xf32>,
    %c0_i32_21 = arith.constant 0 : i32
    %44 = arith.cmpi eq, %arg1, %c0_i32_21 : i32
    %45 = arith.extui %44 : i1 to i32
    %c0_i32_22 = arith.constant 0 : i32
    %46 = arith.cmpi ne, %45, %c0_i32_22 : i32
    scf.if %46 {
      %c0_23 = arith.constant 0 : index
      %c0_24 = arith.constant 0 : index
      %47 = vector.load %arg12[%c0_23, %c0_24] : memref<2x1024xf32, #tpu.memory_space<vmem>>, vector<2x1024xf32>
      %c0_25 = arith.constant 0 : index
      %c0_26 = arith.constant 0 : index
      %48 = vector.load %arg8[%c0_25, %c0_26] : memref<1x1024xf32, #tpu.memory_space<vmem>>, vector<1x1024xf32>
      %49 = vector.broadcast %48 : vector<1x1024xf32> to vector<2x1024xf32>
      %50 = arith.addf %47, %49 : vector<2x1024xf32>
      %cst_27 = arith.constant 0.000000e+00 : f32
      %51 = vector.broadcast %cst_27 : f32 to vector<2x1024xf32>
      %52 = arith.maximumf %50, %51 : vector<2x1024xf32>
      %53 = arith.truncf %52 : vector<2x1024xf32> to vector<2x1024xbf16>
      %c0_28 = arith.constant 0 : index
      %c0_29 = arith.constant 0 : index
      %54 = vector.load %arg9[%c0_28, %c0_29] : memref<1024x256xbf16, #tpu.memory_space<vmem>>, vector<1024x256xbf16>
      %cst_30 = arith.constant dense<0.000000e+00> : vector<2x256xf32>
      %55 = tpu.matmul %53, %54, %cst_30 {dimension_numbers = #tpu.dot_dimension_numbers<[1], [0], [0], [1], [0, 0, 1, 1], [], []>} : vector<2x1024xbf16>, vector<1024x256xbf16>, vector<2x256xf32> -> vector<2x256xf32>
      %c0_31 = arith.constant 0 : index
      %c0_32 = arith.constant 0 : index
      %56 = vector.load %arg10[%c0_31, %c0_32] : memref<1x256xf32, #tpu.memory_space<vmem>>, vector<1x256xf32>
      %57 = vector.broadcast %56 : vector<1x256xf32> to vector<2x256xf32>
      %58 = arith.addf %55, %57 : vector<2x256xf32>
      %c0_33 = arith.constant 0 : index
      %c0_34 = arith.constant 0 : index
      %59 = vector.load %arg11[%c0_33, %c0_34] : memref<2x256xf32, #tpu.memory_space<vmem>>, vector<2x256xf32>
      tpu.vector_store %arg11[%c0_33, %c0_34], %58 {strides = array<i32>} : memref<2x256xf32, #tpu.memory_space<vmem>>, vector<2x256xf32>,
    } else {
    }
    return
  }
  func.func @transform_0(%arg0: i32, %arg1: i32) -> (i32, i32, i32) {
    %c0_i32 = arith.constant 0 : i32
    %c0_i32_0 = arith.constant 0 : i32
    return %arg0, %arg1, %c0_i32 : i32, i32, i32
  }
  func.func @transform_1(%arg0: i32, %arg1: i32) -> (i32, i32) {
    %c0_i32 = arith.constant 0 : i32
    %c0_i32_0 = arith.constant 0 : i32
    %c0_i32_1 = arith.constant 0 : i32
    return %c0_i32, %c0_i32_0 : i32, i32
  }
  func.func @transform_2(%arg0: i32, %arg1: i32) -> (i32, i32) {
    %c0_i32 = arith.constant 0 : i32
    %c0_i32_0 = arith.constant 0 : i32
    %c0_i32_1 = arith.constant 0 : i32
    return %c0_i32, %c0_i32_0 : i32, i32
  }
  func.func @transform_3(%arg0: i32, %arg1: i32) -> (i32, i32) {
    %c0_i32 = arith.constant 0 : i32
    %c0_i32_0 = arith.constant 0 : i32
    %c0_i32_1 = arith.constant 0 : i32
    return %c0_i32, %c0_i32_0 : i32, i32
  }
  func.func @transform_4(%arg0: i32, %arg1: i32) -> (i32, i32) {
    %c0_i32 = arith.constant 0 : i32
    %c0_i32_0 = arith.constant 0 : i32
    %c0_i32_1 = arith.constant 0 : i32
    return %c0_i32, %c0_i32_0 : i32, i32
  }
  func.func @transform_5(%arg0: i32, %arg1: i32) -> (i32, i32) {
    %c0_i32 = arith.constant 0 : i32
    %c0_i32_0 = arith.constant 0 : i32
    %c0_i32_1 = arith.constant 0 : i32
    return %c0_i32, %c0_i32_0 : i32, i32
  }
  func.func @transform_6(%arg0: i32, %arg1: i32) -> (i32, i32) {
    %c0_i32 = arith.constant 0 : i32
    %c0_i32_0 = arith.constant 0 : i32
    %c0_i32_1 = arith.constant 0 : i32
    return %c0_i32, %c0_i32_0 : i32, i32
  }
  func.func @transform_7(%arg0: i32, %arg1: i32) -> (i32, i32) {
    %c0_i32 = arith.constant 0 : i32
    %c0_i32_0 = arith.constant 0 : i32
    %c0_i32_1 = arith.constant 0 : i32
    return %c0_i32, %c0_i32_0 : i32, i32
  }
  func.func @transform_8(%arg0: i32, %arg1: i32) -> (i32, i32) {
    %c0_i32 = arith.constant 0 : i32
    %c0_i32_0 = arith.constant 0 : i32
    %c0_i32_1 = arith.constant 0 : i32
    return %c0_i32, %c0_i32_0 : i32, i32
  }
  func.func @transform_9(%arg0: i32, %arg1: i32) -> (i32, i32) {
    %c0_i32 = arith.constant 0 : i32
    %c0_i32_0 = arith.constant 0 : i32
    return %arg0, %c0_i32 : i32, i32
  }
}

</mosaic_0001>

<llo_original>
// kernel: tpu_custom_call.1
$region0: #{tpu_custom_call.1}
  #allocation0 [shape = 'u32[]', space=smem, size = 0x4, offset = 0x4, fixed_abs, tag = 'smem constant byte address 0x4 - core index']
  #allocation1 [shape = 'u32[144,128]{1,0:T(1,128)}', space=vmem, size = 0x12000, scoped, tag = 'internal scratch']
  #allocation2 [shape = 'f32[2,1024]{1,0:T(2,128)}', space=vmem, size = 0x2000, scoped, tag = 'scratch operand']
  %s0 = inlined_call_operand.vmem [shape: f32[2,128,3], index: 0, kind: input, shape index: {}]
  %s1 = inlined_call_operand.vmem [shape: f32[3,64], index: 1, kind: input, shape index: {}]
  %s2 = inlined_call_operand.vmem [shape: f32[1,64], index: 2, kind: input, shape index: {}]
  %s3 = inlined_call_operand.vmem [shape: bf16[64,128], index: 3, kind: input, shape index: {}]
  %s4 = inlined_call_operand.vmem [shape: f32[1,128], index: 4, kind: input, shape index: {}]
  %s5 = inlined_call_operand.hbm [shape: bf16[128,1024], index: 5, kind: input, shape index: {}]
  %s6 = inlined_call_operand.vmem [shape: f32[1,1024], index: 6, kind: input, shape index: {}]
  %s7 = inlined_call_operand.hbm [shape: bf16[1024,256], index: 7, kind: input, shape index: {}]
  %s8 = inlined_call_operand.vmem [shape: f32[1,256], index: 8, kind: input, shape index: {}]
  %s9 = inlined_call_operand.hbm [shape: f32[2,256], index: 9, kind: output, shape index: {}]
  %s10 = sld [smem:[#allocation0]]
  $region62: #{tpu_custom_call.1} parent=0
    _
  %s12 = ssub.s32 1, %s10
  %s13 = scalar_select 0, %s12, %s10
  $region1: #{tpu_custom_call.1} parent=0
    #allocation3 [shape = 'u8[262144]{0}', space=vmem, size = 0x40000, scoped, tag = 'input window, operand 5, single buffered']
    #allocation4 [shape = 's32[1]{0}', space=sflag, size = 0x4, scoped, tag = 'scoped memory for tpu_custom_call.1']
    #allocation5 [shape = 's32[1]{0}', space=sflag, size = 0x4, scoped, tag = 'scoped memory for tpu_custom_call.1']
    #allocation6 [shape = 'u8[524288]{0}', space=vmem, size = 0x80000, scoped, tag = 'input window, operand 7, single buffered']
    #allocation7 [shape = 's32[1]{0}', space=sflag, size = 0x4, scoped, tag = 'scoped memory for tpu_custom_call.1']
    #allocation8 [shape = 'u8[2048]{0}', space=vmem, size = 0x800, scoped, tag = 'output window, operand 0, single buffered']
    %14 = vsyncpa [#allocation4], 0
    %15 = vsyncpa [#allocation7], 0
    %16 = vsyncpa [#allocation5], 0
    // Predicated region
    $region2: #{tpu_custom_call.1} parent=1 // pred_check
      _
    $region3: #{tpu_custom_call.1} parent=1 // pred_check_branch
      %18 = sbr.rel (0) target = $region5
    $region4: #{tpu_custom_call.1} parent=1 // pred_region
      _
    $region5: #{tpu_custom_call.1} parent=1 // pred_fallthru
      _
    // Predicated region
    $region6: #{tpu_custom_call.1} parent=1 // pred_check
      _
    $region7: #{tpu_custom_call.1} parent=1 // pred_check_branch
      %20 = sbr.rel (0) target = $region9
    $region8: #{tpu_custom_call.1} parent=1 // pred_region
      _
    $region9: #{tpu_custom_call.1} parent=1 // pred_fallthru
      _
    // Predicated region
    $region10: #{tpu_custom_call.1} parent=1 // pred_check
      _
    $region11: #{tpu_custom_call.1} parent=1 // pred_check_branch
      %22 = sbr.rel (0) target = $region13
    $region12: #{tpu_custom_call.1} parent=1 // pred_region
      _
    $region13: #{tpu_custom_call.1} parent=1 // pred_fallthru
      _
    // Predicated region
    $region14: #{tpu_custom_call.1} parent=1 // pred_check
      _
    $region15: #{tpu_custom_call.1} parent=1 // pred_check_branch
      %24 = sbr.rel (0) target = $region17
    $region16: #{tpu_custom_call.1} parent=1 // pred_region
      _
    $region17: #{tpu_custom_call.1} parent=1 // pred_fallthru
      _
    // Predicated region
    $region18: #{tpu_custom_call.1} parent=1 // pred_check
      _
    $region19: #{tpu_custom_call.1} parent=1 // pred_check_branch
      %26 = sbr.rel (0) target = $region21
    $region20: #{tpu_custom_call.1} parent=1 // pred_region
      _
    $region21: #{tpu_custom_call.1} parent=1 // pred_fallthru
      _
    // Predicated region
    $region22: #{tpu_custom_call.1} parent=1 // pred_check
      _
    $region23: #{tpu_custom_call.1} parent=1 // pred_check_branch
      %28 = sbr.rel (0) target = $region25
    $region24: #{tpu_custom_call.1} parent=1 // pred_region
      %s30 = ssub.s32 8192, 8192
      %31 = vsyncadd [#allocation4], %s30
      %s32 = sshll.u32 [#allocation3], 4
      %s33 = int_to_ptr.vmem [resolvable:$true] %s32
      %38 = dma.hbm_to_vmem [thread:$0]  %s5, 8192, %s33, [#allocation4], 512, 512, 32
    $region25: #{tpu_custom_call.1} parent=1 // pred_fallthru
      _
    // Predicated region
    $region26: #{tpu_custom_call.1} parent=1 // pred_check
      _
    $region27: #{tpu_custom_call.1} parent=1 // pred_check_branch
      %40 = sbr.rel (0) target = $region29
    $region28: #{tpu_custom_call.1} parent=1 // pred_region
      _
    $region29: #{tpu_custom_call.1} parent=1 // pred_fallthru
      _
    // Predicated region
    $region30: #{tpu_custom_call.1} parent=1 // pred_check
      _
    $region31: #{tpu_custom_call.1} parent=1 // pred_check_branch
      %42 = sbr.rel (0) target = $region33
    $region32: #{tpu_custom_call.1} parent=1 // pred_region
      %s44 = ssub.s32 16384, 16384
      %45 = vsyncadd [#allocation7], %s44
      %s46 = sshll.u32 [#allocation6], 4
      %s47 = int_to_ptr.vmem [resolvable:$true] %s46
      %52 = dma.hbm_to_vmem [thread:$0]  %s7, 16384, %s47, [#allocation7], 128, 128, 8
    $region33: #{tpu_custom_call.1} parent=1 // pred_fallthru
      _
    // Predicated region
    $region34: #{tpu_custom_call.1} parent=1 // pred_check
      _
    $region35: #{tpu_custom_call.1} parent=1 // pred_check_branch
      %54 = sbr.rel (0) target = $region37
    $region36: #{tpu_custom_call.1} parent=1 // pred_region
      _
    $region37: #{tpu_custom_call.1} parent=1 // pred_fallthru
      _
    // Predicated region
    $region38: #{tpu_custom_call.1} parent=1 // pred_check
      _
    $region39: #{tpu_custom_call.1} parent=1 // pred_check_branch
      %56 = sbr.rel (0) target = $region41
    $region40: #{tpu_custom_call.1} parent=1 // pred_region
      %57 = dma.done [#allocation4], 8192
    $region41: #{tpu_custom_call.1} parent=1 // pred_fallthru
      _
    // Predicated region
    $region42: #{tpu_custom_call.1} parent=1 // pred_check
      _
    $region43: #{tpu_custom_call.1} parent=1 // pred_check_branch
      %59 = sbr.rel (0) target = $region45
    $region44: #{tpu_custom_call.1} parent=1 // pred_region
      %60 = dma.done [#allocation7], 16384
    $region45: #{tpu_custom_call.1} parent=1 // pred_fallthru
      _
    %p62 = scmp.eq.s32.totalorder 0, 0
    // Predicated region
    $region46: #{tpu_custom_call.1} parent=1 // pred_check
      %p63 = pneg %p62
    $region47: #{tpu_custom_call.1} parent=1 // pred_check_branch
      %65 = sbr.rel (%p63) target = $region49
    $region48: #{tpu_custom_call.1} parent=1 // pred_region
      %66 = vst [vmem:[#allocation2] sm:$0xff] -inf
      %67 = vst [vmem:[#allocation2 + $0x8] sm:$0xff] -inf
    $region49: #{tpu_custom_call.1} parent=1 // pred_fallthru
      _
    %v68 = vld [vmem:[%s0] sm:$0xff]
    %v69 = vld [vmem:[%s0 + $0x8] sm:$0xff]
    %v70 = vld [vmem:[%s0 + $0x10] sm:$0xff]
    %v71 = vld [vmem:[%s0 + $0x18] sm:$0xff]
    %v72 = vld [vmem:[%s0 + $0x20] sm:$0xff]
    %v73 = vld [vmem:[%s0 + $0x28] sm:$0xff]
    %v74 = vld [vmem:[%s0 + $0x30] sm:$0xff]
    %v75 = vld [vmem:[%s0 + $0x38] sm:$0xff]
    %v76 = vld [vmem:[%s0 + $0x40] sm:$0xff]
    %v77 = vld [vmem:[%s0 + $0x48] sm:$0xff]
    %v78 = vld [vmem:[%s0 + $0x50] sm:$0xff]
    %v79 = vld [vmem:[%s0 + $0x58] sm:$0xff]
    %v80 = vld [vmem:[%s0 + $0x60] sm:$0xff]
    %v81 = vld [vmem:[%s0 + $0x68] sm:$0xff]
    %v82 = vld [vmem:[%s0 + $0x70] sm:$0xff]
    %v83 = vld [vmem:[%s0 + $0x78] sm:$0xff]
    %v84 = vld [vmem:[%s0 + $0x80] sm:$0xff]
    %v85 = vld [vmem:[%s0 + $0x88] sm:$0xff]
    %v86 = vld [vmem:[%s0 + $0x90] sm:$0xff]
    %v87 = vld [vmem:[%s0 + $0x98] sm:$0xff]
    %v88 = vld [vmem:[%s0 + $0xa0] sm:$0xff]
    %v89 = vld [vmem:[%s0 + $0xa8] sm:$0xff]
    %v90 = vld [vmem:[%s0 + $0xb0] sm:$0xff]
    %v91 = vld [vmem:[%s0 + $0xb8] sm:$0xff]
    %v92 = vld [vmem:[%s0 + $0xc0] sm:$0xff]
    %v93 = vld [vmem:[%s0 + $0xc8] sm:$0xff]
    %v94 = vld [vmem:[%s0 + $0xd0] sm:$0xff]
    %v95 = vld [vmem:[%s0 + $0xd8] sm:$0xff]
    %v96 = vld [vmem:[%s0 + $0xe0] sm:$0xff]
    %v97 = vld [vmem:[%s0 + $0xe8] sm:$0xff]
    %v98 = vld [vmem:[%s0 + $0xf0] sm:$0xff]
    %v99 = vld [vmem:[%s0 + $0xf8] sm:$0xff]
    %v100 = vld [vmem:[%s1] sm:$0x7]
    %102 = vset.pattern.permute.xlu0 0
    %103 = vperm.xlu0 %102, %v68
    %v104 = vpop.permute.xlu0 %103
    %107 = vset.pattern.permute.xlu0 0
    %108 = vperm.xlu0 %107, %v69
    %v109 = vpop.permute.xlu0 %108
    %112 = vset.pattern.permute.xlu0 0
    %113 = vperm.xlu0 %112, %v70
    %v114 = vpop.permute.xlu0 %113
    %117 = vset.pattern.permute.xlu0 0
    %118 = vperm.xlu0 %117, %v71
    %v119 = vpop.permute.xlu0 %118
    %122 = vset.pattern.permute.xlu0 0
    %123 = vperm.xlu0 %122, %v72
    %v124 = vpop.permute.xlu0 %123
    %127 = vset.pattern.permute.xlu0 0
    %128 = vperm.xlu0 %127, %v73
    %v129 = vpop.permute.xlu0 %128
    %132 = vset.pattern.permute.xlu0 0
    %133 = vperm.xlu0 %132, %v74
    %v134 = vpop.permute.xlu0 %133
    %137 = vset.pattern.permute.xlu0 0
    %138 = vperm.xlu0 %137, %v75
    %v139 = vpop.permute.xlu0 %138
    %142 = vset.pattern.permute.xlu0 0
    %143 = vperm.xlu0 %142, %v76
    %v144 = vpop.permute.xlu0 %143
    %147 = vset.pattern.permute.xlu0 0
    %148 = vperm.xlu0 %147, %v77
    %v149 = vpop.permute.xlu0 %148
    %152 = vset.pattern.permute.xlu0 0
    %153 = vperm.xlu0 %152, %v78
    %v154 = vpop.permute.xlu0 %153
    %157 = vset.pattern.permute.xlu0 0
    %158 = vperm.xlu0 %157, %v79
    %v159 = vpop.permute.xlu0 %158
    %162 = vset.pattern.permute.xlu0 0
    %163 = vperm.xlu0 %162, %v80
    %v164 = vpop.permute.xlu0 %163
    %167 = vset.pattern.permute.xlu0 0
    %168 = vperm.xlu0 %167, %v81
    %v169 = vpop.permute.xlu0 %168
    %172 = vset.pattern.permute.xlu0 0
    %173 = vperm.xlu0 %172, %v82
    %v174 = vpop.permute.xlu0 %173
    %177 = vset.pattern.permute.xlu0 0
    %178 = vperm.xlu0 %177, %v83
    %v179 = vpop.permute.xlu0 %178
    %182 = vset.pattern.permute.xlu0 0
    %183 = vperm.xlu0 %182, %v84
    %v184 = vpop.permute.xlu0 %183
    %187 = vset.pattern.permute.xlu0 0
    %188 = vperm.xlu0 %187, %v85
    %v189 = vpop.permute.xlu0 %188
    %192 = vset.pattern.permute.xlu0 0
    %193 = vperm.xlu0 %192, %v86
    %v194 = vpop.permute.xlu0 %193
    %197 = vset.pattern.permute.xlu0 0
    %198 = vperm.xlu0 %197, %v87
    %v199 = vpop.permute.xlu0 %198
    %202 = vset.pattern.permute.xlu0 0
    %203 = vperm.xlu0 %202, %v88
    %v204 = vpop.permute.xlu0 %203
    %207 = vset.pattern.permute.xlu0 0
    %208 = vperm.xlu0 %207, %v89
    %v209 = vpop.permute.xlu0 %208
    %212 = vset.pattern.permute.xlu0 0
    %213 = vperm.xlu0 %212, %v90
    %v214 = vpop.permute.xlu0 %213
    %217 = vset.pattern.permute.xlu0 0
    %218 = vperm.xlu0 %217, %v91
    %v219 = vpop.permute.xlu0 %218
    %222 = vset.pattern.permute.xlu0 0
    %223 = vperm.xlu0 %222, %v92
    %v224 = vpop.permute.xlu0 %223
    %227 = vset.pattern.permute.xlu0 0
    %228 = vperm.xlu0 %227, %v93
    %v229 = vpop.permute.xlu0 %228
    %232 = vset.pattern.permute.xlu0 0
    %233 = vperm.xlu0 %232, %v94
    %v234 = vpop.permute.xlu0 %233
    %237 = vset.pattern.permute.xlu0 0
    %238 = vperm.xlu0 %237, %v95
    %v239 = vpop.permute.xlu0 %238
    %242 = vset.pattern.permute.xlu0 0
    %243 = vperm.xlu0 %242, %v96
    %v244 = vpop.permute.xlu0 %243
    %247 = vset.pattern.permute.xlu0 0
    %248 = vperm.xlu0 %247, %v97
    %v249 = vpop.permute.xlu0 %248
    %252 = vset.pattern.permute.xlu0 0
    %253 = vperm.xlu0 %252, %v98
    %v254 = vpop.permute.xlu0 %253
    %257 = vset.pattern.permute.xlu0 0
    %258 = vperm.xlu0 %257, %v99
    %v259 = vpop.permute.xlu0 %258
    %v261 = vlaneseq
    %v262 = vshrl.u32 %v261, 7
    %v263 = vsub.s32 0, %v262
    %v264 = vrot.slane %v100, %v263
    %v265 = vmul.f32 %v104, %v264
    %v266 = vmul.f32 %v109, %v264
    %v267 = vmul.f32 %v114, %v264
    %v268 = vmul.f32 %v119, %v264
    %v269 = vmul.f32 %v124, %v264
    %v270 = vmul.f32 %v129, %v264
    %v271 = vmul.f32 %v134, %v264
    %v272 = vmul.f32 %v139, %v264
    %v273 = vmul.f32 %v144, %v264
    %v274 = vmul.f32 %v149, %v264
    %v275 = vmul.f32 %v154, %v264
    %v276 = vmul.f32 %v159, %v264
    %v277 = vmul.f32 %v164, %v264
    %v278 = vmul.f32 %v169, %v264
    %v279 = vmul.f32 %v174, %v264
    %v280 = vmul.f32 %v179, %v264
    %v281 = vmul.f32 %v184, %v264
    %v282 = vmul.f32 %v189, %v264
    %v283 = vmul.f32 %v194, %v264
    %v284 = vmul.f32 %v199, %v264
    %v285 = vmul.f32 %v204, %v264
    %v286 = vmul.f32 %v209, %v264
    %v287 = vmul.f32 %v214, %v264
    %v288 = vmul.f32 %v219, %v264
    %v289 = vmul.f32 %v224, %v264
    %v290 = vmul.f32 %v229, %v264
    %v291 = vmul.f32 %v234, %v264
    %v292 = vmul.f32 %v239, %v264
    %v293 = vmul.f32 %v244, %v264
    %v294 = vmul.f32 %v249, %v264
    %v295 = vmul.f32 %v254, %v264
    %v296 = vmul.f32 %v259, %v264
    %297 = vset.pattern.permute.xlu0 1
    %298 = vperm.xlu0 %297, %v68
    %v299 = vpop.permute.xlu0 %298
    %301 = vset.pattern.permute.xlu0 1
    %302 = vperm.xlu0 %301, %v69
    %v303 = vpop.permute.xlu0 %302
    %305 = vset.pattern.permute.xlu0 1
    %306 = vperm.xlu0 %305, %v70
    %v307 = vpop.permute.xlu0 %306
    %309 = vset.pattern.permute.xlu0 1
    %310 = vperm.xlu0 %309, %v71
    %v311 = vpop.permute.xlu0 %310
    %313 = vset.pattern.permute.xlu0 1
    %314 = vperm.xlu0 %313, %v72
    %v315 = vpop.permute.xlu0 %314
    %317 = vset.pattern.permute.xlu0 1
    %318 = vperm.xlu0 %317, %v73
    %v319 = vpop.permute.xlu0 %318
    %321 = vset.pattern.permute.xlu0 1
    %322 = vperm.xlu0 %321, %v74
    %v323 = vpop.permute.xlu0 %322
    %325 = vset.pattern.permute.xlu0 1
    %326 = vperm.xlu0 %325, %v75
    %v327 = vpop.permute.xlu0 %326
    %329 = vset.pattern.permute.xlu0 1
    %330 = vperm.xlu0 %329, %v76
    %v331 = vpop.permute.xlu0 %330
    %333 = vset.pattern.permute.xlu0 1
    %334 = vperm.xlu0 %333, %v77
    %v335 = vpop.permute.xlu0 %334
    %337 = vset.pattern.permute.xlu0 1
    %338 = vperm.xlu0 %337, %v78
    %v339 = vpop.permute.xlu0 %338
    %341 = vset.pattern.permute.xlu0 1
    %342 = vperm.xlu0 %341, %v79
    %v343 = vpop.permute.xlu0 %342
    %345 = vset.pattern.permute.xlu0 1
    %346 = vperm.xlu0 %345, %v80
    %v347 = vpop.permute.xlu0 %346
    %349 = vset.pattern.permute.xlu0 1
    %350 = vperm.xlu0 %349, %v81
    %v351 = vpop.permute.xlu0 %350
    %353 = vset.pattern.permute.xlu0 1
    %354 = vperm.xlu0 %353, %v82
    %v355 = vpop.permute.xlu0 %354
    %357 = vset.pattern.permute.xlu0 1
    %358 = vperm.xlu0 %357, %v83
    %v359 = vpop.permute.xlu0 %358
    %361 = vset.pattern.permute.xlu0 1
    %362 = vperm.xlu0 %361, %v84
    %v363 = vpop.permute.xlu0 %362
    %365 = vset.pattern.permute.xlu0 1
    %366 = vperm.xlu0 %365, %v85
    %v367 = vpop.permute.xlu0 %366
    %369 = vset.pattern.permute.xlu0 1
    %370 = vperm.xlu0 %369, %v86
    %v371 = vpop.permute.xlu0 %370
    %373 = vset.pattern.permute.xlu0 1
    %374 = vperm.xlu0 %373, %v87
    %v375 = vpop.permute.xlu0 %374
    %377 = vset.pattern.permute.xlu0 1
    %378 = vperm.xlu0 %377, %v88
    %v379 = vpop.permute.xlu0 %378
    %381 = vset.pattern.permute.xlu0 1
    %382 = vperm.xlu0 %381, %v89
    %v383 = vpop.permute.xlu0 %382
    %385 = vset.pattern.permute.xlu0 1
    %386 = vperm.xlu0 %385, %v90
    %v387 = vpop.permute.xlu0 %386
    %389 = vset.pattern.permute.xlu0 1
    %390 = vperm.xlu0 %389, %v91
    %v391 = vpop.permute.xlu0 %390
    %393 = vset.pattern.permute.xlu0 1
    %394 = vperm.xlu0 %393, %v92
    %v395 = vpop.permute.xlu0 %394
    %397 = vset.pattern.permute.xlu0 1
    %398 = vperm.xlu0 %397, %v93
    %v399 = vpop.permute.xlu0 %398
    %401 = vset.pattern.permute.xlu0 1
    %402 = vperm.xlu0 %401, %v94
    %v403 = vpop.permute.xlu0 %402
    %405 = vset.pattern.permute.xlu0 1
    %406 = vperm.xlu0 %405, %v95
    %v407 = vpop.permute.xlu0 %406
    %409 = vset.pattern.permute.xlu0 1
    %410 = vperm.xlu0 %409, %v96
    %v411 = vpop.permute.xlu0 %410
    %413 = vset.pattern.permute.xlu0 1
    %414 = vperm.xlu0 %413, %v97
    %v415 = vpop.permute.xlu0 %414
    %417 = vset.pattern.permute.xlu0 1
    %418 = vperm.xlu0 %417, %v98
    %v419 = vpop.permute.xlu0 %418
    %421 = vset.pattern.permute.xlu0 1
    %422 = vperm.xlu0 %421, %v99
    %v423 = vpop.permute.xlu0 %422
    %v425 = vlaneseq
    %v426 = vshrl.u32 %v425, 7
    %v427 = vsub.s32 1, %v426
    %v428 = vrot.slane %v100, %v427
    %v429 = vmul.f32 %v299, %v428
    %v430 = vmul.f32 %v303, %v428
    %v431 = vmul.f32 %v307, %v428
    %v432 = vmul.f32 %v311, %v428
    %v433 = vmul.f32 %v315, %v428
    %v434 = vmul.f32 %v319, %v428
    %v435 = vmul.f32 %v323, %v428
    %v436 = vmul.f32 %v327, %v428
    %v437 = vmul.f32 %v331, %v428
    %v438 = vmul.f32 %v335, %v428
    %v439 = vmul.f32 %v339, %v428
    %v440 = vmul.f32 %v343, %v428
    %v441 = vmul.f32 %v347, %v428
    %v442 = vmul.f32 %v351, %v428
    %v443 = vmul.f32 %v355, %v428
    %v444 = vmul.f32 %v359, %v428
    %v445 = vmul.f32 %v363, %v428
    %v446 = vmul.f32 %v367, %v428
    %v447 = vmul.f32 %v371, %v428
    %v448 = vmul.f32 %v375, %v428
    %v449 = vmul.f32 %v379, %v428
    %v450 = vmul.f32 %v383, %v428
    %v451 = vmul.f32 %v387, %v428
    %v452 = vmul.f32 %v391, %v428
    %v453 = vmul.f32 %v395, %v428
    %v454 = vmul.f32 %v399, %v428
    %v455 = vmul.f32 %v403, %v428
    %v456 = vmul.f32 %v407, %v428
    %v457 = vmul.f32 %v411, %v428
    %v458 = vmul.f32 %v415, %v428
    %v459 = vmul.f32 %v419, %v428
    %v460 = vmul.f32 %v423, %v428
    %v461 = vadd.f32 %v265, %v429
    %v462 = vadd.f32 %v266, %v430
    %v463 = vadd.f32 %v267, %v431
    %v464 = vadd.f32 %v268, %v432
    %v465 = vadd.f32 %v269, %v433
    %v466 = vadd.f32 %v270, %v434
    %v467 = vadd.f32 %v271, %v435
    %v468 = vadd.f32 %v272, %v436
    %v469 = vadd.f32 %v273, %v437
    %v470 = vadd.f32 %v274, %v438
    %v471 = vadd.f32 %v275, %v439
    %v472 = vadd.f32 %v276, %v440
    %v473 = vadd.f32 %v277, %v441
    %v474 = vadd.f32 %v278, %v442
    %v475 = vadd.f32 %v279, %v443
    %v476 = vadd.f32 %v280, %v444
    %v477 = vadd.f32 %v281, %v445
    %v478 = vadd.f32 %v282, %v446
    %v479 = vadd.f32 %v283, %v447
    %v480 = vadd.f32 %v284, %v448
    %v481 = vadd.f32 %v285, %v449
    %v482 = vadd.f32 %v286, %v450
    %v483 = vadd.f32 %v287, %v451
    %v484 = vadd.f32 %v288, %v452
    %v485 = vadd.f32 %v289, %v453
    %v486 = vadd.f32 %v290, %v454
    %v487 = vadd.f32 %v291, %v455
    %v488 = vadd.f32 %v292, %v456
    %v489 = vadd.f32 %v293, %v457
    %v490 = vadd.f32 %v294, %v458
    %v491 = vadd.f32 %v295, %v459
    %v492 = vadd.f32 %v296, %v460
    %493 = vset.pattern.permute.xlu0 2
    %494 = vperm.xlu0 %493, %v68
    %v495 = vpop.permute.xlu0 %494
    %497 = vset.pattern.permute.xlu0 2
    %498 = vperm.xlu0 %497, %v69
    %v499 = vpop.permute.xlu0 %498
    %501 = vset.pattern.permute.xlu0 2
    %502 = vperm.xlu0 %501, %v70
    %v503 = vpop.permute.xlu0 %502
    %505 = vset.pattern.permute.xlu0 2
    %506 = vperm.xlu0 %505, %v71
    %v507 = vpop.permute.xlu0 %506
    %509 = vset.pattern.permute.xlu0 2
    %510 = vperm.xlu0 %509, %v72
    %v511 = vpop.permute.xlu0 %510
    %513 = vset.pattern.permute.xlu0 2
    %514 = vperm.xlu0 %513, %v73
    %v515 = vpop.permute.xlu0 %514
    %517 = vset.pattern.permute.xlu0 2
    %518 = vperm.xlu0 %517, %v74
    %v519 = vpop.permute.xlu0 %518
    %521 = vset.pattern.permute.xlu0 2
    %522 = vperm.xlu0 %521, %v75
    %v523 = vpop.permute.xlu0 %522
    %525 = vset.pattern.permute.xlu0 2
    %526 = vperm.xlu0 %525, %v76
    %v527 = vpop.permute.xlu0 %526
    %529 = vset.pattern.permute.xlu0 2
    %530 = vperm.xlu0 %529, %v77
    %v531 = vpop.permute.xlu0 %530
    %533 = vset.pattern.permute.xlu0 2
    %534 = vperm.xlu0 %533, %v78
    %v535 = vpop.permute.xlu0 %534
    %537 = vset.pattern.permute.xlu0 2
    %538 = vperm.xlu0 %537, %v79
    %v539 = vpop.permute.xlu0 %538
    %541 = vset.pattern.permute.xlu0 2
    %542 = vperm.xlu0 %541, %v80
    %v543 = vpop.permute.xlu0 %542
    %545 = vset.pattern.permute.xlu0 2
    %546 = vperm.xlu0 %545, %v81
    %v547 = vpop.permute.xlu0 %546
    %549 = vset.pattern.permute.xlu0 2
    %550 = vperm.xlu0 %549, %v82
    %v551 = vpop.permute.xlu0 %550
    %553 = vset.pattern.permute.xlu0 2
    %554 = vperm.xlu0 %553, %v83
    %v555 = vpop.permute.xlu0 %554
    %557 = vset.pattern.permute.xlu0 2
    %558 = vperm.xlu0 %557, %v84
    %v559 = vpop.permute.xlu0 %558
    %561 = vset.pattern.permute.xlu0 2
    %562 = vperm.xlu0 %561, %v85
    %v563 = vpop.permute.xlu0 %562
    %565 = vset.pattern.permute.xlu0 2
    %566 = vperm.xlu0 %565, %v86
    %v567 = vpop.permute.xlu0 %566
    %569 = vset.pattern.permute.xlu0 2
    %570 = vperm.xlu0 %569, %v87
    %v571 = vpop.permute.xlu0 %570
    %573 = vset.pattern.permute.xlu0 2
    %574 = vperm.xlu0 %573, %v88
    %v575 = vpop.permute.xlu0 %574
    %577 = vset.pattern.permute.xlu0 2
    %578 = vperm.xlu0 %577, %v89
    %v579 = vpop.permute.xlu0 %578
    %581 = vset.pattern.permute.xlu0 2
    %582 = vperm.xlu0 %581, %v90
    %v583 = vpop.permute.xlu0 %582
    %585 = vset.pattern.permute.xlu0 2
    %586 = vperm.xlu0 %585, %v91
    %v587 = vpop.permute.xlu0 %586
    %589 = vset.pattern.permute.xlu0 2
    %590 = vperm.xlu0 %589, %v92
    %v591 = vpop.permute.xlu0 %590
    %593 = vset.pattern.permute.xlu0 2
    %594 = vperm.xlu0 %593, %v93
    %v595 = vpop.permute.xlu0 %594
    %597 = vset.pattern.permute.xlu0 2
    %598 = vperm.xlu0 %597, %v94
    %v599 = vpop.permute.xlu0 %598
    %601 = vset.pattern.permute.xlu0 2
    %602 = vperm.xlu0 %601, %v95
    %v603 = vpop.permute.xlu0 %602
    %605 = vset.pattern.permute.xlu0 2
    %606 = vperm.xlu0 %605, %v96
    %v607 = vpop.permute.xlu0 %606
    %609 = vset.pattern.permute.xlu0 2
    %610 = vperm.xlu0 %609, %v97
    %v611 = vpop.permute.xlu0 %610
    %613 = vset.pattern.permute.xlu0 2
    %614 = vperm.xlu0 %613, %v98
    %v615 = vpop.permute.xlu0 %614
    %617 = vset.pattern.permute.xlu0 2
    %618 = vperm.xlu0 %617, %v99
    %v619 = vpop.permute.xlu0 %618
    %v621 = vlaneseq
    %v622 = vshrl.u32 %v621, 7
    %v623 = vsub.s32 2, %v622
    %v624 = vrot.slane %v100, %v623
    %v625 = vmul.f32 %v495, %v624
    %v626 = vmul.f32 %v499, %v624
    %v627 = vmul.f32 %v503, %v624
    %v628 = vmul.f32 %v507, %v624
    %v629 = vmul.f32 %v511, %v624
    %v630 = vmul.f32 %v515, %v624
    %v631 = vmul.f32 %v519, %v624
    %v632 = vmul.f32 %v523, %v624
    %v633 = vmul.f32 %v527, %v624
    %v634 = vmul.f32 %v531, %v624
    %v635 = vmul.f32 %v535, %v624
    %v636 = vmul.f32 %v539, %v624
    %v637 = vmul.f32 %v543, %v624
    %v638 = vmul.f32 %v547, %v624
    %v639 = vmul.f32 %v551, %v624
    %v640 = vmul.f32 %v555, %v624
    %v641 = vmul.f32 %v559, %v624
    %v642 = vmul.f32 %v563, %v624
    %v643 = vmul.f32 %v567, %v624
    %v644 = vmul.f32 %v571, %v624
    %v645 = vmul.f32 %v575, %v624
    %v646 = vmul.f32 %v579, %v624
    %v647 = vmul.f32 %v583, %v624
    %v648 = vmul.f32 %v587, %v624
    %v649 = vmul.f32 %v591, %v624
    %v650 = vmul.f32 %v595, %v624
    %v651 = vmul.f32 %v599, %v624
    %v652 = vmul.f32 %v603, %v624
    %v653 = vmul.f32 %v607, %v624
    %v654 = vmul.f32 %v611, %v624
    %v655 = vmul.f32 %v615, %v624
    %v656 = vmul.f32 %v619, %v624
    %v657 = vadd.f32 %v461, %v625
    %v658 = vadd.f32 %v462, %v626
    %v659 = vadd.f32 %v463, %v627
    %v660 = vadd.f32 %v464, %v628
    %v661 = vadd.f32 %v465, %v629
    %v662 = vadd.f32 %v466, %v630
    %v663 = vadd.f32 %v467, %v631
    %v664 = vadd.f32 %v468, %v632
    %v665 = vadd.f32 %v469, %v633
    %v666 = vadd.f32 %v470, %v634
    %v667 = vadd.f32 %v471, %v635
    %v668 = vadd.f32 %v472, %v636
    %v669 = vadd.f32 %v473, %v637
    %v670 = vadd.f32 %v474, %v638
    %v671 = vadd.f32 %v475, %v639
    %v672 = vadd.f32 %v476, %v640
    %v673 = vadd.f32 %v477, %v641
    %v674 = vadd.f32 %v478, %v642
    %v675 = vadd.f32 %v479, %v643
    %v676 = vadd.f32 %v480, %v644
    %v677 = vadd.f32 %v481, %v645
    %v678 = vadd.f32 %v482, %v646
    %v679 = vadd.f32 %v483, %v647
    %v680 = vadd.f32 %v484, %v648
    %v681 = vadd.f32 %v485, %v649
    %v682 = vadd.f32 %v486, %v650
    %v683 = vadd.f32 %v487, %v651
    %v684 = vadd.f32 %v488, %v652
    %v685 = vadd.f32 %v489, %v653
    %v686 = vadd.f32 %v490, %v654
    %v687 = vadd.f32 %v491, %v655
    %v688 = vadd.f32 %v492, %v656
    %v689 = vld [vmem:[%s2] sm:$0x1]
    %v691 = vlaneseq
    %v692 = vshrl.u32 %v691, 7
    %v693 = vsub.s32 0, %v692
    %v694 = vrot.slane %v689, %v693
    %v696 = vadd.f32 %v657, %v694
    %v697 = vadd.f32 %v658, %v694
    %v698 = vadd.f32 %v659, %v694
    %v699 = vadd.f32 %v660, %v694
    %v700 = vadd.f32 %v661, %v694
    %v701 = vadd.f32 %v662, %v694
    %v702 = vadd.f32 %v663, %v694
    %v703 = vadd.f32 %v664, %v694
    %v704 = vadd.f32 %v665, %v694
    %v705 = vadd.f32 %v666, %v694
    %v706 = vadd.f32 %v667, %v694
    %v707 = vadd.f32 %v668, %v694
    %v708 = vadd.f32 %v669, %v694
    %v709 = vadd.f32 %v670, %v694
    %v710 = vadd.f32 %v671, %v694
    %v711 = vadd.f32 %v672, %v694
    %v712 = vadd.f32 %v673, %v694
    %v713 = vadd.f32 %v674, %v694
    %v714 = vadd.f32 %v675, %v694
    %v715 = vadd.f32 %v676, %v694
    %v716 = vadd.f32 %v677, %v694
    %v717 = vadd.f32 %v678, %v694
    %v718 = vadd.f32 %v679, %v694
    %v719 = vadd.f32 %v680, %v694
    %v720 = vadd.f32 %v681, %v694
    %v721 = vadd.f32 %v682, %v694
    %v722 = vadd.f32 %v683, %v694
    %v723 = vadd.f32 %v684, %v694
    %v724 = vadd.f32 %v685, %v694
    %v725 = vadd.f32 %v686, %v694
    %v726 = vadd.f32 %v687, %v694
    %v727 = vadd.f32 %v688, %v694
    %v728 = vmax.f32 %v696, 0.0
    %v729 = vmax.f32 %v697, 0.0
    %v730 = vmax.f32 %v698, 0.0
    %v731 = vmax.f32 %v699, 0.0
    %v732 = vmax.f32 %v700, 0.0
    %v733 = vmax.f32 %v701, 0.0
    %v734 = vmax.f32 %v702, 0.0
    %v735 = vmax.f32 %v703, 0.0
    %v736 = vmax.f32 %v704, 0.0
    %v737 = vmax.f32 %v705, 0.0
    %v738 = vmax.f32 %v706, 0.0
    %v739 = vmax.f32 %v707, 0.0
    %v740 = vmax.f32 %v708, 0.0
    %v741 = vmax.f32 %v709, 0.0
    %v742 = vmax.f32 %v710, 0.0
    %v743 = vmax.f32 %v711, 0.0
    %v744 = vmax.f32 %v712, 0.0
    %v745 = vmax.f32 %v713, 0.0
    %v746 = vmax.f32 %v714, 0.0
    %v747 = vmax.f32 %v715, 0.0
    %v748 = vmax.f32 %v716, 0.0
    %v749 = vmax.f32 %v717, 0.0
    %v750 = vmax.f32 %v718, 0.0
    %v751 = vmax.f32 %v719, 0.0
    %v752 = vmax.f32 %v720, 0.0
    %v753 = vmax.f32 %v721, 0.0
    %v754 = vmax.f32 %v722, 0.0
    %v755 = vmax.f32 %v723, 0.0
    %v756 = vmax.f32 %v724, 0.0
    %v757 = vmax.f32 %v725, 0.0
    %v758 = vmax.f32 %v726, 0.0
    %v759 = vmax.f32 %v727, 0.0
    %v760 = vpack.c.bf16 %v729, %v728
    %v761 = vpack.c.bf16 %v731, %v730
    %v762 = vpack.c.bf16 %v733, %v732
    %v763 = vpack.c.bf16 %v735, %v734
    %v764 = vpack.c.bf16 %v737, %v736
    %v765 = vpack.c.bf16 %v739, %v738
    %v766 = vpack.c.bf16 %v741, %v740
    %v767 = vpack.c.bf16 %v743, %v742
    %v768 = vpack.c.bf16 %v745, %v744
    %v769 = vpack.c.bf16 %v747, %v746
    %v770 = vpack.c.bf16 %v749, %v748
    %v771 = vpack.c.bf16 %v751, %v750
    %v772 = vpack.c.bf16 %v753, %v752
    %v773 = vpack.c.bf16 %v755, %v754
    %v774 = vpack.c.bf16 %v757, %v756
    %v775 = vpack.c.bf16 %v759, %v758
    %v776 = vld [vmem:[%s3] sm:$0xf]
    %v777 = vld [vmem:[%s3 + $0x4] sm:$0xf]
    %v778 = vld [vmem:[%s3 + $0x8] sm:$0xf]
    %v779 = vld [vmem:[%s3 + $0xc] sm:$0xf]
    %v780 = vld [vmem:[%s3 + $0x10] sm:$0xf]
    %v781 = vld [vmem:[%s3 + $0x14] sm:$0xf]
    %v782 = vld [vmem:[%s3 + $0x18] sm:$0xf]
    %v783 = vld [vmem:[%s3 + $0x1c] sm:$0xf]
    %v784 = vld [vmem:[%s4] sm:$0x1]
    %v786 = vlaneseq
    %v787 = vshrl.u32 %v786, 7
    %v788 = vsub.s32 0, %v787
    %v789 = vrot.slane %v784, %v788
    %v799 = vunpack.c.l.b16 %v776
    %v800 = vunpack.c.l.b16 %v777
    %v801 = vunpack.c.l.b16 %v778
    %v802 = vunpack.c.l.b16 %v779
    %v803 = vunpack.c.l.b16 %v780
    %v804 = vunpack.c.l.b16 %v781
    %v805 = vunpack.c.l.b16 %v782
    %v806 = vunpack.c.l.b16 %v783
    %v807 = vpack.c.b16 %v800, %v799
    %v808 = vpack.c.b16 %v802, %v801
    %v809 = vpack.c.b16 %v804, %v803
    %v810 = vpack.c.b16 %v806, %v805
    %vm815 = vcmask 523264
    %v817 = vsel %vm815, %v760, 0
    %v820 = vsel %vm815, %v761, 0
    %v823 = vsel %vm815, %v762, 0
    %v826 = vsel %vm815, %v763, 0
    %v829 = vsel %vm815, %v764, 0
    %v832 = vsel %vm815, %v765, 0
    %v835 = vsel %vm815, %v766, 0
    %v838 = vsel %vm815, %v767, 0
    %v841 = vsel %vm815, %v768, 0
    %v844 = vsel %vm815, %v769, 0
    %v847 = vsel %vm815, %v770, 0
    %v850 = vsel %vm815, %v771, 0
    %v853 = vsel %vm815, %v772, 0
    %v856 = vsel %vm815, %v773, 0
    %v859 = vsel %vm815, %v774, 0
    %v862 = vsel %vm815, %v775, 0
    %864 = vmatprep.subr.bf16.mxu0 0
    %865 = vmatpush1.bf16.msra.mxu0 0
    %866 = vmatprep.subr.bf16.mxu0 0
    %867 = vmatpush1.bf16.msra.mxu0 0
    %868 = vmatprep.subr.bf16.mxu0 0
    %869 = vmatpush1.bf16.msra.mxu0 0
    %870 = vmatprep.subr.bf16.mxu0 0
    %871 = vmatpush1.bf16.msra.mxu0 0
    %872 = vmatprep.subr.bf16.mxu0 0
    %873 = vmatpush1.bf16.msra.mxu0 %v810
    %874 = vmatprep.subr.bf16.mxu0 0
    %875 = vmatpush1.bf16.msra.mxu0 %v809
    %876 = vmatprep.subr.bf16.mxu0 0
    %877 = vmatpush1.bf16.msra.mxu0 %v808
    %878 = vmatprep.subr.bf16.mxu0 0
    %879 = vmatpush1.bf16.msra.mxu0 %v807
    %880 = vmatprep.subr.bf16.mxu0 0
    %881 = vmatpush2.bf16.msra.mxu0 0
    %882 = vmatprep.subr.bf16.mxu0 0
    %883 = vmatpush2.bf16.msra.mxu0 0
    %884 = vmatprep.subr.bf16.mxu0 0
    %885 = vmatpush2.bf16.msra.mxu0 0
    %886 = vmatprep.subr.bf16.mxu0 0
    %887 = vmatpush2.bf16.msra.mxu0 0
    %888 = vmatprep.subr.bf16.mxu0 0
    %889 = vmatpush2.bf16.msra.mxu0 0
    %890 = vmatprep.subr.bf16.mxu0 0
    %891 = vmatpush2.bf16.msra.mxu0 0
    %892 = vmatprep.subr.bf16.mxu0 0
    %893 = vmatpush2.bf16.msra.mxu0 0
    %894 = vmatprep.subr.bf16.mxu0 0
    %895 = vmatpush2.bf16.msra.mxu0 0
    %896 = vmatprep.mubr.bf16.mxu0 0
    %897 = vmatmul.mubr.bf16.gmra.mxu0 %v817
    %v898 = vpop.f32.mrf.mxu0
    %v899 = vadd.f32 %v789, %v898
    %v900 = vpop.f32.mrf.mxu0
    %v901 = vpop.f32.mrf.mxu0
    %v902 = vadd.f32 %v789, %v901
    %v903 = vpop.f32.mrf.mxu0
    %904 = vmatprep.mubr.bf16.mxu0 0
    %905 = vmatmul.mubr.bf16.gmra.mxu0 %v820
    %v906 = vpop.f32.mrf.mxu0
    %v907 = vadd.f32 %v789, %v906
    %v908 = vpop.f32.mrf.mxu0
    %v909 = vpop.f32.mrf.mxu0
    %v910 = vadd.f32 %v789, %v909
    %v911 = vpop.f32.mrf.mxu0
    %912 = vmatprep.mubr.bf16.mxu0 0
    %913 = vmatmul.mubr.bf16.gmra.mxu0 %v823
    %v914 = vpop.f32.mrf.mxu0
    %v915 = vadd.f32 %v789, %v914
    %v916 = vpop.f32.mrf.mxu0
    %v917 = vpop.f32.mrf.mxu0
    %v918 = vadd.f32 %v789, %v917
    %v919 = vpop.f32.mrf.mxu0
    %920 = vmatprep.mubr.bf16.mxu0 0
    %921 = vmatmul.mubr.bf16.gmra.mxu0 %v826
    %v922 = vpop.f32.mrf.mxu0
    %v923 = vadd.f32 %v789, %v922
    %v924 = vpop.f32.mrf.mxu0
    %v925 = vpop.f32.mrf.mxu0
    %v926 = vadd.f32 %v789, %v925
    %v927 = vpop.f32.mrf.mxu0
    %928 = vmatprep.mubr.bf16.mxu0 0
    %929 = vmatmul.mubr.bf16.gmra.mxu0 %v829
    %v930 = vpop.f32.mrf.mxu0
    %v931 = vadd.f32 %v789, %v930
    %v932 = vpop.f32.mrf.mxu0
    %v933 = vpop.f32.mrf.mxu0
    %v934 = vadd.f32 %v789, %v933
    %v935 = vpop.f32.mrf.mxu0
    %936 = vmatprep.mubr.bf16.mxu0 0
    %937 = vmatmul.mubr.bf16.gmra.mxu0 %v832
    %v938 = vpop.f32.mrf.mxu0
    %v939 = vadd.f32 %v789, %v938
    %v940 = vpop.f32.mrf.mxu0
    %v941 = vpop.f32.mrf.mxu0
    %v942 = vadd.f32 %v789, %v941
    %v943 = vpop.f32.mrf.mxu0
    %944 = vmatprep.mubr.bf16.mxu0 0
    %945 = vmatmul.mubr.bf16.gmra.mxu0 %v835
    %v946 = vpop.f32.mrf.mxu0
    %v947 = vadd.f32 %v789, %v946
    %v948 = vpop.f32.mrf.mxu0
    %v949 = vpop.f32.mrf.mxu0
    %v950 = vadd.f32 %v789, %v949
    %v951 = vpop.f32.mrf.mxu0
    %952 = vmatprep.mubr.bf16.mxu0 0
    %953 = vmatmul.mubr.bf16.gmra.mxu0 %v838
    %v954 = vpop.f32.mrf.mxu0
    %v955 = vadd.f32 %v789, %v954
    %v956 = vpop.f32.mrf.mxu0
    %v957 = vpop.f32.mrf.mxu0
    %v958 = vadd.f32 %v789, %v957
    %v959 = vpop.f32.mrf.mxu0
    %960 = vmatprep.mubr.bf16.mxu0 0
    %961 = vmatmul.mubr.bf16.gmra.mxu0 %v841
    %v962 = vpop.f32.mrf.mxu0
    %v963 = vadd.f32 %v789, %v962
    %v964 = vpop.f32.mrf.mxu0
    %v965 = vpop.f32.mrf.mxu0
    %v966 = vadd.f32 %v789, %v965
    %v967 = vpop.f32.mrf.mxu0
    %968 = vmatprep.mubr.bf16.mxu0 0
    %969 = vmatmul.mubr.bf16.gmra.mxu0 %v844
    %v970 = vpop.f32.mrf.mxu0
    %v971 = vadd.f32 %v789, %v970
    %v972 = vpop.f32.mrf.mxu0
    %v973 = vpop.f32.mrf.mxu0
    %v974 = vadd.f32 %v789, %v973
    %v975 = vpop.f32.mrf.mxu0
    %976 = vmatprep.mubr.bf16.mxu0 0
    %977 = vmatmul.mubr.bf16.gmra.mxu0 %v847
    %v978 = vpop.f32.mrf.mxu0
    %v979 = vadd.f32 %v789, %v978
    %v980 = vpop.f32.mrf.mxu0
    %v981 = vpop.f32.mrf.mxu0
    %v982 = vadd.f32 %v789, %v981
    %v983 = vpop.f32.mrf.mxu0
    %984 = vmatprep.mubr.bf16.mxu0 0
    %985 = vmatmul.mubr.bf16.gmra.mxu0 %v850
    %v986 = vpop.f32.mrf.mxu0
    %v987 = vadd.f32 %v789, %v986
    %v988 = vpop.f32.mrf.mxu0
    %v989 = vpop.f32.mrf.mxu0
    %v990 = vadd.f32 %v789, %v989
    %v991 = vpop.f32.mrf.mxu0
    %992 = vmatprep.mubr.bf16.mxu0 0
    %993 = vmatmul.mubr.bf16.gmra.mxu0 %v853
    %v994 = vpop.f32.mrf.mxu0
    %v995 = vadd.f32 %v789, %v994
    %v996 = vpop.f32.mrf.mxu0
    %v997 = vpop.f32.mrf.mxu0
    %v998 = vadd.f32 %v789, %v997
    %v999 = vpop.f32.mrf.mxu0
    %1000 = vmatprep.mubr.bf16.mxu0 0
    %1001 = vmatmul.mubr.bf16.gmra.mxu0 %v856
    %v1002 = vpop.f32.mrf.mxu0
    %v1003 = vadd.f32 %v789, %v1002
    %v1004 = vpop.f32.mrf.mxu0
    %v1005 = vpop.f32.mrf.mxu0
    %v1006 = vadd.f32 %v789, %v1005
    %v1007 = vpop.f32.mrf.mxu0
    %1008 = vmatprep.mubr.bf16.mxu0 0
    %1009 = vmatmul.mubr.bf16.gmra.mxu0 %v859
    %v1010 = vpop.f32.mrf.mxu0
    %v1011 = vadd.f32 %v789, %v1010
    %v1012 = vpop.f32.mrf.mxu0
    %v1013 = vpop.f32.mrf.mxu0
    %v1014 = vadd.f32 %v789, %v1013
    %v1015 = vpop.f32.mrf.mxu0
    %1016 = vmatprep.mubr.bf16.mxu0 0
    %1017 = vmatmul.mubr.bf16.gmra.mxu0 %v862
    %v1018 = vpop.f32.mrf.mxu0
    %v1019 = vadd.f32 %v789, %v1018
    %v1020 = vpop.f32.mrf.mxu0
    %v1021 = vpop.f32.mrf.mxu0
    %v1022 = vadd.f32 %v789, %v1021
    %v1023 = vpop.f32.mrf.mxu0
    %1024 = vdwg.mxu0
    %v1025 = vmax.f32 %v899, 0.0
    %v1026 = vmax.f32 %v902, 0.0
    %v1027 = vmax.f32 %v907, 0.0
    %v1028 = vmax.f32 %v910, 0.0
    %v1029 = vmax.f32 %v915, 0.0
    %v1030 = vmax.f32 %v918, 0.0
    %v1031 = vmax.f32 %v923, 0.0
    %v1032 = vmax.f32 %v926, 0.0
    %v1033 = vmax.f32 %v931, 0.0
    %v1034 = vmax.f32 %v934, 0.0
    %v1035 = vmax.f32 %v939, 0.0
    %v1036 = vmax.f32 %v942, 0.0
    %v1037 = vmax.f32 %v947, 0.0
    %v1038 = vmax.f32 %v950, 0.0
    %v1039 = vmax.f32 %v955, 0.0
    %v1040 = vmax.f32 %v958, 0.0
    %v1041 = vmax.f32 %v963, 0.0
    %v1042 = vmax.f32 %v966, 0.0
    %v1043 = vmax.f32 %v971, 0.0
    %v1044 = vmax.f32 %v974, 0.0
    %v1045 = vmax.f32 %v979, 0.0
    %v1046 = vmax.f32 %v982, 0.0
    %v1047 = vmax.f32 %v987, 0.0
    %v1048 = vmax.f32 %v990, 0.0
    %v1049 = vmax.f32 %v995, 0.0
    %v1050 = vmax.f32 %v998, 0.0
    %v1051 = vmax.f32 %v1003, 0.0
    %v1052 = vmax.f32 %v1006, 0.0
    %v1053 = vmax.f32 %v1011, 0.0
    %v1054 = vmax.f32 %v1014, 0.0
    %v1055 = vmax.f32 %v1019, 0.0
    %v1056 = vmax.f32 %v1022, 0.0
    %v1057 = vpack.c.bf16 %v1026, %v1025
    %v1058 = vpack.c.bf16 %v1028, %v1027
    %v1059 = vpack.c.bf16 %v1030, %v1029
    %v1060 = vpack.c.bf16 %v1032, %v1031
    %v1061 = vpack.c.bf16 %v1034, %v1033
    %v1062 = vpack.c.bf16 %v1036, %v1035
    %v1063 = vpack.c.bf16 %v1038, %v1037
    %v1064 = vpack.c.bf16 %v1040, %v1039
    %v1065 = vpack.c.bf16 %v1042, %v1041
    %v1066 = vpack.c.bf16 %v1044, %v1043
    %v1067 = vpack.c.bf16 %v1046, %v1045
    %v1068 = vpack.c.bf16 %v1048, %v1047
    %v1069 = vpack.c.bf16 %v1050, %v1049
    %v1070 = vpack.c.bf16 %v1052, %v1051
    %v1071 = vpack.c.bf16 %v1054, %v1053
    %v1072 = vpack.c.bf16 %v1056, %v1055
    %v1073 = vld [vmem:[#allocation3] sm:$0xff]
    %v1074 = vld [vmem:[#allocation3 + $0x8] sm:$0xff]
    %v1075 = vld [vmem:[#allocation3 + $0x10] sm:$0xff]
    %v1076 = vld [vmem:[#allocation3 + $0x18] sm:$0xff]
    %v1077 = vld [vmem:[#allocation3 + $0x20] sm:$0xff]
    %v1078 = vld [vmem:[#allocation3 + $0x28] sm:$0xff]
    %v1079 = vld [vmem:[#allocation3 + $0x30] sm:$0xff]
    %v1080 = vld [vmem:[#allocation3 + $0x38] sm:$0xff]
    %v1081 = vld [vmem:[#allocation3 + $0x40] sm:$0xff]
    %v1082 = vld [vmem:[#allocation3 + $0x48] sm:$0xff]
    %v1083 = vld [vmem:[#allocation3 + $0x50] sm:$0xff]
    %v1084 = vld [vmem:[#allocation3 + $0x58] sm:$0xff]
    %v1085 = vld [vmem:[#allocation3 + $0x60] sm:$0xff]
    %v1086 = vld [vmem:[#allocation3 + $0x68] sm:$0xff]
    %v1087 = vld [vmem:[#allocation3 + $0x70] sm:$0xff]
    %v1088 = vld [vmem:[#allocation3 + $0x78] sm:$0xff]
    %v1089 = vld [vmem:[#allocation3 + $0x80] sm:$0xff]
    %v1090 = vld [vmem:[#allocation3 + $0x88] sm:$0xff]
    %v1091 = vld [vmem:[#allocation3 + $0x90] sm:$0xff]
    %v1092 = vld [vmem:[#allocation3 + $0x98] sm:$0xff]
    %v1093 = vld [vmem:[#allocation3 + $0xa0] sm:$0xff]
    %v1094 = vld [vmem:[#allocation3 + $0xa8] sm:$0xff]
    %v1095 = vld [vmem:[#allocation3 + $0xb0] sm:$0xff]
    %v1096 = vld [vmem:[#allocation3 + $0xb8] sm:$0xff]
    %v1097 = vld [vmem:[#allocation3 + $0xc0] sm:$0xff]
    %v1098 = vld [vmem:[#allocation3 + $0xc8] sm:$0xff]
    %v1099 = vld [vmem:[#allocation3 + $0xd0] sm:$0xff]
    %v1100 = vld [vmem:[#allocation3 + $0xd8] sm:$0xff]
    %v1101 = vld [vmem:[#allocation3 + $0xe0] sm:$0xff]
    %v1102 = vld [vmem:[#allocation3 + $0xe8] sm:$0xff]
    %v1103 = vld [vmem:[#allocation3 + $0xf0] sm:$0xff]
    %v1104 = vld [vmem:[#allocation3 + $0xf8] sm:$0xff]
    %v1105 = vld [vmem:[#allocation3 + $0x100] sm:$0xff]
    %v1106 = vld [vmem:[#allocation3 + $0x108] sm:$0xff]
    %v1107 = vld [vmem:[#allocation3 + $0x110] sm:$0xff]
    %v1108 = vld [vmem:[#allocation3 + $0x118] sm:$0xff]
    %v1109 = vld [vmem:[#allocation3 + $0x120] sm:$0xff]
    %v1110 = vld [vmem:[#allocation3 + $0x128] sm:$0xff]
    %v1111 = vld [vmem:[#allocation3 + $0x130] sm:$0xff]
    %v1112 = vld [vmem:[#allocation3 + $0x138] sm:$0xff]
    %v1113 = vld [vmem:[#allocation3 + $0x140] sm:$0xff]
    %v1114 = vld [vmem:[#allocation3 + $0x148] sm:$0xff]
    %v1115 = vld [vmem:[#allocation3 + $0x150] sm:$0xff]
    %v1116 = vld [vmem:[#allocation3 + $0x158] sm:$0xff]
    %v1117 = vld [vmem:[#allocation3 + $0x160] sm:$0xff]
    %v1118 = vld [vmem:[#allocation3 + $0x168] sm:$0xff]
    %v1119 = vld [vmem:[#allocation3 + $0x170] sm:$0xff]
    %v1120 = vld [vmem:[#allocation3 + $0x178] sm:$0xff]
    %v1121 = vld [vmem:[#allocation3 + $0x180] sm:$0xff]
    %v1122 = vld [vmem:[#allocation3 + $0x188] sm:$0xff]
    %v1123 = vld [vmem:[#allocation3 + $0x190] sm:$0xff]
    %v1124 = vld [vmem:[#allocation3 + $0x198] sm:$0xff]
    %v1125 = vld [vmem:[#allocation3 + $0x1a0] sm:$0xff]
    %v1126 = vld [vmem:[#allocation3 + $0x1a8] sm:$0xff]
    %v1127 = vld [vmem:[#allocation3 + $0x1b0] sm:$0xff]
    %v1128 = vld [vmem:[#allocation3 + $0x1b8] sm:$0xff]
    %v1129 = vld [vmem:[#allocation3 + $0x1c0] sm:$0xff]
    %v1130 = vld [vmem:[#allocation3 + $0x1c8] sm:$0xff]
    %v1131 = vld [vmem:[#allocation3 + $0x1d0] sm:$0xff]
    %v1132 = vld [vmem:[#allocation3 + $0x1d8] sm:$0xff]
    %v1133 = vld [vmem:[#allocation3 + $0x1e0] sm:$0xff]
    %v1134 = vld [vmem:[#allocation3 + $0x1e8] sm:$0xff]
    %v1135 = vld [vmem:[#allocation3 + $0x1f0] sm:$0xff]
    %v1136 = vld [vmem:[#allocation3 + $0x1f8] sm:$0xff]
    %v1201 = vunpack.c.l.b16 %v1073
    %v1202 = vunpack.c.h.b16 %v1073
    %v1203 = vunpack.c.l.b16 %v1074
    %v1204 = vunpack.c.h.b16 %v1074
    %v1205 = vunpack.c.l.b16 %v1075
    %v1206 = vunpack.c.h.b16 %v1075
    %v1207 = vunpack.c.l.b16 %v1076
    %v1208 = vunpack.c.h.b16 %v1076
    %v1209 = vunpack.c.l.b16 %v1077
    %v1210 = vunpack.c.h.b16 %v1077
    %v1211 = vunpack.c.l.b16 %v1078
    %v1212 = vunpack.c.h.b16 %v1078
    %v1213 = vunpack.c.l.b16 %v1079
    %v1214 = vunpack.c.h.b16 %v1079
    %v1215 = vunpack.c.l.b16 %v1080
    %v1216 = vunpack.c.h.b16 %v1080
    %v1217 = vunpack.c.l.b16 %v1081
    %v1218 = vunpack.c.h.b16 %v1081
    %v1219 = vunpack.c.l.b16 %v1082
    %v1220 = vunpack.c.h.b16 %v1082
    %v1221 = vunpack.c.l.b16 %v1083
    %v1222 = vunpack.c.h.b16 %v1083
    %v1223 = vunpack.c.l.b16 %v1084
    %v1224 = vunpack.c.h.b16 %v1084
    %v1225 = vunpack.c.l.b16 %v1085
    %v1226 = vunpack.c.h.b16 %v1085
    %v1227 = vunpack.c.l.b16 %v1086
    %v1228 = vunpack.c.h.b16 %v1086
    %v1229 = vunpack.c.l.b16 %v1087
    %v1230 = vunpack.c.h.b16 %v1087
    %v1231 = vunpack.c.l.b16 %v1088
    %v1232 = vunpack.c.h.b16 %v1088
    %v1233 = vunpack.c.l.b16 %v1089
    %v1234 = vunpack.c.h.b16 %v1089
    %v1235 = vunpack.c.l.b16 %v1090
    %v1236 = vunpack.c.h.b16 %v1090
    %v1237 = vunpack.c.l.b16 %v1091
    %v1238 = vunpack.c.h.b16 %v1091
    %v1239 = vunpack.c.l.b16 %v1092
    %v1240 = vunpack.c.h.b16 %v1092
    %v1241 = vunpack.c.l.b16 %v1093
    %v1242 = vunpack.c.h.b16 %v1093
    %v1243 = vunpack.c.l.b16 %v1094
    %v1244 = vunpack.c.h.b16 %v1094
    %v1245 = vunpack.c.l.b16 %v1095
    %v1246 = vunpack.c.h.b16 %v1095
    %v1247 = vunpack.c.l.b16 %v1096
    %v1248 = vunpack.c.h.b16 %v1096
    %v1249 = vunpack.c.l.b16 %v1097
    %v1250 = vunpack.c.h.b16 %v1097
    %v1251 = vunpack.c.l.b16 %v1098
    %v1252 = vunpack.c.h.b16 %v1098
    %v1253 = vunpack.c.l.b16 %v1099
    %v1254 = vunpack.c.h.b16 %v1099
    %v1255 = vunpack.c.l.b16 %v1100
    %v1256 = vunpack.c.h.b16 %v1100
    %v1257 = vunpack.c.l.b16 %v1101
    %v1258 = vunpack.c.h.b16 %v1101
    %v1259 = vunpack.c.l.b16 %v1102
    %v1260 = vunpack.c.h.b16 %v1102
    %v1261 = vunpack.c.l.b16 %v1103
    %v1262 = vunpack.c.h.b16 %v1103
    %v1263 = vunpack.c.l.b16 %v1104
    %v1264 = vunpack.c.h.b16 %v1104
    %v1265 = vunpack.c.l.b16 %v1105
    %v1266 = vunpack.c.h.b16 %v1105
    %v1267 = vunpack.c.l.b16 %v1106
    %v1268 = vunpack.c.h.b16 %v1106
    %v1269 = vunpack.c.l.b16 %v1107
    %v1270 = vunpack.c.h.b16 %v1107
    %v1271 = vunpack.c.l.b16 %v1108
    %v1272 = vunpack.c.h.b16 %v1108
    %v1273 = vunpack.c.l.b16 %v1109
    %v1274 = vunpack.c.h.b16 %v1109
    %v1275 = vunpack.c.l.b16 %v1110
    %v1276 = vunpack.c.h.b16 %v1110
    %v1277 = vunpack.c.l.b16 %v1111
    %v1278 = vunpack.c.h.b16 %v1111
    %v1279 = vunpack.c.l.b16 %v1112
    %v1280 = vunpack.c.h.b16 %v1112
    %v1281 = vunpack.c.l.b16 %v1113
    %v1282 = vunpack.c.h.b16 %v1113
    %v1283 = vunpack.c.l.b16 %v1114
    %v1284 = vunpack.c.h.b16 %v1114
    %v1285 = vunpack.c.l.b16 %v1115
    %v1286 = vunpack.c.h.b16 %v1115
    %v1287 = vunpack.c.l.b16 %v1116
    %v1288 = vunpack.c.h.b16 %v1116
    %v1289 = vunpack.c.l.b16 %v1117
    %v1290 = vunpack.c.h.b16 %v1117
    %v1291 = vunpack.c.l.b16 %v1118
    %v1292 = vunpack.c.h.b16 %v1118
    %v1293 = vunpack.c.l.b16 %v1119
    %v1294 = vunpack.c.h.b16 %v1119
    %v1295 = vunpack.c.l.b16 %v1120
    %v1296 = vunpack.c.h.b16 %v1120
    %v1297 = vunpack.c.l.b16 %v1121
    %v1298 = vunpack.c.h.b16 %v1121
    %v1299 = vunpack.c.l.b16 %v1122
    %v1300 = vunpack.c.h.b16 %v1122
    %v1301 = vunpack.c.l.b16 %v1123
    %v1302 = vunpack.c.h.b16 %v1123
    %v1303 = vunpack.c.l.b16 %v1124
    %v1304 = vunpack.c.h.b16 %v1124
    %v1305 = vunpack.c.l.b16 %v1125
    %v1306 = vunpack.c.h.b16 %v1125
    %v1307 = vunpack.c.l.b16 %v1126
    %v1308 = vunpack.c.h.b16 %v1126
    %v1309 = vunpack.c.l.b16 %v1127
    %v1310 = vunpack.c.h.b16 %v1127
    %v1311 = vunpack.c.l.b16 %v1128
    %v1312 = vunpack.c.h.b16 %v1128
    %v1313 = vunpack.c.l.b16 %v1129
    %v1314 = vunpack.c.h.b16 %v1129
    %v1315 = vunpack.c.l.b16 %v1130
    %v1316 = vunpack.c.h.b16 %v1130
    %v1317 = vunpack.c.l.b16 %v1131
    %v1318 = vunpack.c.h.b16 %v1131
    %v1319 = vunpack.c.l.b16 %v1132
    %v1320 = vunpack.c.h.b16 %v1132
    %v1321 = vunpack.c.l.b16 %v1133
    %v1322 = vunpack.c.h.b16 %v1133
    %v1323 = vunpack.c.l.b16 %v1134
    %v1324 = vunpack.c.h.b16 %v1134
    %v1325 = vunpack.c.l.b16 %v1135
    %v1326 = vunpack.c.h.b16 %v1135
    %v1327 = vunpack.c.l.b16 %v1136
    %v1328 = vunpack.c.h.b16 %v1136
    %v1329 = vpack.c.b16 %v1209, %v1201
    %v1330 = vpack.c.b16 %v1210, %v1202
    %v1331 = vpack.c.b16 %v1211, %v1203
    %v1332 = vpack.c.b16 %v1212, %v1204
    %v1333 = vpack.c.b16 %v1213, %v1205
    %v1334 = vpack.c.b16 %v1214, %v1206
    %v1335 = vpack.c.b16 %v1215, %v1207
    %v1336 = vpack.c.b16 %v1216, %v1208
    %v1337 = vpack.c.b16 %v1225, %v1217
    %v1338 = vpack.c.b16 %v1226, %v1218
    %v1339 = vpack.c.b16 %v1227, %v1219
    %v1340 = vpack.c.b16 %v1228, %v1220
    %v1341 = vpack.c.b16 %v1229, %v1221
    %v1342 = vpack.c.b16 %v1230, %v1222
    %v1343 = vpack.c.b16 %v1231, %v1223
    %v1344 = vpack.c.b16 %v1232, %v1224
    %v1345 = vpack.c.b16 %v1241, %v1233
    %v1346 = vpack.c.b16 %v1242, %v1234
    %v1347 = vpack.c.b16 %v1243, %v1235
    %v1348 = vpack.c.b16 %v1244, %v1236
    %v1349 = vpack.c.b16 %v1245, %v1237
    %v1350 = vpack.c.b16 %v1246, %v1238
    %v1351 = vpack.c.b16 %v1247, %v1239
    %v1352 = vpack.c.b16 %v1248, %v1240
    %v1353 = vpack.c.b16 %v1257, %v1249
    %v1354 = vpack.c.b16 %v1258, %v1250
    %v1355 = vpack.c.b16 %v1259, %v1251
    %v1356 = vpack.c.b16 %v1260, %v1252
    %v1357 = vpack.c.b16 %v1261, %v1253
    %v1358 = vpack.c.b16 %v1262, %v1254
    %v1359 = vpack.c.b16 %v1263, %v1255
    %v1360 = vpack.c.b16 %v1264, %v1256
    %v1361 = vpack.c.b16 %v1273, %v1265
    %v1362 = vpack.c.b16 %v1274, %v1266
    %v1363 = vpack.c.b16 %v1275, %v1267
    %v1364 = vpack.c.b16 %v1276, %v1268
    %v1365 = vpack.c.b16 %v1277, %v1269
    %v1366 = vpack.c.b16 %v1278, %v1270
    %v1367 = vpack.c.b16 %v1279, %v1271
    %v1368 = vpack.c.b16 %v1280, %v1272
    %v1369 = vpack.c.b16 %v1289, %v1281
    %v1370 = vpack.c.b16 %v1290, %v1282
    %v1371 = vpack.c.b16 %v1291, %v1283
    %v1372 = vpack.c.b16 %v1292, %v1284
    %v1373 = vpack.c.b16 %v1293, %v1285
    %v1374 = vpack.c.b16 %v1294, %v1286
    %v1375 = vpack.c.b16 %v1295, %v1287
    %v1376 = vpack.c.b16 %v1296, %v1288
    %v1377 = vpack.c.b16 %v1305, %v1297
    %v1378 = vpack.c.b16 %v1306, %v1298
    %v1379 = vpack.c.b16 %v1307, %v1299
    %v1380 = vpack.c.b16 %v1308, %v1300
    %v1381 = vpack.c.b16 %v1309, %v1301
    %v1382 = vpack.c.b16 %v1310, %v1302
    %v1383 = vpack.c.b16 %v1311, %v1303
    %v1384 = vpack.c.b16 %v1312, %v1304
    %v1385 = vpack.c.b16 %v1321, %v1313
    %v1386 = vpack.c.b16 %v1322, %v1314
    %v1387 = vpack.c.b16 %v1323, %v1315
    %v1388 = vpack.c.b16 %v1324, %v1316
    %v1389 = vpack.c.b16 %v1325, %v1317
    %v1390 = vpack.c.b16 %v1326, %v1318
    %v1391 = vpack.c.b16 %v1327, %v1319
    %v1392 = vpack.c.b16 %v1328, %v1320
    %1457 = vmatprep.subr.bf16.mxu0 %v1386
    %1458 = vmatpush1.bf16.msra.mxu0 %v1385
    %1459 = vmatprep.subr.bf16.mxu0 %v1378
    %1460 = vmatpush1.bf16.msra.mxu0 %v1377
    %1461 = vmatprep.subr.bf16.mxu0 %v1370
    %1462 = vmatpush1.bf16.msra.mxu0 %v1369
    %1463 = vmatprep.subr.bf16.mxu0 %v1362
    %1464 = vmatpush1.bf16.msra.mxu0 %v1361
    %1465 = vmatprep.subr.bf16.mxu0 %v1354
    %1466 = vmatpush1.bf16.msra.mxu0 %v1353
    %1467 = vmatprep.subr.bf16.mxu0 %v1346
    %1468 = vmatpush1.bf16.msra.mxu0 %v1345
    %1469 = vmatprep.subr.bf16.mxu0 %v1338
    %1470 = vmatpush1.bf16.msra.mxu0 %v1337
    %1471 = vmatprep.subr.bf16.mxu0 %v1330
    %1472 = vmatpush1.bf16.msra.mxu0 %v1329
    %1473 = vmatprep.subr.bf16.mxu0 0
    %1474 = vmatpush2.bf16.msra.mxu0 0
    %1475 = vmatprep.subr.bf16.mxu0 0
    %1476 = vmatpush2.bf16.msra.mxu0 0
    %1477 = vmatprep.subr.bf16.mxu0 0
    %1478 = vmatpush2.bf16.msra.mxu0 0
    %1479 = vmatprep.subr.bf16.mxu0 0
    %1480 = vmatpush2.bf16.msra.mxu0 0
    %1481 = vmatprep.subr.bf16.mxu0 0
    %1482 = vmatpush2.bf16.msra.mxu0 0
    %1483 = vmatprep.subr.bf16.mxu0 0
    %1484 = vmatpush2.bf16.msra.mxu0 0
    %1485 = vmatprep.subr.bf16.mxu0 0
    %1486 = vmatpush2.bf16.msra.mxu0 0
    %1487 = vmatprep.subr.bf16.mxu0 0
    %1488 = vmatpush2.bf16.msra.mxu0 0
    %1489 = vmatprep.mubr.bf16.mxu0 0
    %1490 = vmatmul.mubr.bf16.gmra.mxu0 %v1057
    %v1491 = vpop.f32.mrf.mxu0
    %v1492 = vadd.f32 0.0, %v1491
    %v1493 = vpop.f32.mrf.mxu0
    %v1494 = vadd.f32 0.0, %v1493
    %v1495 = vpop.f32.mrf.mxu0
    %v1496 = vadd.f32 0.0, %v1495
    %v1497 = vpop.f32.mrf.mxu0
    %v1498 = vadd.f32 0.0, %v1497
    %1499 = vmatprep.mubr.bf16.mxu0 0
    %1500 = vmatmul.mubr.bf16.gmra.mxu0 %v1058
    %v1501 = vpop.f32.mrf.mxu0
    %v1502 = vadd.f32 0.0, %v1501
    %v1503 = vpop.f32.mrf.mxu0
    %v1504 = vadd.f32 0.0, %v1503
    %v1505 = vpop.f32.mrf.mxu0
    %v1506 = vadd.f32 0.0, %v1505
    %v1507 = vpop.f32.mrf.mxu0
    %v1508 = vadd.f32 0.0, %v1507
    %1509 = vmatprep.mubr.bf16.mxu0 0
    %1510 = vmatmul.mubr.bf16.gmra.mxu0 %v1059
    %v1511 = vpop.f32.mrf.mxu0
    %v1512 = vadd.f32 0.0, %v1511
    %v1513 = vpop.f32.mrf.mxu0
    %v1514 = vadd.f32 0.0, %v1513
    %v1515 = vpop.f32.mrf.mxu0
    %v1516 = vadd.f32 0.0, %v1515
    %v1517 = vpop.f32.mrf.mxu0
    %v1518 = vadd.f32 0.0, %v1517
    %1519 = vmatprep.mubr.bf16.mxu0 0
    %1520 = vmatmul.mubr.bf16.gmra.mxu0 %v1060
    %v1521 = vpop.f32.mrf.mxu0
    %v1522 = vadd.f32 0.0, %v1521
    %v1523 = vpop.f32.mrf.mxu0
    %v1524 = vadd.f32 0.0, %v1523
    %v1525 = vpop.f32.mrf.mxu0
    %v1526 = vadd.f32 0.0, %v1525
    %v1527 = vpop.f32.mrf.mxu0
    %v1528 = vadd.f32 0.0, %v1527
    %1529 = vmatprep.mubr.bf16.mxu0 0
    %1530 = vmatmul.mubr.bf16.gmra.mxu0 %v1061
    %v1531 = vpop.f32.mrf.mxu0
    %v1532 = vadd.f32 0.0, %v1531
    %v1533 = vpop.f32.mrf.mxu0
    %v1534 = vadd.f32 0.0, %v1533
    %v1535 = vpop.f32.mrf.mxu0
    %v1536 = vadd.f32 0.0, %v1535
    %v1537 = vpop.f32.mrf.mxu0
    %v1538 = vadd.f32 0.0, %v1537
    %1539 = vmatprep.mubr.bf16.mxu0 0
    %1540 = vmatmul.mubr.bf16.gmra.mxu0 %v1062
    %v1541 = vpop.f32.mrf.mxu0
    %v1542 = vadd.f32 0.0, %v1541
    %v1543 = vpop.f32.mrf.mxu0
    %v1544 = vadd.f32 0.0, %v1543
    %v1545 = vpop.f32.mrf.mxu0
    %v1546 = vadd.f32 0.0, %v1545
    %v1547 = vpop.f32.mrf.mxu0
    %v1548 = vadd.f32 0.0, %v1547
    %1549 = vmatprep.mubr.bf16.mxu0 0
    %1550 = vmatmul.mubr.bf16.gmra.mxu0 %v1063
    %v1551 = vpop.f32.mrf.mxu0
    %v1552 = vadd.f32 0.0, %v1551
    %v1553 = vpop.f32.mrf.mxu0
    %v1554 = vadd.f32 0.0, %v1553
    %v1555 = vpop.f32.mrf.mxu0
    %v1556 = vadd.f32 0.0, %v1555
    %v1557 = vpop.f32.mrf.mxu0
    %v1558 = vadd.f32 0.0, %v1557
    %1559 = vmatprep.mubr.bf16.mxu0 0
    %1560 = vmatmul.mubr.bf16.gmra.mxu0 %v1064
    %v1561 = vpop.f32.mrf.mxu0
    %v1562 = vadd.f32 0.0, %v1561
    %v1563 = vpop.f32.mrf.mxu0
    %v1564 = vadd.f32 0.0, %v1563
    %v1565 = vpop.f32.mrf.mxu0
    %v1566 = vadd.f32 0.0, %v1565
    %v1567 = vpop.f32.mrf.mxu0
    %v1568 = vadd.f32 0.0, %v1567
    %1569 = vmatprep.mubr.bf16.mxu0 0
    %1570 = vmatmul.mubr.bf16.gmra.mxu0 %v1065
    %v1571 = vpop.f32.mrf.mxu0
    %v1572 = vadd.f32 0.0, %v1571
    %v1573 = vpop.f32.mrf.mxu0
    %v1574 = vadd.f32 0.0, %v1573
    %v1575 = vpop.f32.mrf.mxu0
    %v1576 = vadd.f32 0.0, %v1575
    %v1577 = vpop.f32.mrf.mxu0
    %v1578 = vadd.f32 0.0, %v1577
    %1579 = vmatprep.mubr.bf16.mxu0 0
    %1580 = vmatmul.mubr.bf16.gmra.mxu0 %v1066
    %v1581 = vpop.f32.mrf.mxu0
    %v1582 = vadd.f32 0.0, %v1581
    %v1583 = vpop.f32.mrf.mxu0
    %v1584 = vadd.f32 0.0, %v1583
    %v1585 = vpop.f32.mrf.mxu0
    %v1586 = vadd.f32 0.0, %v1585
    %v1587 = vpop.f32.mrf.mxu0
    %v1588 = vadd.f32 0.0, %v1587
    %1589 = vmatprep.mubr.bf16.mxu0 0
    %1590 = vmatmul.mubr.bf16.gmra.mxu0 %v1067
    %v1591 = vpop.f32.mrf.mxu0
    %v1592 = vadd.f32 0.0, %v1591
    %v1593 = vpop.f32.mrf.mxu0
    %v1594 = vadd.f32 0.0, %v1593
    %v1595 = vpop.f32.mrf.mxu0
    %v1596 = vadd.f32 0.0, %v1595
    %v1597 = vpop.f32.mrf.mxu0
    %v1598 = vadd.f32 0.0, %v1597
    %1599 = vmatprep.mubr.bf16.mxu0 0
    %1600 = vmatmul.mubr.bf16.gmra.mxu0 %v1068
    %v1601 = vpop.f32.mrf.mxu0
    %v1602 = vadd.f32 0.0, %v1601
    %v1603 = vpop.f32.mrf.mxu0
    %v1604 = vadd.f32 0.0, %v1603
    %v1605 = vpop.f32.mrf.mxu0
    %v1606 = vadd.f32 0.0, %v1605
    %v1607 = vpop.f32.mrf.mxu0
    %v1608 = vadd.f32 0.0, %v1607
    %1609 = vmatprep.mubr.bf16.mxu0 0
    %1610 = vmatmul.mubr.bf16.gmra.mxu0 %v1069
    %v1611 = vpop.f32.mrf.mxu0
    %v1612 = vadd.f32 0.0, %v1611
    %v1613 = vpop.f32.mrf.mxu0
    %v1614 = vadd.f32 0.0, %v1613
    %v1615 = vpop.f32.mrf.mxu0
    %v1616 = vadd.f32 0.0, %v1615
    %v1617 = vpop.f32.mrf.mxu0
    %v1618 = vadd.f32 0.0, %v1617
    %1619 = vmatprep.mubr.bf16.mxu0 0
    %1620 = vmatmul.mubr.bf16.gmra.mxu0 %v1070
    %v1621 = vpop.f32.mrf.mxu0
    %v1622 = vadd.f32 0.0, %v1621
    %v1623 = vpop.f32.mrf.mxu0
    %v1624 = vadd.f32 0.0, %v1623
    %v1625 = vpop.f32.mrf.mxu0
    %v1626 = vadd.f32 0.0, %v1625
    %v1627 = vpop.f32.mrf.mxu0
    %v1628 = vadd.f32 0.0, %v1627
    %1629 = vmatprep.mubr.bf16.mxu0 0
    %1630 = vmatmul.mubr.bf16.gmra.mxu0 %v1071
    %v1631 = vpop.f32.mrf.mxu0
    %v1632 = vadd.f32 0.0, %v1631
    %v1633 = vpop.f32.mrf.mxu0
    %v1634 = vadd.f32 0.0, %v1633
    %v1635 = vpop.f32.mrf.mxu0
    %v1636 = vadd.f32 0.0, %v1635
    %v1637 = vpop.f32.mrf.mxu0
    %v1638 = vadd.f32 0.0, %v1637
    %1639 = vmatprep.mubr.bf16.mxu0 0
    %1640 = vmatmul.mubr.bf16.gmra.mxu0 %v1072
    %v1641 = vpop.f32.mrf.mxu0
    %v1642 = vadd.f32 0.0, %v1641
    %v1643 = vpop.f32.mrf.mxu0
    %v1644 = vadd.f32 0.0, %v1643
    %v1645 = vpop.f32.mrf.mxu0
    %v1646 = vadd.f32 0.0, %v1645
    %v1647 = vpop.f32.mrf.mxu0
    %v1648 = vadd.f32 0.0, %v1647
    %1649 = vdwg.mxu0
    %1650 = vmatprep.subr.bf16.mxu0 %v1388
    %1651 = vmatpush1.bf16.msra.mxu0 %v1387
    %1652 = vmatprep.subr.bf16.mxu0 %v1380
    %1653 = vmatpush1.bf16.msra.mxu0 %v1379
    %1654 = vmatprep.subr.bf16.mxu0 %v1372
    %1655 = vmatpush1.bf16.msra.mxu0 %v1371
    %1656 = vmatprep.subr.bf16.mxu0 %v1364
    %1657 = vmatpush1.bf16.msra.mxu0 %v1363
    %1658 = vmatprep.subr.bf16.mxu0 %v1356
    %1659 = vmatpush1.bf16.msra.mxu0 %v1355
    %1660 = vmatprep.subr.bf16.mxu0 %v1348
    %1661 = vmatpush1.bf16.msra.mxu0 %v1347
    %1662 = vmatprep.subr.bf16.mxu0 %v1340
    %1663 = vmatpush1.bf16.msra.mxu0 %v1339
    %1664 = vmatprep.subr.bf16.mxu0 %v1332
    %1665 = vmatpush1.bf16.msra.mxu0 %v1331
    %1666 = vmatprep.subr.bf16.mxu0 0
    %1667 = vmatpush2.bf16.msra.mxu0 0
    %1668 = vmatprep.subr.bf16.mxu0 0
    %1669 = vmatpush2.bf16.msra.mxu0 0
    %1670 = vmatprep.subr.bf16.mxu0 0
    %1671 = vmatpush2.bf16.msra.mxu0 0
    %1672 = vmatprep.subr.bf16.mxu0 0
    %1673 = vmatpush2.bf16.msra.mxu0 0
    %1674 = vmatprep.subr.bf16.mxu0 0
    %1675 = vmatpush2.bf16.msra.mxu0 0
    %1676 = vmatprep.subr.bf16.mxu0 0
    %1677 = vmatpush2.bf16.msra.mxu0 0
    %1678 = vmatprep.subr.bf16.mxu0 0
    %1679 = vmatpush2.bf16.msra.mxu0 0
    %1680 = vmatprep.subr.bf16.mxu0 0
    %1681 = vmatpush2.bf16.msra.mxu0 0
    %1682 = vmatprep.mubr.bf16.mxu0 0
    %1683 = vmatmul.mubr.bf16.gmra.mxu0 %v1057
    %v1684 = vpop.f32.mrf.mxu0
    %v1685 = vadd.f32 0.0, %v1684
    %v1686 = vpop.f32.mrf.mxu0
    %v1687 = vadd.f32 0.0, %v1686
    %v1688 = vpop.f32.mrf.mxu0
    %v1689 = vadd.f32 0.0, %v1688
    %v1690 = vpop.f32.mrf.mxu0
    %v1691 = vadd.f32 0.0, %v1690
    %1692 = vmatprep.mubr.bf16.mxu0 0
    %1693 = vmatmul.mubr.bf16.gmra.mxu0 %v1058
    %v1694 = vpop.f32.mrf.mxu0
    %v1695 = vadd.f32 0.0, %v1694
    %v1696 = vpop.f32.mrf.mxu0
    %v1697 = vadd.f32 0.0, %v1696
    %v1698 = vpop.f32.mrf.mxu0
    %v1699 = vadd.f32 0.0, %v1698
    %v1700 = vpop.f32.mrf.mxu0
    %v1701 = vadd.f32 0.0, %v1700
    %1702 = vmatprep.mubr.bf16.mxu0 0
    %1703 = vmatmul.mubr.bf16.gmra.mxu0 %v1059
    %v1704 = vpop.f32.mrf.mxu0
    %v1705 = vadd.f32 0.0, %v1704
    %v1706 = vpop.f32.mrf.mxu0
    %v1707 = vadd.f32 0.0, %v1706
    %v1708 = vpop.f32.mrf.mxu0
    %v1709 = vadd.f32 0.0, %v1708
    %v1710 = vpop.f32.mrf.mxu0
    %v1711 = vadd.f32 0.0, %v1710
    %1712 = vmatprep.mubr.bf16.mxu0 0
    %1713 = vmatmul.mubr.bf16.gmra.mxu0 %v1060
    %v1714 = vpop.f32.mrf.mxu0
    %v1715 = vadd.f32 0.0, %v1714
    %v1716 = vpop.f32.mrf.mxu0
    %v1717 = vadd.f32 0.0, %v1716
    %v1718 = vpop.f32.mrf.mxu0
    %v1719 = vadd.f32 0.0, %v1718
    %v1720 = vpop.f32.mrf.mxu0
    %v1721 = vadd.f32 0.0, %v1720
    %1722 = vmatprep.mubr.bf16.mxu0 0
    %1723 = vmatmul.mubr.bf16.gmra.mxu0 %v1061
    %v1724 = vpop.f32.mrf.mxu0
    %v1725 = vadd.f32 0.0, %v1724
    %v1726 = vpop.f32.mrf.mxu0
    %v1727 = vadd.f32 0.0, %v1726
    %v1728 = vpop.f32.mrf.mxu0
    %v1729 = vadd.f32 0.0, %v1728
    %v1730 = vpop.f32.mrf.mxu0
    %v1731 = vadd.f32 0.0, %v1730
    %1732 = vmatprep.mubr.bf16.mxu0 0
    %1733 = vmatmul.mubr.bf16.gmra.mxu0 %v1062
    %v1734 = vpop.f32.mrf.mxu0
    %v1735 = vadd.f32 0.0, %v1734
    %v1736 = vpop.f32.mrf.mxu0
    %v1737 = vadd.f32 0.0, %v1736
    %v1738 = vpop.f32.mrf.mxu0
    %v1739 = vadd.f32 0.0, %v1738
    %v1740 = vpop.f32.mrf.mxu0
    %v1741 = vadd.f32 0.0, %v1740
    %1742 = vmatprep.mubr.bf16.mxu0 0
    %1743 = vmatmul.mubr.bf16.gmra.mxu0 %v1063
    %v1744 = vpop.f32.mrf.mxu0
    %v1745 = vadd.f32 0.0, %v1744
    %v1746 = vpop.f32.mrf.mxu0
    %v1747 = vadd.f32 0.0, %v1746
    %v1748 = vpop.f32.mrf.mxu0
    %v1749 = vadd.f32 0.0, %v1748
    %v1750 = vpop.f32.mrf.mxu0
    %v1751 = vadd.f32 0.0, %v1750
    %1752 = vmatprep.mubr.bf16.mxu0 0
    %1753 = vmatmul.mubr.bf16.gmra.mxu0 %v1064
    %v1754 = vpop.f32.mrf.mxu0
    %v1755 = vadd.f32 0.0, %v1754
    %v1756 = vpop.f32.mrf.mxu0
    %v1757 = vadd.f32 0.0, %v1756
    %v1758 = vpop.f32.mrf.mxu0
    %v1759 = vadd.f32 0.0, %v1758
    %v1760 = vpop.f32.mrf.mxu0
    %v1761 = vadd.f32 0.0, %v1760
    %1762 = vmatprep.mubr.bf16.mxu0 0
    %1763 = vmatmul.mubr.bf16.gmra.mxu0 %v1065
    %v1764 = vpop.f32.mrf.mxu0
    %v1765 = vadd.f32 0.0, %v1764
    %v1766 = vpop.f32.mrf.mxu0
    %v1767 = vadd.f32 0.0, %v1766
    %v1768 = vpop.f32.mrf.mxu0
    %v1769 = vadd.f32 0.0, %v1768
    %v1770 = vpop.f32.mrf.mxu0
    %v1771 = vadd.f32 0.0, %v1770
    %1772 = vmatprep.mubr.bf16.mxu0 0
    %1773 = vmatmul.mubr.bf16.gmra.mxu0 %v1066
    %v1774 = vpop.f32.mrf.mxu0
    %v1775 = vadd.f32 0.0, %v1774
    %v1776 = vpop.f32.mrf.mxu0
    %v1777 = vadd.f32 0.0, %v1776
    %v1778 = vpop.f32.mrf.mxu0
    %v1779 = vadd.f32 0.0, %v1778
    %v1780 = vpop.f32.mrf.mxu0
    %v1781 = vadd.f32 0.0, %v1780
    %1782 = vmatprep.mubr.bf16.mxu0 0
    %1783 = vmatmul.mubr.bf16.gmra.mxu0 %v1067
    %v1784 = vpop.f32.mrf.mxu0
    %v1785 = vadd.f32 0.0, %v1784
    %v1786 = vpop.f32.mrf.mxu0
    %v1787 = vadd.f32 0.0, %v1786
    %v1788 = vpop.f32.mrf.mxu0
    %v1789 = vadd.f32 0.0, %v1788
    %v1790 = vpop.f32.mrf.mxu0
    %v1791 = vadd.f32 0.0, %v1790
    %1792 = vmatprep.mubr.bf16.mxu0 0
    %1793 = vmatmul.mubr.bf16.gmra.mxu0 %v1068
    %v1794 = vpop.f32.mrf.mxu0
    %v1795 = vadd.f32 0.0, %v1794
    %v1796 = vpop.f32.mrf.mxu0
    %v1797 = vadd.f32 0.0, %v1796
    %v1798 = vpop.f32.mrf.mxu0
    %v1799 = vadd.f32 0.0, %v1798
    %v1800 = vpop.f32.mrf.mxu0
    %v1801 = vadd.f32 0.0, %v1800
    %1802 = vmatprep.mubr.bf16.mxu0 0
    %1803 = vmatmul.mubr.bf16.gmra.mxu0 %v1069
    %v1804 = vpop.f32.mrf.mxu0
    %v1805 = vadd.f32 0.0, %v1804
    %v1806 = vpop.f32.mrf.mxu0
    %v1807 = vadd.f32 0.0, %v1806
    %v1808 = vpop.f32.mrf.mxu0
    %v1809 = vadd.f32 0.0, %v1808
    %v1810 = vpop.f32.mrf.mxu0
    %v1811 = vadd.f32 0.0, %v1810
    %1812 = vmatprep.mubr.bf16.mxu0 0
    %1813 = vmatmul.mubr.bf16.gmra.mxu0 %v1070
    %v1814 = vpop.f32.mrf.mxu0
    %v1815 = vadd.f32 0.0, %v1814
    %v1816 = vpop.f32.mrf.mxu0
    %v1817 = vadd.f32 0.0, %v1816
    %v1818 = vpop.f32.mrf.mxu0
    %v1819 = vadd.f32 0.0, %v1818
    %v1820 = vpop.f32.mrf.mxu0
    %v1821 = vadd.f32 0.0, %v1820
    %1822 = vmatprep.mubr.bf16.mxu0 0
    %1823 = vmatmul.mubr.bf16.gmra.mxu0 %v1071
    %v1824 = vpop.f32.mrf.mxu0
    %v1825 = vadd.f32 0.0, %v1824
    %v1826 = vpop.f32.mrf.mxu0
    %v1827 = vadd.f32 0.0, %v1826
    %v1828 = vpop.f32.mrf.mxu0
    %v1829 = vadd.f32 0.0, %v1828
    %v1830 = vpop.f32.mrf.mxu0
    %v1831 = vadd.f32 0.0, %v1830
    %1832 = vmatprep.mubr.bf16.mxu0 0
    %1833 = vmatmul.mubr.bf16.gmra.mxu0 %v1072
    %v1834 = vpop.f32.mrf.mxu0
    %v1835 = vadd.f32 0.0, %v1834
    %v1836 = vpop.f32.mrf.mxu0
    %v1837 = vadd.f32 0.0, %v1836
    %v1838 = vpop.f32.mrf.mxu0
    %v1839 = vadd.f32 0.0, %v1838
    %v1840 = vpop.f32.mrf.mxu0
    %v1841 = vadd.f32 0.0, %v1840
    %1842 = vdwg.mxu0
    %1843 = vmatprep.subr.bf16.mxu0 %v1390
    %1844 = vmatpush1.bf16.msra.mxu0 %v1389
    %1845 = vmatprep.subr.bf16.mxu0 %v1382
    %1846 = vmatpush1.bf16.msra.mxu0 %v1381
    %1847 = vmatprep.subr.bf16.mxu0 %v1374
    %1848 = vmatpush1.bf16.msra.mxu0 %v1373
    %1849 = vmatprep.subr.bf16.mxu0 %v1366
    %1850 = vmatpush1.bf16.msra.mxu0 %v1365
    %1851 = vmatprep.subr.bf16.mxu0 %v1358
    %1852 = vmatpush1.bf16.msra.mxu0 %v1357
    %1853 = vmatprep.subr.bf16.mxu0 %v1350
    %1854 = vmatpush1.bf16.msra.mxu0 %v1349
    %1855 = vmatprep.subr.bf16.mxu0 %v1342
    %1856 = vmatpush1.bf16.msra.mxu0 %v1341
    %1857 = vmatprep.subr.bf16.mxu0 %v1334
    %1858 = vmatpush1.bf16.msra.mxu0 %v1333
    %1859 = vmatprep.subr.bf16.mxu0 0
    %1860 = vmatpush2.bf16.msra.mxu0 0
    %1861 = vmatprep.subr.bf16.mxu0 0
    %1862 = vmatpush2.bf16.msra.mxu0 0
    %1863 = vmatprep.subr.bf16.mxu0 0
    %1864 = vmatpush2.bf16.msra.mxu0 0
    %1865 = vmatprep.subr.bf16.mxu0 0
    %1866 = vmatpush2.bf16.msra.mxu0 0
    %1867 = vmatprep.subr.bf16.mxu0 0
    %1868 = vmatpush2.bf16.msra.mxu0 0
    %1869 = vmatprep.subr.bf16.mxu0 0
    %1870 = vmatpush2.bf16.msra.mxu0 0
    %1871 = vmatprep.subr.bf16.mxu0 0
    %1872 = vmatpush2.bf16.msra.mxu0 0
    %1873 = vmatprep.subr.bf16.mxu0 0
    %1874 = vmatpush2.bf16.msra.mxu0 0
    %1875 = vmatprep.mubr.bf16.mxu0 0
    %1876 = vmatmul.mubr.bf16.gmra.mxu0 %v1057
    %v1877 = vpop.f32.mrf.mxu0
    %v1878 = vadd.f32 0.0, %v1877
    %v1879 = vpop.f32.mrf.mxu0
    %v1880 = vadd.f32 0.0, %v1879
    %v1881 = vpop.f32.mrf.mxu0
    %v1882 = vadd.f32 0.0, %v1881
    %v1883 = vpop.f32.mrf.mxu0
    %v1884 = vadd.f32 0.0, %v1883
    %1885 = vmatprep.mubr.bf16.mxu0 0
    %1886 = vmatmul.mubr.bf16.gmra.mxu0 %v1058
    %v1887 = vpop.f32.mrf.mxu0
    %v1888 = vadd.f32 0.0, %v1887
    %v1889 = vpop.f32.mrf.mxu0
    %v1890 = vadd.f32 0.0, %v1889
    %v1891 = vpop.f32.mrf.mxu0
    %v1892 = vadd.f32 0.0, %v1891
    %v1893 = vpop.f32.mrf.mxu0
    %v1894 = vadd.f32 0.0, %v1893
    %1895 = vmatprep.mubr.bf16.mxu0 0
    %1896 = vmatmul.mubr.bf16.gmra.mxu0 %v1059
    %v1897 = vpop.f32.mrf.mxu0
    %v1898 = vadd.f32 0.0, %v1897
    %v1899 = vpop.f32.mrf.mxu0
    %v1900 = vadd.f32 0.0, %v1899
    %v1901 = vpop.f32.mrf.mxu0
    %v1902 = vadd.f32 0.0, %v1901
    %v1903 = vpop.f32.mrf.mxu0
    %v1904 = vadd.f32 0.0, %v1903
    %1905 = vmatprep.mubr.bf16.mxu0 0
    %1906 = vmatmul.mubr.bf16.gmra.mxu0 %v1060
    %v1907 = vpop.f32.mrf.mxu0
    %v1908 = vadd.f32 0.0, %v1907
    %v1909 = vpop.f32.mrf.mxu0
    %v1910 = vadd.f32 0.0, %v1909
    %v1911 = vpop.f32.mrf.mxu0
    %v1912 = vadd.f32 0.0, %v1911
    %v1913 = vpop.f32.mrf.mxu0
    %v1914 = vadd.f32 0.0, %v1913
    %1915 = vmatprep.mubr.bf16.mxu0 0
    %1916 = vmatmul.mubr.bf16.gmra.mxu0 %v1061
    %v1917 = vpop.f32.mrf.mxu0
    %v1918 = vadd.f32 0.0, %v1917
    %v1919 = vpop.f32.mrf.mxu0
    %v1920 = vadd.f32 0.0, %v1919
    %v1921 = vpop.f32.mrf.mxu0
    %v1922 = vadd.f32 0.0, %v1921
    %v1923 = vpop.f32.mrf.mxu0
    %v1924 = vadd.f32 0.0, %v1923
    %1925 = vmatprep.mubr.bf16.mxu0 0
    %1926 = vmatmul.mubr.bf16.gmra.mxu0 %v1062
    %v1927 = vpop.f32.mrf.mxu0
    %v1928 = vadd.f32 0.0, %v1927
    %v1929 = vpop.f32.mrf.mxu0
    %v1930 = vadd.f32 0.0, %v1929
    %v1931 = vpop.f32.mrf.mxu0
    %v1932 = vadd.f32 0.0, %v1931
    %v1933 = vpop.f32.mrf.mxu0
    %v1934 = vadd.f32 0.0, %v1933
    %1935 = vmatprep.mubr.bf16.mxu0 0
    %1936 = vmatmul.mubr.bf16.gmra.mxu0 %v1063
    %v1937 = vpop.f32.mrf.mxu0
    %v1938 = vadd.f32 0.0, %v1937
    %v1939 = vpop.f32.mrf.mxu0
    %v1940 = vadd.f32 0.0, %v1939
    %v1941 = vpop.f32.mrf.mxu0
    %v1942 = vadd.f32 0.0, %v1941
    %v1943 = vpop.f32.mrf.mxu0
    %v1944 = vadd.f32 0.0, %v1943
    %1945 = vmatprep.mubr.bf16.mxu0 0
    %1946 = vmatmul.mubr.bf16.gmra.mxu0 %v1064
    %v1947 = vpop.f32.mrf.mxu0
    %v1948 = vadd.f32 0.0, %v1947
    %v1949 = vpop.f32.mrf.mxu0
    %v1950 = vadd.f32 0.0, %v1949
    %v1951 = vpop.f32.mrf.mxu0
    %v1952 = vadd.f32 0.0, %v1951
    %v1953 = vpop.f32.mrf.mxu0
    %v1954 = vadd.f32 0.0, %v1953
    %1955 = vmatprep.mubr.bf16.mxu0 0
    %1956 = vmatmul.mubr.bf16.gmra.mxu0 %v1065
    %v1957 = vpop.f32.mrf.mxu0
    %v1958 = vadd.f32 0.0, %v1957
    %v1959 = vpop.f32.mrf.mxu0
    %v1960 = vadd.f32 0.0, %v1959
    %v1961 = vpop.f32.mrf.mxu0
    %v1962 = vadd.f32 0.0, %v1961
    %v1963 = vpop.f32.mrf.mxu0
    %v1964 = vadd.f32 0.0, %v1963
    %1965 = vmatprep.mubr.bf16.mxu0 0
    %1966 = vmatmul.mubr.bf16.gmra.mxu0 %v1066
    %v1967 = vpop.f32.mrf.mxu0
    %v1968 = vadd.f32 0.0, %v1967
    %v1969 = vpop.f32.mrf.mxu0
    %v1970 = vadd.f32 0.0, %v1969
    %v1971 = vpop.f32.mrf.mxu0
    %v1972 = vadd.f32 0.0, %v1971
    %v1973 = vpop.f32.mrf.mxu0
    %v1974 = vadd.f32 0.0, %v1973
    %1975 = vmatprep.mubr.bf16.mxu0 0
    %1976 = vmatmul.mubr.bf16.gmra.mxu0 %v1067
    %v1977 = vpop.f32.mrf.mxu0
    %v1978 = vadd.f32 0.0, %v1977
    %v1979 = vpop.f32.mrf.mxu0
    %v1980 = vadd.f32 0.0, %v1979
    %v1981 = vpop.f32.mrf.mxu0
    %v1982 = vadd.f32 0.0, %v1981
    %v1983 = vpop.f32.mrf.mxu0
    %v1984 = vadd.f32 0.0, %v1983
    %1985 = vmatprep.mubr.bf16.mxu0 0
    %1986 = vmatmul.mubr.bf16.gmra.mxu0 %v1068
    %v1987 = vpop.f32.mrf.mxu0
    %v1988 = vadd.f32 0.0, %v1987
    %v1989 = vpop.f32.mrf.mxu0
    %v1990 = vadd.f32 0.0, %v1989
    %v1991 = vpop.f32.mrf.mxu0
    %v1992 = vadd.f32 0.0, %v1991
    %v1993 = vpop.f32.mrf.mxu0
    %v1994 = vadd.f32 0.0, %v1993
    %1995 = vmatprep.mubr.bf16.mxu0 0
    %1996 = vmatmul.mubr.bf16.gmra.mxu0 %v1069
    %v1997 = vpop.f32.mrf.mxu0
    %v1998 = vadd.f32 0.0, %v1997
    %v1999 = vpop.f32.mrf.mxu0
    %v2000 = vadd.f32 0.0, %v1999
    %v2001 = vpop.f32.mrf.mxu0
    %v2002 = vadd.f32 0.0, %v2001
    %v2003 = vpop.f32.mrf.mxu0
    %v2004 = vadd.f32 0.0, %v2003
    %2005 = vmatprep.mubr.bf16.mxu0 0
    %2006 = vmatmul.mubr.bf16.gmra.mxu0 %v1070
    %v2007 = vpop.f32.mrf.mxu0
    %v2008 = vadd.f32 0.0, %v2007
    %v2009 = vpop.f32.mrf.mxu0
    %v2010 = vadd.f32 0.0, %v2009
    %v2011 = vpop.f32.mrf.mxu0
    %v2012 = vadd.f32 0.0, %v2011
    %v2013 = vpop.f32.mrf.mxu0
    %v2014 = vadd.f32 0.0, %v2013
    %2015 = vmatprep.mubr.bf16.mxu0 0
    %2016 = vmatmul.mubr.bf16.gmra.mxu0 %v1071
    %v2017 = vpop.f32.mrf.mxu0
    %v2018 = vadd.f32 0.0, %v2017
    %v2019 = vpop.f32.mrf.mxu0
    %v2020 = vadd.f32 0.0, %v2019
    %v2021 = vpop.f32.mrf.mxu0
    %v2022 = vadd.f32 0.0, %v2021
    %v2023 = vpop.f32.mrf.mxu0
    %v2024 = vadd.f32 0.0, %v2023
    %2025 = vmatprep.mubr.bf16.mxu0 0
    %2026 = vmatmul.mubr.bf16.gmra.mxu0 %v1072
    %v2027 = vpop.f32.mrf.mxu0
    %v2028 = vadd.f32 0.0, %v2027
    %v2029 = vpop.f32.mrf.mxu0
    %v2030 = vadd.f32 0.0, %v2029
    %v2031 = vpop.f32.mrf.mxu0
    %v2032 = vadd.f32 0.0, %v2031
    %v2033 = vpop.f32.mrf.mxu0
    %v2034 = vadd.f32 0.0, %v2033
    %2035 = vdwg.mxu0
    %2036 = vmatprep.subr.bf16.mxu0 %v1392
    %2037 = vmatpush1.bf16.msra.mxu0 %v1391
    %2038 = vmatprep.subr.bf16.mxu0 %v1384
    %2039 = vmatpush1.bf16.msra.mxu0 %v1383
    %2040 = vmatprep.subr.bf16.mxu0 %v1376
    %2041 = vmatpush1.bf16.msra.mxu0 %v1375
    %2042 = vmatprep.subr.bf16.mxu0 %v1368
    %2043 = vmatpush1.bf16.msra.mxu0 %v1367
    %2044 = vmatprep.subr.bf16.mxu0 %v1360
    %2045 = vmatpush1.bf16.msra.mxu0 %v1359
    %2046 = vmatprep.subr.bf16.mxu0 %v1352
    %2047 = vmatpush1.bf16.msra.mxu0 %v1351
    %2048 = vmatprep.subr.bf16.mxu0 %v1344
    %2049 = vmatpush1.bf16.msra.mxu0 %v1343
    %2050 = vmatprep.subr.bf16.mxu0 %v1336
    %2051 = vmatpush1.bf16.msra.mxu0 %v1335
    %2052 = vmatprep.subr.bf16.mxu0 0
    %2053 = vmatpush2.bf16.msra.mxu0 0
    %2054 = vmatprep.subr.bf16.mxu0 0
    %2055 = vmatpush2.bf16.msra.mxu0 0
    %2056 = vmatprep.subr.bf16.mxu0 0
    %2057 = vmatpush2.bf16.msra.mxu0 0
    %2058 = vmatprep.subr.bf16.mxu0 0
    %2059 = vmatpush2.bf16.msra.mxu0 0
    %2060 = vmatprep.subr.bf16.mxu0 0
    %2061 = vmatpush2.bf16.msra.mxu0 0
    %2062 = vmatprep.subr.bf16.mxu0 0
    %2063 = vmatpush2.bf16.msra.mxu0 0
    %2064 = vmatprep.subr.bf16.mxu0 0
    %2065 = vmatpush2.bf16.msra.mxu0 0
    %2066 = vmatprep.subr.bf16.mxu0 0
    %2067 = vmatpush2.bf16.msra.mxu0 0
    %2068 = vmatprep.mubr.bf16.mxu0 0
    %2069 = vmatmul.mubr.bf16.gmra.mxu0 %v1057
    %v2070 = vpop.f32.mrf.mxu0
    %v2071 = vadd.f32 0.0, %v2070
    %v2072 = vpop.f32.mrf.mxu0
    %v2073 = vadd.f32 0.0, %v2072
    %v2074 = vpop.f32.mrf.mxu0
    %v2075 = vadd.f32 0.0, %v2074
    %v2076 = vpop.f32.mrf.mxu0
    %v2077 = vadd.f32 0.0, %v2076
    %2078 = vmatprep.mubr.bf16.mxu0 0
    %2079 = vmatmul.mubr.bf16.gmra.mxu0 %v1058
    %v2080 = vpop.f32.mrf.mxu0
    %v2081 = vadd.f32 0.0, %v2080
    %v2082 = vpop.f32.mrf.mxu0
    %v2083 = vadd.f32 0.0, %v2082
    %v2084 = vpop.f32.mrf.mxu0
    %v2085 = vadd.f32 0.0, %v2084
    %v2086 = vpop.f32.mrf.mxu0
    %v2087 = vadd.f32 0.0, %v2086
    %2088 = vmatprep.mubr.bf16.mxu0 0
    %2089 = vmatmul.mubr.bf16.gmra.mxu0 %v1059
    %v2090 = vpop.f32.mrf.mxu0
    %v2091 = vadd.f32 0.0, %v2090
    %v2092 = vpop.f32.mrf.mxu0
    %v2093 = vadd.f32 0.0, %v2092
    %v2094 = vpop.f32.mrf.mxu0
    %v2095 = vadd.f32 0.0, %v2094
    %v2096 = vpop.f32.mrf.mxu0
    %v2097 = vadd.f32 0.0, %v2096
    %2098 = vmatprep.mubr.bf16.mxu0 0
    %2099 = vmatmul.mubr.bf16.gmra.mxu0 %v1060
    %v2100 = vpop.f32.mrf.mxu0
    %v2101 = vadd.f32 0.0, %v2100
    %v2102 = vpop.f32.mrf.mxu0
    %v2103 = vadd.f32 0.0, %v2102
    %v2104 = vpop.f32.mrf.mxu0
    %v2105 = vadd.f32 0.0, %v2104
    %v2106 = vpop.f32.mrf.mxu0
    %v2107 = vadd.f32 0.0, %v2106
    %2108 = vmatprep.mubr.bf16.mxu0 0
    %2109 = vmatmul.mubr.bf16.gmra.mxu0 %v1061
    %v2110 = vpop.f32.mrf.mxu0
    %v2111 = vadd.f32 0.0, %v2110
    %v2112 = vpop.f32.mrf.mxu0
    %v2113 = vadd.f32 0.0, %v2112
    %v2114 = vpop.f32.mrf.mxu0
    %v2115 = vadd.f32 0.0, %v2114
    %v2116 = vpop.f32.mrf.mxu0
    %v2117 = vadd.f32 0.0, %v2116
    %2118 = vmatprep.mubr.bf16.mxu0 0
    %2119 = vmatmul.mubr.bf16.gmra.mxu0 %v1062
    %v2120 = vpop.f32.mrf.mxu0
    %v2121 = vadd.f32 0.0, %v2120
    %v2122 = vpop.f32.mrf.mxu0
    %v2123 = vadd.f32 0.0, %v2122
    %v2124 = vpop.f32.mrf.mxu0
    %v2125 = vadd.f32 0.0, %v2124
    %v2126 = vpop.f32.mrf.mxu0
    %v2127 = vadd.f32 0.0, %v2126
    %2128 = vmatprep.mubr.bf16.mxu0 0
    %2129 = vmatmul.mubr.bf16.gmra.mxu0 %v1063
    %v2130 = vpop.f32.mrf.mxu0
    %v2131 = vadd.f32 0.0, %v2130
    %v2132 = vpop.f32.mrf.mxu0
    %v2133 = vadd.f32 0.0, %v2132
    %v2134 = vpop.f32.mrf.mxu0
    %v2135 = vadd.f32 0.0, %v2134
    %v2136 = vpop.f32.mrf.mxu0
    %v2137 = vadd.f32 0.0, %v2136
    %2138 = vmatprep.mubr.bf16.mxu0 0
    %2139 = vmatmul.mubr.bf16.gmra.mxu0 %v1064
    %v2140 = vpop.f32.mrf.mxu0
    %v2141 = vadd.f32 0.0, %v2140
    %v2142 = vpop.f32.mrf.mxu0
    %v2143 = vadd.f32 0.0, %v2142
    %v2144 = vpop.f32.mrf.mxu0
    %v2145 = vadd.f32 0.0, %v2144
    %v2146 = vpop.f32.mrf.mxu0
    %v2147 = vadd.f32 0.0, %v2146
    %2148 = vmatprep.mubr.bf16.mxu0 0
    %2149 = vmatmul.mubr.bf16.gmra.mxu0 %v1065
    %v2150 = vpop.f32.mrf.mxu0
    %v2151 = vadd.f32 0.0, %v2150
    %v2152 = vpop.f32.mrf.mxu0
    %v2153 = vadd.f32 0.0, %v2152
    %v2154 = vpop.f32.mrf.mxu0
    %v2155 = vadd.f32 0.0, %v2154
    %v2156 = vpop.f32.mrf.mxu0
    %v2157 = vadd.f32 0.0, %v2156
    %2158 = vmatprep.mubr.bf16.mxu0 0
    %2159 = vmatmul.mubr.bf16.gmra.mxu0 %v1066
    %v2160 = vpop.f32.mrf.mxu0
    %v2161 = vadd.f32 0.0, %v2160
    %v2162 = vpop.f32.mrf.mxu0
    %v2163 = vadd.f32 0.0, %v2162
    %v2164 = vpop.f32.mrf.mxu0
    %v2165 = vadd.f32 0.0, %v2164
    %v2166 = vpop.f32.mrf.mxu0
    %v2167 = vadd.f32 0.0, %v2166
    %2168 = vmatprep.mubr.bf16.mxu0 0
    %2169 = vmatmul.mubr.bf16.gmra.mxu0 %v1067
    %v2170 = vpop.f32.mrf.mxu0
    %v2171 = vadd.f32 0.0, %v2170
    %v2172 = vpop.f32.mrf.mxu0
    %v2173 = vadd.f32 0.0, %v2172
    %v2174 = vpop.f32.mrf.mxu0
    %v2175 = vadd.f32 0.0, %v2174
    %v2176 = vpop.f32.mrf.mxu0
    %v2177 = vadd.f32 0.0, %v2176
    %2178 = vmatprep.mubr.bf16.mxu0 0
    %2179 = vmatmul.mubr.bf16.gmra.mxu0 %v1068
    %v2180 = vpop.f32.mrf.mxu0
    %v2181 = vadd.f32 0.0, %v2180
    %v2182 = vpop.f32.mrf.mxu0
    %v2183 = vadd.f32 0.0, %v2182
    %v2184 = vpop.f32.mrf.mxu0
    %v2185 = vadd.f32 0.0, %v2184
    %v2186 = vpop.f32.mrf.mxu0
    %v2187 = vadd.f32 0.0, %v2186
    %2188 = vmatprep.mubr.bf16.mxu0 0
    %2189 = vmatmul.mubr.bf16.gmra.mxu0 %v1069
    %v2190 = vpop.f32.mrf.mxu0
    %v2191 = vadd.f32 0.0, %v2190
    %v2192 = vpop.f32.mrf.mxu0
    %v2193 = vadd.f32 0.0, %v2192
    %v2194 = vpop.f32.mrf.mxu0
    %v2195 = vadd.f32 0.0, %v2194
    %v2196 = vpop.f32.mrf.mxu0
    %v2197 = vadd.f32 0.0, %v2196
    %2198 = vmatprep.mubr.bf16.mxu0 0
    %2199 = vmatmul.mubr.bf16.gmra.mxu0 %v1070
    %v2200 = vpop.f32.mrf.mxu0
    %v2201 = vadd.f32 0.0, %v2200
    %v2202 = vpop.f32.mrf.mxu0
    %v2203 = vadd.f32 0.0, %v2202
    %v2204 = vpop.f32.mrf.mxu0
    %v2205 = vadd.f32 0.0, %v2204
    %v2206 = vpop.f32.mrf.mxu0
    %v2207 = vadd.f32 0.0, %v2206
    %2208 = vmatprep.mubr.bf16.mxu0 0
    %2209 = vmatmul.mubr.bf16.gmra.mxu0 %v1071
    %v2210 = vpop.f32.mrf.mxu0
    %v2211 = vadd.f32 0.0, %v2210
    %v2212 = vpop.f32.mrf.mxu0
    %v2213 = vadd.f32 0.0, %v2212
    %v2214 = vpop.f32.mrf.mxu0
    %v2215 = vadd.f32 0.0, %v2214
    %v2216 = vpop.f32.mrf.mxu0
    %v2217 = vadd.f32 0.0, %v2216
    %2218 = vmatprep.mubr.bf16.mxu0 0
    %2219 = vmatmul.mubr.bf16.gmra.mxu0 %v1072
    %v2220 = vpop.f32.mrf.mxu0
    %v2221 = vadd.f32 0.0, %v2220
    %v2222 = vpop.f32.mrf.mxu0
    %v2223 = vadd.f32 0.0, %v2222
    %v2224 = vpop.f32.mrf.mxu0
    %v2225 = vadd.f32 0.0, %v2224
    %v2226 = vpop.f32.mrf.mxu0
    %v2227 = vadd.f32 0.0, %v2226
    %2228 = vdwg.mxu0
    %v2229 = vld [vmem:[#allocation2] sm:$0xff]
    %v2230 = vld [vmem:[#allocation2 + $0x8] sm:$0xff]
    %v2231 = vmax.f32 %v1492, %v1496
    %v2232 = vmax.f32 %v2231, %v1502
    %v2233 = vmax.f32 %v2232, %v1506
    %v2234 = vmax.f32 %v2233, %v1512
    %v2235 = vmax.f32 %v2234, %v1516
    %v2236 = vmax.f32 %v2235, %v1522
    %v2237 = vmax.f32 %v2236, %v1526
    %v2238 = vmax.f32 %v2237, %v1532
    %v2239 = vmax.f32 %v2238, %v1536
    %v2240 = vmax.f32 %v2239, %v1542
    %v2241 = vmax.f32 %v2240, %v1546
    %v2242 = vmax.f32 %v2241, %v1552
    %v2243 = vmax.f32 %v2242, %v1556
    %v2244 = vmax.f32 %v2243, %v1562
    %v2245 = vmax.f32 %v2244, %v1566
    %v2246 = vrot.slane %v2245, 4
    %v2247 = vmax.f32 %v2245, %v2246
    %v2248 = vrot.slane %v2247, 2
    %v2249 = vmax.f32 %v2247, %v2248
    %v2250 = vrot.slane %v2249, 1
    %v2251 = vmax.f32 %v2249, %v2250
    %v2252 = vmax.f32 %v1494, %v1498
    %v2253 = vmax.f32 %v2252, %v1504
    %v2254 = vmax.f32 %v2253, %v1508
    %v2255 = vmax.f32 %v2254, %v1514
    %v2256 = vmax.f32 %v2255, %v1518
    %v2257 = vmax.f32 %v2256, %v1524
    %v2258 = vmax.f32 %v2257, %v1528
    %v2259 = vmax.f32 %v2258, %v1534
    %v2260 = vmax.f32 %v2259, %v1538
    %v2261 = vmax.f32 %v2260, %v1544
    %v2262 = vmax.f32 %v2261, %v1548
    %v2263 = vmax.f32 %v2262, %v1554
    %v2264 = vmax.f32 %v2263, %v1558
    %v2265 = vmax.f32 %v2264, %v1564
    %v2266 = vmax.f32 %v2265, %v1568
    %v2267 = vrot.slane %v2266, 4
    %v2268 = vmax.f32 %v2266, %v2267
    %v2269 = vrot.slane %v2268, 2
    %v2270 = vmax.f32 %v2268, %v2269
    %v2271 = vrot.slane %v2270, 1
    %v2272 = vmax.f32 %v2270, %v2271
    %v2273 = vmax.f32 %v1685, %v1689
    %v2274 = vmax.f32 %v2273, %v1695
    %v2275 = vmax.f32 %v2274, %v1699
    %v2276 = vmax.f32 %v2275, %v1705
    %v2277 = vmax.f32 %v2276, %v1709
    %v2278 = vmax.f32 %v2277, %v1715
    %v2279 = vmax.f32 %v2278, %v1719
    %v2280 = vmax.f32 %v2279, %v1725
    %v2281 = vmax.f32 %v2280, %v1729
    %v2282 = vmax.f32 %v2281, %v1735
    %v2283 = vmax.f32 %v2282, %v1739
    %v2284 = vmax.f32 %v2283, %v1745
    %v2285 = vmax.f32 %v2284, %v1749
    %v2286 = vmax.f32 %v2285, %v1755
    %v2287 = vmax.f32 %v2286, %v1759
    %v2288 = vrot.slane %v2287, 4
    %v2289 = vmax.f32 %v2287, %v2288
    %v2290 = vrot.slane %v2289, 2
    %v2291 = vmax.f32 %v2289, %v2290
    %v2292 = vrot.slane %v2291, 1
    %v2293 = vmax.f32 %v2291, %v2292
    %v2294 = vmax.f32 %v1687, %v1691
    %v2295 = vmax.f32 %v2294, %v1697
    %v2296 = vmax.f32 %v2295, %v1701
    %v2297 = vmax.f32 %v2296, %v1707
    %v2298 = vmax.f32 %v2297, %v1711
    %v2299 = vmax.f32 %v2298, %v1717
    %v2300 = vmax.f32 %v2299, %v1721
    %v2301 = vmax.f32 %v2300, %v1727
    %v2302 = vmax.f32 %v2301, %v1731
    %v2303 = vmax.f32 %v2302, %v1737
    %v2304 = vmax.f32 %v2303, %v1741
    %v2305 = vmax.f32 %v2304, %v1747
    %v2306 = vmax.f32 %v2305, %v1751
    %v2307 = vmax.f32 %v2306, %v1757
    %v2308 = vmax.f32 %v2307, %v1761
    %v2309 = vrot.slane %v2308, 4
    %v2310 = vmax.f32 %v2308, %v2309
    %v2311 = vrot.slane %v2310, 2
    %v2312 = vmax.f32 %v2310, %v2311
    %v2313 = vrot.slane %v2312, 1
    %v2314 = vmax.f32 %v2312, %v2313
    %v2315 = vmax.f32 %v1878, %v1882
    %v2316 = vmax.f32 %v2315, %v1888
    %v2317 = vmax.f32 %v2316, %v1892
    %v2318 = vmax.f32 %v2317, %v1898
    %v2319 = vmax.f32 %v2318, %v1902
    %v2320 = vmax.f32 %v2319, %v1908
    %v2321 = vmax.f32 %v2320, %v1912
    %v2322 = vmax.f32 %v2321, %v1918
    %v2323 = vmax.f32 %v2322, %v1922
    %v2324 = vmax.f32 %v2323, %v1928
    %v2325 = vmax.f32 %v2324, %v1932
    %v2326 = vmax.f32 %v2325, %v1938
    %v2327 = vmax.f32 %v2326, %v1942
    %v2328 = vmax.f32 %v2327, %v1948
    %v2329 = vmax.f32 %v2328, %v1952
    %v2330 = vrot.slane %v2329, 4
    %v2331 = vmax.f32 %v2329, %v2330
    %v2332 = vrot.slane %v2331, 2
    %v2333 = vmax.f32 %v2331, %v2332
    %v2334 = vrot.slane %v2333, 1
    %v2335 = vmax.f32 %v2333, %v2334
    %v2336 = vmax.f32 %v1880, %v1884
    %v2337 = vmax.f32 %v2336, %v1890
    %v2338 = vmax.f32 %v2337, %v1894
    %v2339 = vmax.f32 %v2338, %v1900
    %v2340 = vmax.f32 %v2339, %v1904
    %v2341 = vmax.f32 %v2340, %v1910
    %v2342 = vmax.f32 %v2341, %v1914
    %v2343 = vmax.f32 %v2342, %v1920
    %v2344 = vmax.f32 %v2343, %v1924
    %v2345 = vmax.f32 %v2344, %v1930
    %v2346 = vmax.f32 %v2345, %v1934
    %v2347 = vmax.f32 %v2346, %v1940
    %v2348 = vmax.f32 %v2347, %v1944
    %v2349 = vmax.f32 %v2348, %v1950
    %v2350 = vmax.f32 %v2349, %v1954
    %v2351 = vrot.slane %v2350, 4
    %v2352 = vmax.f32 %v2350, %v2351
    %v2353 = vrot.slane %v2352, 2
    %v2354 = vmax.f32 %v2352, %v2353
    %v2355 = vrot.slane %v2354, 1
    %v2356 = vmax.f32 %v2354, %v2355
    %v2357 = vmax.f32 %v2071, %v2075
    %v2358 = vmax.f32 %v2357, %v2081
    %v2359 = vmax.f32 %v2358, %v2085
    %v2360 = vmax.f32 %v2359, %v2091
    %v2361 = vmax.f32 %v2360, %v2095
    %v2362 = vmax.f32 %v2361, %v2101
    %v2363 = vmax.f32 %v2362, %v2105
    %v2364 = vmax.f32 %v2363, %v2111
    %v2365 = vmax.f32 %v2364, %v2115
    %v2366 = vmax.f32 %v2365, %v2121
    %v2367 = vmax.f32 %v2366, %v2125
    %v2368 = vmax.f32 %v2367, %v2131
    %v2369 = vmax.f32 %v2368, %v2135
    %v2370 = vmax.f32 %v2369, %v2141
    %v2371 = vmax.f32 %v2370, %v2145
    %v2372 = vrot.slane %v2371, 4
    %v2373 = vmax.f32 %v2371, %v2372
    %v2374 = vrot.slane %v2373, 2
    %v2375 = vmax.f32 %v2373, %v2374
    %v2376 = vrot.slane %v2375, 1
    %v2377 = vmax.f32 %v2375, %v2376
    %v2378 = vmax.f32 %v2073, %v2077
    %v2379 = vmax.f32 %v2378, %v2083
    %v2380 = vmax.f32 %v2379, %v2087
    %v2381 = vmax.f32 %v2380, %v2093
    %v2382 = vmax.f32 %v2381, %v2097
    %v2383 = vmax.f32 %v2382, %v2103
    %v2384 = vmax.f32 %v2383, %v2107
    %v2385 = vmax.f32 %v2384, %v2113
    %v2386 = vmax.f32 %v2385, %v2117
    %v2387 = vmax.f32 %v2386, %v2123
    %v2388 = vmax.f32 %v2387, %v2127
    %v2389 = vmax.f32 %v2388, %v2133
    %v2390 = vmax.f32 %v2389, %v2137
    %v2391 = vmax.f32 %v2390, %v2143
    %v2392 = vmax.f32 %v2391, %v2147
    %v2393 = vrot.slane %v2392, 4
    %v2394 = vmax.f32 %v2392, %v2393
    %v2395 = vrot.slane %v2394, 2
    %v2396 = vmax.f32 %v2394, %v2395
    %v2397 = vrot.slane %v2396, 1
    %v2398 = vmax.f32 %v2396, %v2397
    %v2399 = vmax.f32 %v1572, %v1576
    %v2400 = vmax.f32 %v2399, %v1582
    %v2401 = vmax.f32 %v2400, %v1586
    %v2402 = vmax.f32 %v2401, %v1592
    %v2403 = vmax.f32 %v2402, %v1596
    %v2404 = vmax.f32 %v2403, %v1602
    %v2405 = vmax.f32 %v2404, %v1606
    %v2406 = vmax.f32 %v2405, %v1612
    %v2407 = vmax.f32 %v2406, %v1616
    %v2408 = vmax.f32 %v2407, %v1622
    %v2409 = vmax.f32 %v2408, %v1626
    %v2410 = vmax.f32 %v2409, %v1632
    %v2411 = vmax.f32 %v2410, %v1636
    %v2412 = vmax.f32 %v2411, %v1642
    %v2413 = vmax.f32 %v2412, %v1646
    %v2414 = vrot.slane %v2413, 4
    %v2415 = vmax.f32 %v2413, %v2414
    %v2416 = vrot.slane %v2415, 2
    %v2417 = vmax.f32 %v2415, %v2416
    %v2418 = vrot.slane %v2417, 1
    %v2419 = vmax.f32 %v2417, %v2418
    %v2420 = vmax.f32 %v1574, %v1578
    %v2421 = vmax.f32 %v2420, %v1584
    %v2422 = vmax.f32 %v2421, %v1588
    %v2423 = vmax.f32 %v2422, %v1594
    %v2424 = vmax.f32 %v2423, %v1598
    %v2425 = vmax.f32 %v2424, %v1604
    %v2426 = vmax.f32 %v2425, %v1608
    %v2427 = vmax.f32 %v2426, %v1614
    %v2428 = vmax.f32 %v2427, %v1618
    %v2429 = vmax.f32 %v2428, %v1624
    %v2430 = vmax.f32 %v2429, %v1628
    %v2431 = vmax.f32 %v2430, %v1634
    %v2432 = vmax.f32 %v2431, %v1638
    %v2433 = vmax.f32 %v2432, %v1644
    %v2434 = vmax.f32 %v2433, %v1648
    %v2435 = vrot.slane %v2434, 4
    %v2436 = vmax.f32 %v2434, %v2435
    %v2437 = vrot.slane %v2436, 2
    %v2438 = vmax.f32 %v2436, %v2437
    %v2439 = vrot.slane %v2438, 1
    %v2440 = vmax.f32 %v2438, %v2439
    %v2441 = vmax.f32 %v1765, %v1769
    %v2442 = vmax.f32 %v2441, %v1775
    %v2443 = vmax.f32 %v2442, %v1779
    %v2444 = vmax.f32 %v2443, %v1785
    %v2445 = vmax.f32 %v2444, %v1789
    %v2446 = vmax.f32 %v2445, %v1795
    %v2447 = vmax.f32 %v2446, %v1799
    %v2448 = vmax.f32 %v2447, %v1805
    %v2449 = vmax.f32 %v2448, %v1809
    %v2450 = vmax.f32 %v2449, %v1815
    %v2451 = vmax.f32 %v2450, %v1819
    %v2452 = vmax.f32 %v2451, %v1825
    %v2453 = vmax.f32 %v2452, %v1829
    %v2454 = vmax.f32 %v2453, %v1835
    %v2455 = vmax.f32 %v2454, %v1839
    %v2456 = vrot.slane %v2455, 4
    %v2457 = vmax.f32 %v2455, %v2456
    %v2458 = vrot.slane %v2457, 2
    %v2459 = vmax.f32 %v2457, %v2458
    %v2460 = vrot.slane %v2459, 1
    %v2461 = vmax.f32 %v2459, %v2460
    %v2462 = vmax.f32 %v1767, %v1771
    %v2463 = vmax.f32 %v2462, %v1777
    %v2464 = vmax.f32 %v2463, %v1781
    %v2465 = vmax.f32 %v2464, %v1787
    %v2466 = vmax.f32 %v2465, %v1791
    %v2467 = vmax.f32 %v2466, %v1797
    %v2468 = vmax.f32 %v2467, %v1801
    %v2469 = vmax.f32 %v2468, %v1807
    %v2470 = vmax.f32 %v2469, %v1811
    %v2471 = vmax.f32 %v2470, %v1817
    %v2472 = vmax.f32 %v2471, %v1821
    %v2473 = vmax.f32 %v2472, %v1827
    %v2474 = vmax.f32 %v2473, %v1831
    %v2475 = vmax.f32 %v2474, %v1837
    %v2476 = vmax.f32 %v2475, %v1841
    %v2477 = vrot.slane %v2476, 4
    %v2478 = vmax.f32 %v2476, %v2477
    %v2479 = vrot.slane %v2478, 2
    %v2480 = vmax.f32 %v2478, %v2479
    %v2481 = vrot.slane %v2480, 1
    %v2482 = vmax.f32 %v2480, %v2481
    %v2483 = vmax.f32 %v1958, %v1962
    %v2484 = vmax.f32 %v2483, %v1968
    %v2485 = vmax.f32 %v2484, %v1972
    %v2486 = vmax.f32 %v2485, %v1978
    %v2487 = vmax.f32 %v2486, %v1982
    %v2488 = vmax.f32 %v2487, %v1988
    %v2489 = vmax.f32 %v2488, %v1992
    %v2490 = vmax.f32 %v2489, %v1998
    %v2491 = vmax.f32 %v2490, %v2002
    %v2492 = vmax.f32 %v2491, %v2008
    %v2493 = vmax.f32 %v2492, %v2012
    %v2494 = vmax.f32 %v2493, %v2018
    %v2495 = vmax.f32 %v2494, %v2022
    %v2496 = vmax.f32 %v2495, %v2028
    %v2497 = vmax.f32 %v2496, %v2032
    %v2498 = vrot.slane %v2497, 4
    %v2499 = vmax.f32 %v2497, %v2498
    %v2500 = vrot.slane %v2499, 2
    %v2501 = vmax.f32 %v2499, %v2500
    %v2502 = vrot.slane %v2501, 1
    %v2503 = vmax.f32 %v2501, %v2502
    %v2504 = vmax.f32 %v1960, %v1964
    %v2505 = vmax.f32 %v2504, %v1970
    %v2506 = vmax.f32 %v2505, %v1974
    %v2507 = vmax.f32 %v2506, %v1980
    %v2508 = vmax.f32 %v2507, %v1984
    %v2509 = vmax.f32 %v2508, %v1990
    %v2510 = vmax.f32 %v2509, %v1994
    %v2511 = vmax.f32 %v2510, %v2000
    %v2512 = vmax.f32 %v2511, %v2004
    %v2513 = vmax.f32 %v2512, %v2010
    %v2514 = vmax.f32 %v2513, %v2014
    %v2515 = vmax.f32 %v2514, %v2020
    %v2516 = vmax.f32 %v2515, %v2024
    %v2517 = vmax.f32 %v2516, %v2030
    %v2518 = vmax.f32 %v2517, %v2034
    %v2519 = vrot.slane %v2518, 4
    %v2520 = vmax.f32 %v2518, %v2519
    %v2521 = vrot.slane %v2520, 2
    %v2522 = vmax.f32 %v2520, %v2521
    %v2523 = vrot.slane %v2522, 1
    %v2524 = vmax.f32 %v2522, %v2523
    %v2525 = vmax.f32 %v2151, %v2155
    %v2526 = vmax.f32 %v2525, %v2161
    %v2527 = vmax.f32 %v2526, %v2165
    %v2528 = vmax.f32 %v2527, %v2171
    %v2529 = vmax.f32 %v2528, %v2175
    %v2530 = vmax.f32 %v2529, %v2181
    %v2531 = vmax.f32 %v2530, %v2185
    %v2532 = vmax.f32 %v2531, %v2191
    %v2533 = vmax.f32 %v2532, %v2195
    %v2534 = vmax.f32 %v2533, %v2201
    %v2535 = vmax.f32 %v2534, %v2205
    %v2536 = vmax.f32 %v2535, %v2211
    %v2537 = vmax.f32 %v2536, %v2215
    %v2538 = vmax.f32 %v2537, %v2221
    %v2539 = vmax.f32 %v2538, %v2225
    %v2540 = vrot.slane %v2539, 4
    %v2541 = vmax.f32 %v2539, %v2540
    %v2542 = vrot.slane %v2541, 2
    %v2543 = vmax.f32 %v2541, %v2542
    %v2544 = vrot.slane %v2543, 1
    %v2545 = vmax.f32 %v2543, %v2544
    %v2546 = vmax.f32 %v2153, %v2157
    %v2547 = vmax.f32 %v2546, %v2163
    %v2548 = vmax.f32 %v2547, %v2167
    %v2549 = vmax.f32 %v2548, %v2173
    %v2550 = vmax.f32 %v2549, %v2177
    %v2551 = vmax.f32 %v2550, %v2183
    %v2552 = vmax.f32 %v2551, %v2187
    %v2553 = vmax.f32 %v2552, %v2193
    %v2554 = vmax.f32 %v2553, %v2197
    %v2555 = vmax.f32 %v2554, %v2203
    %v2556 = vmax.f32 %v2555, %v2207
    %v2557 = vmax.f32 %v2556, %v2213
    %v2558 = vmax.f32 %v2557, %v2217
    %v2559 = vmax.f32 %v2558, %v2223
    %v2560 = vmax.f32 %v2559, %v2227
    %v2561 = vrot.slane %v2560, 4
    %v2562 = vmax.f32 %v2560, %v2561
    %v2563 = vrot.slane %v2562, 2
    %v2564 = vmax.f32 %v2562, %v2563
    %v2565 = vrot.slane %v2564, 1
    %v2566 = vmax.f32 %v2564, %v2565
    %v2583 = vcombine.low %v2251, %v2272
    %v2584 = vcombine.low %v2293, %v2314
    %v2586 = vunpack.c.l.s4 1983009808
    %v2587 = vunpack.c.0.s8 %v2586
    %v2588 = vlaneseq
    %v2589 = vshrl.u32 %v2588, 7
    %v2590 = vsub.s32 %v2587, %v2589
    %v2591 = vrot.slane %v2583, %v2590
    %v2593 = vunpack.c.l.s4 1983009808
    %v2594 = vunpack.c.0.s8 %v2593
    %v2595 = vlaneseq
    %v2596 = vshrl.u32 %v2595, 7
    %v2597 = vsub.s32 %v2594, %v2596
    %v2598 = vrot.slane %v2584, %v2597
    %v2599 = vcombine.low %v2591, %v2598
    %v2600 = vcombine.low %v2335, %v2356
    %v2601 = vcombine.low %v2377, %v2398
    %v2603 = vunpack.c.l.s4 1983009808
    %v2604 = vunpack.c.0.s8 %v2603
    %v2605 = vlaneseq
    %v2606 = vshrl.u32 %v2605, 7
    %v2607 = vsub.s32 %v2604, %v2606
    %v2608 = vrot.slane %v2600, %v2607
    %v2610 = vunpack.c.l.s4 1983009808
    %v2611 = vunpack.c.0.s8 %v2610
    %v2612 = vlaneseq
    %v2613 = vshrl.u32 %v2612, 7
    %v2614 = vsub.s32 %v2611, %v2613
    %v2615 = vrot.slane %v2601, %v2614
    %v2616 = vcombine.low %v2608, %v2615
    %v2617 = vcombine.low %v2419, %v2440
    %v2618 = vcombine.low %v2461, %v2482
    %v2620 = vunpack.c.l.s4 1983009808
    %v2621 = vunpack.c.0.s8 %v2620
    %v2622 = vlaneseq
    %v2623 = vshrl.u32 %v2622, 7
    %v2624 = vsub.s32 %v2621, %v2623
    %v2625 = vrot.slane %v2617, %v2624
    %v2627 = vunpack.c.l.s4 1983009808
    %v2628 = vunpack.c.0.s8 %v2627
    %v2629 = vlaneseq
    %v2630 = vshrl.u32 %v2629, 7
    %v2631 = vsub.s32 %v2628, %v2630
    %v2632 = vrot.slane %v2618, %v2631
    %v2633 = vcombine.low %v2625, %v2632
    %v2634 = vcombine.low %v2503, %v2524
    %v2635 = vcombine.low %v2545, %v2566
    %v2637 = vunpack.c.l.s4 1983009808
    %v2638 = vunpack.c.0.s8 %v2637
    %v2639 = vlaneseq
    %v2640 = vshrl.u32 %v2639, 7
    %v2641 = vsub.s32 %v2638, %v2640
    %v2642 = vrot.slane %v2634, %v2641
    %v2644 = vunpack.c.l.s4 1983009808
    %v2645 = vunpack.c.0.s8 %v2644
    %v2646 = vlaneseq
    %v2647 = vshrl.u32 %v2646, 7
    %v2648 = vsub.s32 %v2645, %v2647
    %v2649 = vrot.slane %v2635, %v2648
    %v2650 = vcombine.low %v2642, %v2649
    %vm2651 = vcmask 1044484
    %v2652 = vsel %vm2651, %v2599, %v2599
    %vm2653 = vcmask 1046534
    %v2654 = vsel %vm2653, %v2599, %v2652
    %v2655 = vrot.slane %v2633, 7
    %vm2656 = vcmask 1041409
    %v2657 = vsel %vm2656, %v2655, %v2654
    %vm2658 = vcmask 1043459
    %v2659 = vsel %vm2658, %v2655, %v2657
    %vm2660 = vcmask 1045509
    %v2661 = vsel %vm2660, %v2655, %v2659
    %vm2662 = vcmask 1047559
    %v2663 = vsel %vm2662, %v2655, %v2661
    %v2664 = vsel %vm2651, %v2616, %v2616
    %v2665 = vsel %vm2653, %v2616, %v2664
    %v2666 = vrot.slane %v2650, 7
    %v2667 = vsel %vm2656, %v2666, %v2665
    %v2668 = vsel %vm2658, %v2666, %v2667
    %v2669 = vsel %vm2660, %v2666, %v2668
    %v2670 = vsel %vm2662, %v2666, %v2669
    %v2673 = vmax.f32 %v2229, %v2663
    %v2674 = vmax.f32 %v2230, %v2670
    %2675 = vst [vmem:[#allocation2] sm:$0xff] %v2673
    %2676 = vst [vmem:[#allocation2 + $0x8] sm:$0xff] %v2674
    // Predicated region
    $region50: #{tpu_custom_call.1} parent=1 // pred_check
      %p2677 = pneg %p62
    $region51: #{tpu_custom_call.1} parent=1 // pred_check_branch
      %2679 = sbr.rel (%p2677) target = $region53
    $region52: #{tpu_custom_call.1} parent=1 // pred_region
      %v2680 = vld [vmem:[#allocation2] sm:$0xff]
      %v2681 = vld [vmem:[#allocation2 + $0x8] sm:$0xff]
      %v2682 = vld [vmem:[%s6] sm:$0xff]
      %v2684 = vlaneseq
      %v2685 = vshrl.u32 %v2684, 7
      %v2686 = vsub.s32 0, %v2685
      %v2687 = vrot.slane %v2682, %v2686
      %v2688 = vlaneseq
      %v2689 = vshrl.u32 %v2688, 7
      %v2690 = vsub.s32 1, %v2689
      %v2691 = vrot.slane %v2682, %v2690
      %v2692 = vlaneseq
      %v2693 = vshrl.u32 %v2692, 7
      %v2694 = vsub.s32 2, %v2693
      %v2695 = vrot.slane %v2682, %v2694
      %v2696 = vlaneseq
      %v2697 = vshrl.u32 %v2696, 7
      %v2698 = vsub.s32 3, %v2697
      %v2699 = vrot.slane %v2682, %v2698
      %v2700 = vlaneseq
      %v2701 = vshrl.u32 %v2700, 7
      %v2702 = vsub.s32 4, %v2701
      %v2703 = vrot.slane %v2682, %v2702
      %v2704 = vlaneseq
      %v2705 = vshrl.u32 %v2704, 7
      %v2706 = vsub.s32 5, %v2705
      %v2707 = vrot.slane %v2682, %v2706
      %v2708 = vlaneseq
      %v2709 = vshrl.u32 %v2708, 7
      %v2710 = vsub.s32 6, %v2709
      %v2711 = vrot.slane %v2682, %v2710
      %v2712 = vlaneseq
      %v2713 = vshrl.u32 %v2712, 7
      %v2714 = vsub.s32 7, %v2713
      %v2715 = vrot.slane %v2682, %v2714
      %v2716 = vcombine.low %v2687, %v2691
      %v2717 = vcombine.low %v2695, %v2699
      %v2719 = vunpack.c.l.s4 1983009808
      %v2720 = vunpack.c.0.s8 %v2719
      %v2721 = vlaneseq
      %v2722 = vshrl.u32 %v2721, 7
      %v2723 = vsub.s32 %v2720, %v2722
      %v2724 = vrot.slane %v2716, %v2723
      %v2726 = vunpack.c.l.s4 1983009808
      %v2727 = vunpack.c.0.s8 %v2726
      %v2728 = vlaneseq
      %v2729 = vshrl.u32 %v2728, 7
      %v2730 = vsub.s32 %v2727, %v2729
      %v2731 = vrot.slane %v2717, %v2730
      %v2732 = vcombine.low %v2724, %v2731
      %v2733 = vcombine.low %v2703, %v2707
      %v2734 = vcombine.low %v2711, %v2715
      %v2736 = vunpack.c.l.s4 1983009808
      %v2737 = vunpack.c.0.s8 %v2736
      %v2738 = vlaneseq
      %v2739 = vshrl.u32 %v2738, 7
      %v2740 = vsub.s32 %v2737, %v2739
      %v2741 = vrot.slane %v2733, %v2740
      %v2743 = vunpack.c.l.s4 1983009808
      %v2744 = vunpack.c.0.s8 %v2743
      %v2745 = vlaneseq
      %v2746 = vshrl.u32 %v2745, 7
      %v2747 = vsub.s32 %v2744, %v2746
      %v2748 = vrot.slane %v2734, %v2747
      %v2749 = vcombine.low %v2741, %v2748
      %v2752 = vadd.f32 %v2680, %v2732
      %v2753 = vadd.f32 %v2681, %v2749
      %v2754 = vmax.f32 %v2752, 0.0
      %v2755 = vmax.f32 %v2753, 0.0
      %v2758 = vcombine.high %v2754, %v2754
      %v2760 = vunpack.c.l.s4 1983009808
      %v2761 = vunpack.c.0.s8 %v2760
      %v2762 = vlaneseq
      %v2763 = vshrl.u32 %v2762, 7
      %v2764 = vsub.s32 %v2761, %v2763
      %v2765 = vrot.slane %v2754, %v2764
      %v2767 = vunpack.c.l.s4 1983009808
      %v2768 = vunpack.c.0.s8 %v2767
      %v2769 = vlaneseq
      %v2770 = vshrl.u32 %v2769, 7
      %v2771 = vsub.s32 %v2768, %v2770
      %v2772 = vrot.slane %v2758, %v2771
      %v2773 = vcombine.high %v2765, %v2765
      %v2774 = vcombine.high %v2772, %v2772
      %v2775 = vcombine.high %v2755, %v2755
      %v2777 = vunpack.c.l.s4 1983009808
      %v2778 = vunpack.c.0.s8 %v2777
      %v2779 = vlaneseq
      %v2780 = vshrl.u32 %v2779, 7
      %v2781 = vsub.s32 %v2778, %v2780
      %v2782 = vrot.slane %v2755, %v2781
      %v2784 = vunpack.c.l.s4 1983009808
      %v2785 = vunpack.c.0.s8 %v2784
      %v2786 = vlaneseq
      %v2787 = vshrl.u32 %v2786, 7
      %v2788 = vsub.s32 %v2785, %v2787
      %v2789 = vrot.slane %v2775, %v2788
      %v2790 = vcombine.high %v2782, %v2782
      %v2791 = vcombine.high %v2789, %v2789
      %v2800 = vpack.c.bf16 %v2765, %v2765
      %v2801 = vpack.c.bf16 %v2773, %v2773
      %v2802 = vpack.c.bf16 %v2772, %v2772
      %v2803 = vpack.c.bf16 %v2774, %v2774
      %v2804 = vpack.c.bf16 %v2782, %v2782
      %v2805 = vpack.c.bf16 %v2790, %v2790
      %v2806 = vpack.c.bf16 %v2789, %v2789
      %v2807 = vpack.c.bf16 %v2791, %v2791
      %v2808 = vld [vmem:[#allocation6] sm:$0xff]
      %v2809 = vld [vmem:[#allocation6 + $0x8] sm:$0xff]
      %v2810 = vld [vmem:[#allocation6 + $0x10] sm:$0xff]
      %v2811 = vld [vmem:[#allocation6 + $0x18] sm:$0xff]
      %v2812 = vld [vmem:[#allocation6 + $0x20] sm:$0xff]
      %v2813 = vld [vmem:[#allocation6 + $0x28] sm:$0xff]
      %v2814 = vld [vmem:[#allocation6 + $0x30] sm:$0xff]
      %v2815 = vld [vmem:[#allocation6 + $0x38] sm:$0xff]
      %v2816 = vld [vmem:[#allocation6 + $0x40] sm:$0xff]
      %v2817 = vld [vmem:[#allocation6 + $0x48] sm:$0xff]
      %v2818 = vld [vmem:[#allocation6 + $0x50] sm:$0xff]
      %v2819 = vld [vmem:[#allocation6 + $0x58] sm:$0xff]
      %v2820 = vld [vmem:[#allocation6 + $0x60] sm:$0xff]
      %v2821 = vld [vmem:[#allocation6 + $0x68] sm:$0xff]
      %v2822 = vld [vmem:[#allocation6 + $0x70] sm:$0xff]
      %v2823 = vld [vmem:[#allocation6 + $0x78] sm:$0xff]
      %v2824 = vld [vmem:[#allocation6 + $0x80] sm:$0xff]
      %v2825 = vld [vmem:[#allocation6 + $0x88] sm:$0xff]
      %v2826 = vld [vmem:[#allocation6 + $0x90] sm:$0xff]
      %v2827 = vld [vmem:[#allocation6 + $0x98] sm:$0xff]
      %v2828 = vld [vmem:[#allocation6 + $0xa0] sm:$0xff]
      %v2829 = vld [vmem:[#allocation6 + $0xa8] sm:$0xff]
      %v2830 = vld [vmem:[#allocation6 + $0xb0] sm:$0xff]
      %v2831 = vld [vmem:[#allocation6 + $0xb8] sm:$0xff]
      %v2832 = vld [vmem:[#allocation6 + $0xc0] sm:$0xff]
      %v2833 = vld [vmem:[#allocation6 + $0xc8] sm:$0xff]
      %v2834 = vld [vmem:[#allocation6 + $0xd0] sm:$0xff]
      %v2835 = vld [vmem:[#allocation6 + $0xd8] sm:$0xff]
      %v2836 = vld [vmem:[#allocation6 + $0xe0] sm:$0xff]
      %v2837 = vld [vmem:[#allocation6 + $0xe8] sm:$0xff]
      %v2838 = vld [vmem:[#allocation6 + $0xf0] sm:$0xff]
      %v2839 = vld [vmem:[#allocation6 + $0xf8] sm:$0xff]
      %v2840 = vld [vmem:[#allocation6 + $0x100] sm:$0xff]
      %v2841 = vld [vmem:[#allocation6 + $0x108] sm:$0xff]
      %v2842 = vld [vmem:[#allocation6 + $0x110] sm:$0xff]
      %v2843 = vld [vmem:[#allocation6 + $0x118] sm:$0xff]
      %v2844 = vld [vmem:[#allocation6 + $0x120] sm:$0xff]
      %v2845 = vld [vmem:[#allocation6 + $0x128] sm:$0xff]
      %v2846 = vld [vmem:[#allocation6 + $0x130] sm:$0xff]
      %v2847 = vld [vmem:[#allocation6 + $0x138] sm:$0xff]
      %v2848 = vld [vmem:[#allocation6 + $0x140] sm:$0xff]
      %v2849 = vld [vmem:[#allocation6 + $0x148] sm:$0xff]
      %v2850 = vld [vmem:[#allocation6 + $0x150] sm:$0xff]
      %v2851 = vld [vmem:[#allocation6 + $0x158] sm:$0xff]
      %v2852 = vld [vmem:[#allocation6 + $0x160] sm:$0xff]
      %v2853 = vld [vmem:[#allocation6 + $0x168] sm:$0xff]
      %v2854 = vld [vmem:[#allocation6 + $0x170] sm:$0xff]
      %v2855 = vld [vmem:[#allocation6 + $0x178] sm:$0xff]
      %v2856 = vld [vmem:[#allocation6 + $0x180] sm:$0xff]
      %v2857 = vld [vmem:[#allocation6 + $0x188] sm:$0xff]
      %v2858 = vld [vmem:[#allocation6 + $0x190] sm:$0xff]
      %v2859 = vld [vmem:[#allocation6 + $0x198] sm:$0xff]
      %v2860 = vld [vmem:[#allocation6 + $0x1a0] sm:$0xff]
      %v2861 = vld [vmem:[#allocation6 + $0x1a8] sm:$0xff]
      %v2862 = vld [vmem:[#allocation6 + $0x1b0] sm:$0xff]
      %v2863 = vld [vmem:[#allocation6 + $0x1b8] sm:$0xff]
      %v2864 = vld [vmem:[#allocation6 + $0x1c0] sm:$0xff]
      %v2865 = vld [vmem:[#allocation6 + $0x1c8] sm:$0xff]
      %v2866 = vld [vmem:[#allocation6 + $0x1d0] sm:$0xff]
      %v2867 = vld [vmem:[#allocation6 + $0x1d8] sm:$0xff]
      %v2868 = vld [vmem:[#allocation6 + $0x1e0] sm:$0xff]
      %v2869 = vld [vmem:[#allocation6 + $0x1e8] sm:$0xff]
      %v2870 = vld [vmem:[#allocation6 + $0x1f0] sm:$0xff]
      %v2871 = vld [vmem:[#allocation6 + $0x1f8] sm:$0xff]
      %v2872 = vld [vmem:[#allocation6 + $0x200] sm:$0xff]
      %v2873 = vld [vmem:[#allocation6 + $0x208] sm:$0xff]
      %v2874 = vld [vmem:[#allocation6 + $0x210] sm:$0xff]
      %v2875 = vld [vmem:[#allocation6 + $0x218] sm:$0xff]
      %v2876 = vld [vmem:[#allocation6 + $0x220] sm:$0xff]
      %v2877 = vld [vmem:[#allocation6 + $0x228] sm:$0xff]
      %v2878 = vld [vmem:[#allocation6 + $0x230] sm:$0xff]
      %v2879 = vld [vmem:[#allocation6 + $0x238] sm:$0xff]
      %v2880 = vld [vmem:[#allocation6 + $0x240] sm:$0xff]
      %v2881 = vld [vmem:[#allocation6 + $0x248] sm:$0xff]
      %v2882 = vld [vmem:[#allocation6 + $0x250] sm:$0xff]
      %v2883 = vld [vmem:[#allocation6 + $0x258] sm:$0xff]
      %v2884 = vld [vmem:[#allocation6 + $0x260] sm:$0xff]
      %v2885 = vld [vmem:[#allocation6 + $0x268] sm:$0xff]
      %v2886 = vld [vmem:[#allocation6 + $0x270] sm:$0xff]
      %v2887 = vld [vmem:[#allocation6 + $0x278] sm:$0xff]
      %v2888 = vld [vmem:[#allocation6 + $0x280] sm:$0xff]
      %v2889 = vld [vmem:[#allocation6 + $0x288] sm:$0xff]
      %v2890 = vld [vmem:[#allocation6 + $0x290] sm:$0xff]
      %v2891 = vld [vmem:[#allocation6 + $0x298] sm:$0xff]
      %v2892 = vld [vmem:[#allocation6 + $0x2a0] sm:$0xff]
      %v2893 = vld [vmem:[#allocation6 + $0x2a8] sm:$0xff]
      %v2894 = vld [vmem:[#allocation6 + $0x2b0] sm:$0xff]
      %v2895 = vld [vmem:[#allocation6 + $0x2b8] sm:$0xff]
      %v2896 = vld [vmem:[#allocation6 + $0x2c0] sm:$0xff]
      %v2897 = vld [vmem:[#allocation6 + $0x2c8] sm:$0xff]
      %v2898 = vld [vmem:[#allocation6 + $0x2d0] sm:$0xff]
      %v2899 = vld [vmem:[#allocation6 + $0x2d8] sm:$0xff]
      %v2900 = vld [vmem:[#allocation6 + $0x2e0] sm:$0xff]
      %v2901 = vld [vmem:[#allocation6 + $0x2e8] sm:$0xff]
      %v2902 = vld [vmem:[#allocation6 + $0x2f0] sm:$0xff]
      %v2903 = vld [vmem:[#allocation6 + $0x2f8] sm:$0xff]
      %v2904 = vld [vmem:[#allocation6 + $0x300] sm:$0xff]
      %v2905 = vld [vmem:[#allocation6 + $0x308] sm:$0xff]
      %v2906 = vld [vmem:[#allocation6 + $0x310] sm:$0xff]
      %v2907 = vld [vmem:[#allocation6 + $0x318] sm:$0xff]
      %v2908 = vld [vmem:[#allocation6 + $0x320] sm:$0xff]
      %v2909 = vld [vmem:[#allocation6 + $0x328] sm:$0xff]
      %v2910 = vld [vmem:[#allocation6 + $0x330] sm:$0xff]
      %v2911 = vld [vmem:[#allocation6 + $0x338] sm:$0xff]
      %v2912 = vld [vmem:[#allocation6 + $0x340] sm:$0xff]
      %v2913 = vld [vmem:[#allocation6 + $0x348] sm:$0xff]
      %v2914 = vld [vmem:[#allocation6 + $0x350] sm:$0xff]
      %v2915 = vld [vmem:[#allocation6 + $0x358] sm:$0xff]
      %v2916 = vld [vmem:[#allocation6 + $0x360] sm:$0xff]
      %v2917 = vld [vmem:[#allocation6 + $0x368] sm:$0xff]
      %v2918 = vld [vmem:[#allocation6 + $0x370] sm:$0xff]
      %v2919 = vld [vmem:[#allocation6 + $0x378] sm:$0xff]
      %v2920 = vld [vmem:[#allocation6 + $0x380] sm:$0xff]
      %v2921 = vld [vmem:[#allocation6 + $0x388] sm:$0xff]
      %v2922 = vld [vmem:[#allocation6 + $0x390] sm:$0xff]
      %v2923 = vld [vmem:[#allocation6 + $0x398] sm:$0xff]
      %v2924 = vld [vmem:[#allocation6 + $0x3a0] sm:$0xff]
      %v2925 = vld [vmem:[#allocation6 + $0x3a8] sm:$0xff]
      %v2926 = vld [vmem:[#allocation6 + $0x3b0] sm:$0xff]
      %v2927 = vld [vmem:[#allocation6 + $0x3b8] sm:$0xff]
      %v2928 = vld [vmem:[#allocation6 + $0x3c0] sm:$0xff]
      %v2929 = vld [vmem:[#allocation6 + $0x3c8] sm:$0xff]
      %v2930 = vld [vmem:[#allocation6 + $0x3d0] sm:$0xff]
      %v2931 = vld [vmem:[#allocation6 + $0x3d8] sm:$0xff]
      %v2932 = vld [vmem:[#allocation6 + $0x3e0] sm:$0xff]
      %v2933 = vld [vmem:[#allocation6 + $0x3e8] sm:$0xff]
      %v2934 = vld [vmem:[#allocation6 + $0x3f0] sm:$0xff]
      %v2935 = vld [vmem:[#allocation6 + $0x3f8] sm:$0xff]
      %v2936 = vld [vmem:[%s8] sm:$0x3]
      %v2938 = vlaneseq
      %v2939 = vshrl.u32 %v2938, 7
      %v2940 = vsub.s32 0, %v2939
      %v2941 = vrot.slane %v2936, %v2940
      %v2942 = vlaneseq
      %v2943 = vshrl.u32 %v2942, 7
      %v2944 = vsub.s32 1, %v2943
      %v2945 = vrot.slane %v2936, %v2944
      %v3076 = vunpack.c.l.b16 %v2808
      %v3077 = vunpack.c.h.b16 %v2808
      %v3078 = vunpack.c.l.b16 %v2809
      %v3079 = vunpack.c.h.b16 %v2809
      %v3080 = vunpack.c.l.b16 %v2810
      %v3081 = vunpack.c.h.b16 %v2810
      %v3082 = vunpack.c.l.b16 %v2811
      %v3083 = vunpack.c.h.b16 %v2811
      %v3084 = vunpack.c.l.b16 %v2812
      %v3085 = vunpack.c.h.b16 %v2812
      %v3086 = vunpack.c.l.b16 %v2813
      %v3087 = vunpack.c.h.b16 %v2813
      %v3088 = vunpack.c.l.b16 %v2814
      %v3089 = vunpack.c.h.b16 %v2814
      %v3090 = vunpack.c.l.b16 %v2815
      %v3091 = vunpack.c.h.b16 %v2815
      %v3092 = vunpack.c.l.b16 %v2816
      %v3093 = vunpack.c.h.b16 %v2816
      %v3094 = vunpack.c.l.b16 %v2817
      %v3095 = vunpack.c.h.b16 %v2817
      %v3096 = vunpack.c.l.b16 %v2818
      %v3097 = vunpack.c.h.b16 %v2818
      %v3098 = vunpack.c.l.b16 %v2819
      %v3099 = vunpack.c.h.b16 %v2819
      %v3100 = vunpack.c.l.b16 %v2820
      %v3101 = vunpack.c.h.b16 %v2820
      %v3102 = vunpack.c.l.b16 %v2821
      %v3103 = vunpack.c.h.b16 %v2821
      %v3104 = vunpack.c.l.b16 %v2822
      %v3105 = vunpack.c.h.b16 %v2822
      %v3106 = vunpack.c.l.b16 %v2823
      %v3107 = vunpack.c.h.b16 %v2823
      %v3108 = vunpack.c.l.b16 %v2824
      %v3109 = vunpack.c.h.b16 %v2824
      %v3110 = vunpack.c.l.b16 %v2825
      %v3111 = vunpack.c.h.b16 %v2825
      %v3112 = vunpack.c.l.b16 %v2826
      %v3113 = vunpack.c.h.b16 %v2826
      %v3114 = vunpack.c.l.b16 %v2827
      %v3115 = vunpack.c.h.b16 %v2827
      %v3116 = vunpack.c.l.b16 %v2828
      %v3117 = vunpack.c.h.b16 %v2828
      %v3118 = vunpack.c.l.b16 %v2829
      %v3119 = vunpack.c.h.b16 %v2829
      %v3120 = vunpack.c.l.b16 %v2830
      %v3121 = vunpack.c.h.b16 %v2830
      %v3122 = vunpack.c.l.b16 %v2831
      %v3123 = vunpack.c.h.b16 %v2831
      %v3124 = vunpack.c.l.b16 %v2832
      %v3125 = vunpack.c.h.b16 %v2832
      %v3126 = vunpack.c.l.b16 %v2833
      %v3127 = vunpack.c.h.b16 %v2833
      %v3128 = vunpack.c.l.b16 %v2834
      %v3129 = vunpack.c.h.b16 %v2834
      %v3130 = vunpack.c.l.b16 %v2835
      %v3131 = vunpack.c.h.b16 %v2835
      %v3132 = vunpack.c.l.b16 %v2836
      %v3133 = vunpack.c.h.b16 %v2836
      %v3134 = vunpack.c.l.b16 %v2837
      %v3135 = vunpack.c.h.b16 %v2837
      %v3136 = vunpack.c.l.b16 %v2838
      %v3137 = vunpack.c.h.b16 %v2838
      %v3138 = vunpack.c.l.b16 %v2839
      %v3139 = vunpack.c.h.b16 %v2839
      %v3140 = vunpack.c.l.b16 %v2840
      %v3141 = vunpack.c.h.b16 %v2840
      %v3142 = vunpack.c.l.b16 %v2841
      %v3143 = vunpack.c.h.b16 %v2841
      %v3144 = vunpack.c.l.b16 %v2842
      %v3145 = vunpack.c.h.b16 %v2842
      %v3146 = vunpack.c.l.b16 %v2843
      %v3147 = vunpack.c.h.b16 %v2843
      %v3148 = vunpack.c.l.b16 %v2844
      %v3149 = vunpack.c.h.b16 %v2844
      %v3150 = vunpack.c.l.b16 %v2845
      %v3151 = vunpack.c.h.b16 %v2845
      %v3152 = vunpack.c.l.b16 %v2846
      %v3153 = vunpack.c.h.b16 %v2846
      %v3154 = vunpack.c.l.b16 %v2847
      %v3155 = vunpack.c.h.b16 %v2847
      %v3156 = vunpack.c.l.b16 %v2848
      %v3157 = vunpack.c.h.b16 %v2848
      %v3158 = vunpack.c.l.b16 %v2849
      %v3159 = vunpack.c.h.b16 %v2849
      %v3160 = vunpack.c.l.b16 %v2850
      %v3161 = vunpack.c.h.b16 %v2850
      %v3162 = vunpack.c.l.b16 %v2851
      %v3163 = vunpack.c.h.b16 %v2851
      %v3164 = vunpack.c.l.b16 %v2852
      %v3165 = vunpack.c.h.b16 %v2852
      %v3166 = vunpack.c.l.b16 %v2853
      %v3167 = vunpack.c.h.b16 %v2853
      %v3168 = vunpack.c.l.b16 %v2854
      %v3169 = vunpack.c.h.b16 %v2854
      %v3170 = vunpack.c.l.b16 %v2855
      %v3171 = vunpack.c.h.b16 %v2855
      %v3172 = vunpack.c.l.b16 %v2856
      %v3173 = vunpack.c.h.b16 %v2856
      %v3174 = vunpack.c.l.b16 %v2857
      %v3175 = vunpack.c.h.b16 %v2857
      %v3176 = vunpack.c.l.b16 %v2858
      %v3177 = vunpack.c.h.b16 %v2858
      %v3178 = vunpack.c.l.b16 %v2859
      %v3179 = vunpack.c.h.b16 %v2859
      %v3180 = vunpack.c.l.b16 %v2860
      %v3181 = vunpack.c.h.b16 %v2860
      %v3182 = vunpack.c.l.b16 %v2861
      %v3183 = vunpack.c.h.b16 %v2861
      %v3184 = vunpack.c.l.b16 %v2862
      %v3185 = vunpack.c.h.b16 %v2862
      %v3186 = vunpack.c.l.b16 %v2863
      %v3187 = vunpack.c.h.b16 %v2863
      %v3188 = vunpack.c.l.b16 %v2864
      %v3189 = vunpack.c.h.b16 %v2864
      %v3190 = vunpack.c.l.b16 %v2865
      %v3191 = vunpack.c.h.b16 %v2865
      %v3192 = vunpack.c.l.b16 %v2866
      %v3193 = vunpack.c.h.b16 %v2866
      %v3194 = vunpack.c.l.b16 %v2867
      %v3195 = vunpack.c.h.b16 %v2867
      %v3196 = vunpack.c.l.b16 %v2868
      %v3197 = vunpack.c.h.b16 %v2868
      %v3198 = vunpack.c.l.b16 %v2869
      %v3199 = vunpack.c.h.b16 %v2869
      %v3200 = vunpack.c.l.b16 %v2870
      %v3201 = vunpack.c.h.b16 %v2870
      %v3202 = vunpack.c.l.b16 %v2871
      %v3203 = vunpack.c.h.b16 %v2871
      %v3204 = vunpack.c.l.b16 %v2872
      %v3205 = vunpack.c.h.b16 %v2872
      %v3206 = vunpack.c.l.b16 %v2873
      %v3207 = vunpack.c.h.b16 %v2873
      %v3208 = vunpack.c.l.b16 %v2874
      %v3209 = vunpack.c.h.b16 %v2874
      %v3210 = vunpack.c.l.b16 %v2875
      %v3211 = vunpack.c.h.b16 %v2875
      %v3212 = vunpack.c.l.b16 %v2876
      %v3213 = vunpack.c.h.b16 %v2876
      %v3214 = vunpack.c.l.b16 %v2877
      %v3215 = vunpack.c.h.b16 %v2877
      %v3216 = vunpack.c.l.b16 %v2878
      %v3217 = vunpack.c.h.b16 %v2878
      %v3218 = vunpack.c.l.b16 %v2879
      %v3219 = vunpack.c.h.b16 %v2879
      %v3220 = vunpack.c.l.b16 %v2880
      %v3221 = vunpack.c.h.b16 %v2880
      %v3222 = vunpack.c.l.b16 %v2881
      %v3223 = vunpack.c.h.b16 %v2881
      %v3224 = vunpack.c.l.b16 %v2882
      %v3225 = vunpack.c.h.b16 %v2882
      %v3226 = vunpack.c.l.b16 %v2883
      %v3227 = vunpack.c.h.b16 %v2883
      %v3228 = vunpack.c.l.b16 %v2884
      %v3229 = vunpack.c.h.b16 %v2884
      %v3230 = vunpack.c.l.b16 %v2885
      %v3231 = vunpack.c.h.b16 %v2885
      %v3232 = vunpack.c.l.b16 %v2886
      %v3233 = vunpack.c.h.b16 %v2886
      %v3234 = vunpack.c.l.b16 %v2887
      %v3235 = vunpack.c.h.b16 %v2887
      %v3236 = vunpack.c.l.b16 %v2888
      %v3237 = vunpack.c.h.b16 %v2888
      %v3238 = vunpack.c.l.b16 %v2889
      %v3239 = vunpack.c.h.b16 %v2889
      %v3240 = vunpack.c.l.b16 %v2890
      %v3241 = vunpack.c.h.b16 %v2890
      %v3242 = vunpack.c.l.b16 %v2891
      %v3243 = vunpack.c.h.b16 %v2891
      %v3244 = vunpack.c.l.b16 %v2892
      %v3245 = vunpack.c.h.b16 %v2892
      %v3246 = vunpack.c.l.b16 %v2893
      %v3247 = vunpack.c.h.b16 %v2893
      %v3248 = vunpack.c.l.b16 %v2894
      %v3249 = vunpack.c.h.b16 %v2894
      %v3250 = vunpack.c.l.b16 %v2895
      %v3251 = vunpack.c.h.b16 %v2895
      %v3252 = vunpack.c.l.b16 %v2896
      %v3253 = vunpack.c.h.b16 %v2896
      %v3254 = vunpack.c.l.b16 %v2897
      %v3255 = vunpack.c.h.b16 %v2897
      %v3256 = vunpack.c.l.b16 %v2898
      %v3257 = vunpack.c.h.b16 %v2898
      %v3258 = vunpack.c.l.b16 %v2899
      %v3259 = vunpack.c.h.b16 %v2899
      %v3260 = vunpack.c.l.b16 %v2900
      %v3261 = vunpack.c.h.b16 %v2900
      %v3262 = vunpack.c.l.b16 %v2901
      %v3263 = vunpack.c.h.b16 %v2901
      %v3264 = vunpack.c.l.b16 %v2902
      %v3265 = vunpack.c.h.b16 %v2902
      %v3266 = vunpack.c.l.b16 %v2903
      %v3267 = vunpack.c.h.b16 %v2903
      %v3268 = vunpack.c.l.b16 %v2904
      %v3269 = vunpack.c.h.b16 %v2904
      %v3270 = vunpack.c.l.b16 %v2905
      %v3271 = vunpack.c.h.b16 %v2905
      %v3272 = vunpack.c.l.b16 %v2906
      %v3273 = vunpack.c.h.b16 %v2906
      %v3274 = vunpack.c.l.b16 %v2907
      %v3275 = vunpack.c.h.b16 %v2907
      %v3276 = vunpack.c.l.b16 %v2908
      %v3277 = vunpack.c.h.b16 %v2908
      %v3278 = vunpack.c.l.b16 %v2909
      %v3279 = vunpack.c.h.b16 %v2909
      %v3280 = vunpack.c.l.b16 %v2910
      %v3281 = vunpack.c.h.b16 %v2910
      %v3282 = vunpack.c.l.b16 %v2911
      %v3283 = vunpack.c.h.b16 %v2911
      %v3284 = vunpack.c.l.b16 %v2912
      %v3285 = vunpack.c.h.b16 %v2912
      %v3286 = vunpack.c.l.b16 %v2913
      %v3287 = vunpack.c.h.b16 %v2913
      %v3288 = vunpack.c.l.b16 %v2914
      %v3289 = vunpack.c.h.b16 %v2914
      %v3290 = vunpack.c.l.b16 %v2915
      %v3291 = vunpack.c.h.b16 %v2915
      %v3292 = vunpack.c.l.b16 %v2916
      %v3293 = vunpack.c.h.b16 %v2916
      %v3294 = vunpack.c.l.b16 %v2917
      %v3295 = vunpack.c.h.b16 %v2917
      %v3296 = vunpack.c.l.b16 %v2918
      %v3297 = vunpack.c.h.b16 %v2918
      %v3298 = vunpack.c.l.b16 %v2919
      %v3299 = vunpack.c.h.b16 %v2919
      %v3300 = vunpack.c.l.b16 %v2920
      %v3301 = vunpack.c.h.b16 %v2920
      %v3302 = vunpack.c.l.b16 %v2921
      %v3303 = vunpack.c.h.b16 %v2921
      %v3304 = vunpack.c.l.b16 %v2922
      %v3305 = vunpack.c.h.b16 %v2922
      %v3306 = vunpack.c.l.b16 %v2923
      %v3307 = vunpack.c.h.b16 %v2923
      %v3308 = vunpack.c.l.b16 %v2924
      %v3309 = vunpack.c.h.b16 %v2924
      %v3310 = vunpack.c.l.b16 %v2925
      %v3311 = vunpack.c.h.b16 %v2925
      %v3312 = vunpack.c.l.b16 %v2926
      %v3313 = vunpack.c.h.b16 %v2926
      %v3314 = vunpack.c.l.b16 %v2927
      %v3315 = vunpack.c.h.b16 %v2927
      %v3316 = vunpack.c.l.b16 %v2928
      %v3317 = vunpack.c.h.b16 %v2928
      %v3318 = vunpack.c.l.b16 %v2929
      %v3319 = vunpack.c.h.b16 %v2929
      %v3320 = vunpack.c.l.b16 %v2930
      %v3321 = vunpack.c.h.b16 %v2930
      %v3322 = vunpack.c.l.b16 %v2931
      %v3323 = vunpack.c.h.b16 %v2931
      %v3324 = vunpack.c.l.b16 %v2932
      %v3325 = vunpack.c.h.b16 %v2932
      %v3326 = vunpack.c.l.b16 %v2933
      %v3327 = vunpack.c.h.b16 %v2933
      %v3328 = vunpack.c.l.b16 %v2934
      %v3329 = vunpack.c.h.b16 %v2934
      %v3330 = vunpack.c.l.b16 %v2935
      %v3331 = vunpack.c.h.b16 %v2935
      %v3332 = vpack.c.b16 %v3078, %v3076
      %v3333 = vpack.c.b16 %v3079, %v3077
      %v3334 = vpack.c.b16 %v3082, %v3080
      %v3335 = vpack.c.b16 %v3083, %v3081
      %v3336 = vpack.c.b16 %v3086, %v3084
      %v3337 = vpack.c.b16 %v3087, %v3085
      %v3338 = vpack.c.b16 %v3090, %v3088
      %v3339 = vpack.c.b16 %v3091, %v3089
      %v3340 = vpack.c.b16 %v3094, %v3092
      %v3341 = vpack.c.b16 %v3095, %v3093
      %v3342 = vpack.c.b16 %v3098, %v3096
      %v3343 = vpack.c.b16 %v3099, %v3097
      %v3344 = vpack.c.b16 %v3102, %v3100
      %v3345 = vpack.c.b16 %v3103, %v3101
      %v3346 = vpack.c.b16 %v3106, %v3104
      %v3347 = vpack.c.b16 %v3107, %v3105
      %v3348 = vpack.c.b16 %v3110, %v3108
      %v3349 = vpack.c.b16 %v3111, %v3109
      %v3350 = vpack.c.b16 %v3114, %v3112
      %v3351 = vpack.c.b16 %v3115, %v3113
      %v3352 = vpack.c.b16 %v3118, %v3116
      %v3353 = vpack.c.b16 %v3119, %v3117
      %v3354 = vpack.c.b16 %v3122, %v3120
      %v3355 = vpack.c.b16 %v3123, %v3121
      %v3356 = vpack.c.b16 %v3126, %v3124
      %v3357 = vpack.c.b16 %v3127, %v3125
      %v3358 = vpack.c.b16 %v3130, %v3128
      %v3359 = vpack.c.b16 %v3131, %v3129
      %v3360 = vpack.c.b16 %v3134, %v3132
      %v3361 = vpack.c.b16 %v3135, %v3133
      %v3362 = vpack.c.b16 %v3138, %v3136
      %v3363 = vpack.c.b16 %v3139, %v3137
      %v3364 = vpack.c.b16 %v3142, %v3140
      %v3365 = vpack.c.b16 %v3143, %v3141
      %v3366 = vpack.c.b16 %v3146, %v3144
      %v3367 = vpack.c.b16 %v3147, %v3145
      %v3368 = vpack.c.b16 %v3150, %v3148
      %v3369 = vpack.c.b16 %v3151, %v3149
      %v3370 = vpack.c.b16 %v3154, %v3152
      %v3371 = vpack.c.b16 %v3155, %v3153
      %v3372 = vpack.c.b16 %v3158, %v3156
      %v3373 = vpack.c.b16 %v3159, %v3157
      %v3374 = vpack.c.b16 %v3162, %v3160
      %v3375 = vpack.c.b16 %v3163, %v3161
      %v3376 = vpack.c.b16 %v3166, %v3164
      %v3377 = vpack.c.b16 %v3167, %v3165
      %v3378 = vpack.c.b16 %v3170, %v3168
      %v3379 = vpack.c.b16 %v3171, %v3169
      %v3380 = vpack.c.b16 %v3174, %v3172
      %v3381 = vpack.c.b16 %v3175, %v3173
      %v3382 = vpack.c.b16 %v3178, %v3176
      %v3383 = vpack.c.b16 %v3179, %v3177
      %v3384 = vpack.c.b16 %v3182, %v3180
      %v3385 = vpack.c.b16 %v3183, %v3181
      %v3386 = vpack.c.b16 %v3186, %v3184
      %v3387 = vpack.c.b16 %v3187, %v3185
      %v3388 = vpack.c.b16 %v3190, %v3188
      %v3389 = vpack.c.b16 %v3191, %v3189
      %v3390 = vpack.c.b16 %v3194, %v3192
      %v3391 = vpack.c.b16 %v3195, %v3193
      %v3392 = vpack.c.b16 %v3198, %v3196
      %v3393 = vpack.c.b16 %v3199, %v3197
      %v3394 = vpack.c.b16 %v3202, %v3200
      %v3395 = vpack.c.b16 %v3203, %v3201
      %v3396 = vpack.c.b16 %v3206, %v3204
      %v3397 = vpack.c.b16 %v3207, %v3205
      %v3398 = vpack.c.b16 %v3210, %v3208
      %v3399 = vpack.c.b16 %v3211, %v3209
      %v3400 = vpack.c.b16 %v3214, %v3212
      %v3401 = vpack.c.b16 %v3215, %v3213
      %v3402 = vpack.c.b16 %v3218, %v3216
      %v3403 = vpack.c.b16 %v3219, %v3217
      %v3404 = vpack.c.b16 %v3222, %v3220
      %v3405 = vpack.c.b16 %v3223, %v3221
      %v3406 = vpack.c.b16 %v3226, %v3224
      %v3407 = vpack.c.b16 %v3227, %v3225
      %v3408 = vpack.c.b16 %v3230, %v3228
      %v3409 = vpack.c.b16 %v3231, %v3229
      %v3410 = vpack.c.b16 %v3234, %v3232
      %v3411 = vpack.c.b16 %v3235, %v3233
      %v3412 = vpack.c.b16 %v3238, %v3236
      %v3413 = vpack.c.b16 %v3239, %v3237
      %v3414 = vpack.c.b16 %v3242, %v3240
      %v3415 = vpack.c.b16 %v3243, %v3241
      %v3416 = vpack.c.b16 %v3246, %v3244
      %v3417 = vpack.c.b16 %v3247, %v3245
      %v3418 = vpack.c.b16 %v3250, %v3248
      %v3419 = vpack.c.b16 %v3251, %v3249
      %v3420 = vpack.c.b16 %v3254, %v3252
      %v3421 = vpack.c.b16 %v3255, %v3253
      %v3422 = vpack.c.b16 %v3258, %v3256
      %v3423 = vpack.c.b16 %v3259, %v3257
      %v3424 = vpack.c.b16 %v3262, %v3260
      %v3425 = vpack.c.b16 %v3263, %v3261
      %v3426 = vpack.c.b16 %v3266, %v3264
      %v3427 = vpack.c.b16 %v3267, %v3265
      %v3428 = vpack.c.b16 %v3270, %v3268
      %v3429 = vpack.c.b16 %v3271, %v3269
      %v3430 = vpack.c.b16 %v3274, %v3272
      %v3431 = vpack.c.b16 %v3275, %v3273
      %v3432 = vpack.c.b16 %v3278, %v3276
      %v3433 = vpack.c.b16 %v3279, %v3277
      %v3434 = vpack.c.b16 %v3282, %v3280
      %v3435 = vpack.c.b16 %v3283, %v3281
      %v3436 = vpack.c.b16 %v3286, %v3284
      %v3437 = vpack.c.b16 %v3287, %v3285
      %v3438 = vpack.c.b16 %v3290, %v3288
      %v3439 = vpack.c.b16 %v3291, %v3289
      %v3440 = vpack.c.b16 %v3294, %v3292
      %v3441 = vpack.c.b16 %v3295, %v3293
      %v3442 = vpack.c.b16 %v3298, %v3296
      %v3443 = vpack.c.b16 %v3299, %v3297
      %v3444 = vpack.c.b16 %v3302, %v3300
      %v3445 = vpack.c.b16 %v3303, %v3301
      %v3446 = vpack.c.b16 %v3306, %v3304
      %v3447 = vpack.c.b16 %v3307, %v3305
      %v3448 = vpack.c.b16 %v3310, %v3308
      %v3449 = vpack.c.b16 %v3311, %v3309
      %v3450 = vpack.c.b16 %v3314, %v3312
      %v3451 = vpack.c.b16 %v3315, %v3313
      %v3452 = vpack.c.b16 %v3318, %v3316
      %v3453 = vpack.c.b16 %v3319, %v3317
      %v3454 = vpack.c.b16 %v3322, %v3320
      %v3455 = vpack.c.b16 %v3323, %v3321
      %v3456 = vpack.c.b16 %v3326, %v3324
      %v3457 = vpack.c.b16 %v3327, %v3325
      %v3458 = vpack.c.b16 %v3330, %v3328
      %v3459 = vpack.c.b16 %v3331, %v3329
      %3588 = vmatprep.subr.bf16.mxu0 %v3347
      %3589 = vmatpush1.bf16.msra.mxu0 %v3346
      %3590 = vmatprep.subr.bf16.mxu0 %v3345
      %3591 = vmatpush1.bf16.msra.mxu0 %v3344
      %3592 = vmatprep.subr.bf16.mxu0 %v3343
      %3593 = vmatpush1.bf16.msra.mxu0 %v3342
      %3594 = vmatprep.subr.bf16.mxu0 %v3341
      %3595 = vmatpush1.bf16.msra.mxu0 %v3340
      %3596 = vmatprep.subr.bf16.mxu0 %v3339
      %3597 = vmatpush1.bf16.msra.mxu0 %v3338
      %3598 = vmatprep.subr.bf16.mxu0 %v3337
      %3599 = vmatpush1.bf16.msra.mxu0 %v3336
      %3600 = vmatprep.subr.bf16.mxu0 %v3335
      %3601 = vmatpush1.bf16.msra.mxu0 %v3334
      %3602 = vmatprep.subr.bf16.mxu0 %v3333
      %3603 = vmatpush1.bf16.msra.mxu0 %v3332
      %3604 = vmatprep.subr.bf16.mxu0 %v3363
      %3605 = vmatpush2.bf16.msra.mxu0 %v3362
      %3606 = vmatprep.subr.bf16.mxu0 %v3361
      %3607 = vmatpush2.bf16.msra.mxu0 %v3360
      %3608 = vmatprep.subr.bf16.mxu0 %v3359
      %3609 = vmatpush2.bf16.msra.mxu0 %v3358
      %3610 = vmatprep.subr.bf16.mxu0 %v3357
      %3611 = vmatpush2.bf16.msra.mxu0 %v3356
      %3612 = vmatprep.subr.bf16.mxu0 %v3355
      %3613 = vmatpush2.bf16.msra.mxu0 %v3354
      %3614 = vmatprep.subr.bf16.mxu0 %v3353
      %3615 = vmatpush2.bf16.msra.mxu0 %v3352
      %3616 = vmatprep.subr.bf16.mxu0 %v3351
      %3617 = vmatpush2.bf16.msra.mxu0 %v3350
      %3618 = vmatprep.subr.bf16.mxu0 %v3349
      %3619 = vmatpush2.bf16.msra.mxu0 %v3348
      %3620 = vmatprep.mubr.bf16.mxu0 %v2801
      %3621 = vmatmul.mubr.bf16.gmra.mxu0 %v2800
      %v3622 = vpop.f32.mrf.mxu0
      %v3623 = vadd.f32 %v2941, %v3622
      %v3624 = vpop.f32.mrf.mxu0
      %v3625 = vadd.f32 %v2945, %v3624
      %v3626 = vpop.f32.mrf.mxu0
      %v3627 = vpop.f32.mrf.mxu0
      %3628 = vdwg.mxu0
      %3629 = vmatprep.subr.bf16.mxu0 %v3379
      %3630 = vmatpush1.bf16.msra.mxu0 %v3378
      %3631 = vmatprep.subr.bf16.mxu0 %v3377
      %3632 = vmatpush1.bf16.msra.mxu0 %v3376
      %3633 = vmatprep.subr.bf16.mxu0 %v3375
      %3634 = vmatpush1.bf16.msra.mxu0 %v3374
      %3635 = vmatprep.subr.bf16.mxu0 %v3373
      %3636 = vmatpush1.bf16.msra.mxu0 %v3372
      %3637 = vmatprep.subr.bf16.mxu0 %v3371
      %3638 = vmatpush1.bf16.msra.mxu0 %v3370
      %3639 = vmatprep.subr.bf16.mxu0 %v3369
      %3640 = vmatpush1.bf16.msra.mxu0 %v3368
      %3641 = vmatprep.subr.bf16.mxu0 %v3367
      %3642 = vmatpush1.bf16.msra.mxu0 %v3366
      %3643 = vmatprep.subr.bf16.mxu0 %v3365
      %3644 = vmatpush1.bf16.msra.mxu0 %v3364
      %3645 = vmatprep.subr.bf16.mxu0 %v3395
      %3646 = vmatpush2.bf16.msra.mxu0 %v3394
      %3647 = vmatprep.subr.bf16.mxu0 %v3393
      %3648 = vmatpush2.bf16.msra.mxu0 %v3392
      %3649 = vmatprep.subr.bf16.mxu0 %v3391
      %3650 = vmatpush2.bf16.msra.mxu0 %v3390
      %3651 = vmatprep.subr.bf16.mxu0 %v3389
      %3652 = vmatpush2.bf16.msra.mxu0 %v3388
      %3653 = vmatprep.subr.bf16.mxu0 %v3387
      %3654 = vmatpush2.bf16.msra.mxu0 %v3386
      %3655 = vmatprep.subr.bf16.mxu0 %v3385
      %3656 = vmatpush2.bf16.msra.mxu0 %v3384
      %3657 = vmatprep.subr.bf16.mxu0 %v3383
      %3658 = vmatpush2.bf16.msra.mxu0 %v3382
      %3659 = vmatprep.subr.bf16.mxu0 %v3381
      %3660 = vmatpush2.bf16.msra.mxu0 %v3380
      %3661 = vmatprep.mubr.bf16.mxu0 %v2803
      %3662 = vmatmul.mubr.bf16.gmra.mxu0 %v2802
      %v3663 = vpop.f32.mrf.mxu0
      %v3664 = vadd.f32 %v3623, %v3663
      %v3665 = vpop.f32.mrf.mxu0
      %v3666 = vadd.f32 %v3625, %v3665
      %v3667 = vpop.f32.mrf.mxu0
      %v3668 = vpop.f32.mrf.mxu0
      %3669 = vdwg.mxu0
      %3670 = vmatprep.subr.bf16.mxu0 %v3411
      %3671 = vmatpush1.bf16.msra.mxu0 %v3410
      %3672 = vmatprep.subr.bf16.mxu0 %v3409
      %3673 = vmatpush1.bf16.msra.mxu0 %v3408
      %3674 = vmatprep.subr.bf16.mxu0 %v3407
      %3675 = vmatpush1.bf16.msra.mxu0 %v3406
      %3676 = vmatprep.subr.bf16.mxu0 %v3405
      %3677 = vmatpush1.bf16.msra.mxu0 %v3404
      %3678 = vmatprep.subr.bf16.mxu0 %v3403
      %3679 = vmatpush1.bf16.msra.mxu0 %v3402
      %3680 = vmatprep.subr.bf16.mxu0 %v3401
      %3681 = vmatpush1.bf16.msra.mxu0 %v3400
      %3682 = vmatprep.subr.bf16.mxu0 %v3399
      %3683 = vmatpush1.bf16.msra.mxu0 %v3398
      %3684 = vmatprep.subr.bf16.mxu0 %v3397
      %3685 = vmatpush1.bf16.msra.mxu0 %v3396
      %3686 = vmatprep.subr.bf16.mxu0 %v3427
      %3687 = vmatpush2.bf16.msra.mxu0 %v3426
      %3688 = vmatprep.subr.bf16.mxu0 %v3425
      %3689 = vmatpush2.bf16.msra.mxu0 %v3424
      %3690 = vmatprep.subr.bf16.mxu0 %v3423
      %3691 = vmatpush2.bf16.msra.mxu0 %v3422
      %3692 = vmatprep.subr.bf16.mxu0 %v3421
      %3693 = vmatpush2.bf16.msra.mxu0 %v3420
      %3694 = vmatprep.subr.bf16.mxu0 %v3419
      %3695 = vmatpush2.bf16.msra.mxu0 %v3418
      %3696 = vmatprep.subr.bf16.mxu0 %v3417
      %3697 = vmatpush2.bf16.msra.mxu0 %v3416
      %3698 = vmatprep.subr.bf16.mxu0 %v3415
      %3699 = vmatpush2.bf16.msra.mxu0 %v3414
      %3700 = vmatprep.subr.bf16.mxu0 %v3413
      %3701 = vmatpush2.bf16.msra.mxu0 %v3412
      %3702 = vmatprep.mubr.bf16.mxu0 %v2805
      %3703 = vmatmul.mubr.bf16.gmra.mxu0 %v2804
      %v3704 = vpop.f32.mrf.mxu0
      %v3705 = vadd.f32 %v3664, %v3704
      %v3706 = vpop.f32.mrf.mxu0
      %v3707 = vadd.f32 %v3666, %v3706
      %v3708 = vpop.f32.mrf.mxu0
      %v3709 = vpop.f32.mrf.mxu0
      %3710 = vdwg.mxu0
      %3711 = vmatprep.subr.bf16.mxu0 %v3443
      %3712 = vmatpush1.bf16.msra.mxu0 %v3442
      %3713 = vmatprep.subr.bf16.mxu0 %v3441
      %3714 = vmatpush1.bf16.msra.mxu0 %v3440
      %3715 = vmatprep.subr.bf16.mxu0 %v3439
      %3716 = vmatpush1.bf16.msra.mxu0 %v3438
      %3717 = vmatprep.subr.bf16.mxu0 %v3437
      %3718 = vmatpush1.bf16.msra.mxu0 %v3436
      %3719 = vmatprep.subr.bf16.mxu0 %v3435
      %3720 = vmatpush1.bf16.msra.mxu0 %v3434
      %3721 = vmatprep.subr.bf16.mxu0 %v3433
      %3722 = vmatpush1.bf16.msra.mxu0 %v3432
      %3723 = vmatprep.subr.bf16.mxu0 %v3431
      %3724 = vmatpush1.bf16.msra.mxu0 %v3430
      %3725 = vmatprep.subr.bf16.mxu0 %v3429
      %3726 = vmatpush1.bf16.msra.mxu0 %v3428
      %3727 = vmatprep.subr.bf16.mxu0 %v3459
      %3728 = vmatpush2.bf16.msra.mxu0 %v3458
      %3729 = vmatprep.subr.bf16.mxu0 %v3457
      %3730 = vmatpush2.bf16.msra.mxu0 %v3456
      %3731 = vmatprep.subr.bf16.mxu0 %v3455
      %3732 = vmatpush2.bf16.msra.mxu0 %v3454
      %3733 = vmatprep.subr.bf16.mxu0 %v3453
      %3734 = vmatpush2.bf16.msra.mxu0 %v3452
      %3735 = vmatprep.subr.bf16.mxu0 %v3451
      %3736 = vmatpush2.bf16.msra.mxu0 %v3450
      %3737 = vmatprep.subr.bf16.mxu0 %v3449
      %3738 = vmatpush2.bf16.msra.mxu0 %v3448
      %3739 = vmatprep.subr.bf16.mxu0 %v3447
      %3740 = vmatpush2.bf16.msra.mxu0 %v3446
      %3741 = vmatprep.subr.bf16.mxu0 %v3445
      %3742 = vmatpush2.bf16.msra.mxu0 %v3444
      %3743 = vmatprep.mubr.bf16.mxu0 %v2807
      %3744 = vmatmul.mubr.bf16.gmra.mxu0 %v2806
      %v3745 = vpop.f32.mrf.mxu0
      %v3746 = vadd.f32 %v3705, %v3745
      %v3747 = vpop.f32.mrf.mxu0
      %v3748 = vadd.f32 %v3707, %v3747
      %v3749 = vpop.f32.mrf.mxu0
      %v3750 = vpop.f32.mrf.mxu0
      %3751 = vdwg.mxu0
      %v3754 = vcombine.low %v3746, %v3748
      %v3756 = vunpack.c.l.s4 1983009808
      %v3757 = vunpack.c.0.s8 %v3756
      %v3758 = vlaneseq
      %v3759 = vshrl.u32 %v3758, 7
      %v3760 = vsub.s32 %v3757, %v3759
      %v3761 = vrot.slane %v3754, %v3760
      %3763 = vst [vmem:[#allocation8] sm:$0xf] %v3761
    $region53: #{tpu_custom_call.1} parent=1 // pred_fallthru
      _
    // Predicated region
    $region54: #{tpu_custom_call.1} parent=1 // pred_check
      _
    $region55: #{tpu_custom_call.1} parent=1 // pred_check_branch
      %3765 = sbr.rel (0) target = $region57
    $region56: #{tpu_custom_call.1} parent=1 // pred_region
      %s3767 = ssub.s32 64, 64
      %3768 = vsyncadd [#allocation5], %s3767
      %s3770 = sshll.u32 [#allocation8], 4
      %s3771 = int_to_ptr.vmem [resolvable:$true] %s3770
      %3773 = dma.vmem_to_hbm [thread:$0]  %s3771, 64, %s9, [#allocation5]
    $region57: #{tpu_custom_call.1} parent=1 // pred_fallthru
      _
    // Predicated region
    $region58: #{tpu_custom_call.1} parent=1 // pred_check
      _
    $region59: #{tpu_custom_call.1} parent=1 // pred_check_branch
      %3775 = sbr.rel (0) target = $region61
    $region60: #{tpu_custom_call.1} parent=1 // pred_region
      %3776 = dma.done [#allocation5], 64
    $region61: #{tpu_custom_call.1} parent=1 // pred_fallthru
      _
    %3777 = vsyncpa [#allocation4], 1
    %3778 = vsyncpa [#allocation7], 1
    %3779 = vsyncpa [#allocation5], 1

</llo_original>
